<compile_context>
chip_gen: v7x
topology: tpu7x:2x2x1
jax: 0.10.0
libtpu: 0.0.40
codegen_flags: <defaults>
</compile_context>

<pallas_src>
import jax
import jax.numpy as jnp
import numpy as np
from jax import lax
from jax.experimental import pallas as pl
from jax.experimental.pallas import tpu as pltpu

# --------------------------- configuration ---------------------------------
IN_CH = 8
OUT_CH = 8
FEAT_DIM = IN_CH + OUT_CH        # 16 (channel dim after concat)
OUT_DIM = OUT_CH                 # 8
MAP_DIM = OUT_CH                 # 8 (map_dim defaults to out_ch)
HEADS = 2
DIM_HEAD = 16
INNER = HEADS * DIM_HEAD         # 32
EXPANSION = 2
MAP_SIZE = (4, 4, 4)
BN_EPS = 1e-5

# ------------------ packed weight slab layout (rows, col 0 aligned) ---------
SLAB_COLS = 128
R_WQVF = 0      # (64, 16)  feat_qv  (BN1 + attn scale folded, head-grouped)
R_WQVM = 64     # (64,  8)  map_qv   (BN2 folded, head-grouped)
R_BQVF = 128    # (64,  1)  feat_qv bias (from BN1 shift)
R_BQVM = 192    # (64,  1)  map_qv bias  (from BN2 shift)
R_WFO = 256     # ( 8, 32)  feat_out (head-merge folded into column order)
R_WMO = 264     # ( 8, 32)  map_out
R_WSC = 272     # ( 8, 16)  shortcut 1x1 conv
R_WFF1 = 280    # (16,  8)  FF expand 1x1 conv
R_WFF2 = 296    # ( 8, 16)  FF project 1x1 conv
R_SC_S = 304    # (16,  1)  shortcut BN scale
R_SC_B = 320    # (16,  1)  shortcut BN shift
R_FF1S = 336    # ( 8,  1)  FF BN1 scale
R_FF1B = 344    # ( 8,  1)  FF BN1 shift
R_FF2S = 352    # (16,  1)  FF BN2 scale
R_FF2B = 368    # (16,  1)  FF BN2 shift
SLAB_ROWS = 384


# --------------------------- in-kernel helpers -------------------------------
def _gelu(x):
    """Exact (erf-based) GELU matching nn.GELU().

    erf via Abramowitz–Stegun 7.1.26 (max abs err 1.5e-7) so only exp / mul /
    select are needed inside the Mosaic kernel.
    """
    z = x * 0.7071067811865476
    a = jnp.abs(z)
    t = 1.0 / (1.0 + 0.3275911 * a)
    poly = t * (0.254829592 + t * (-0.284496736 + t * (1.421413741
                + t * (-1.453152027 + t * 1.061405429))))
    erf_a = 1.0 - poly * jnp.exp(-(a * a))
    erf_z = jnp.where(z >= 0.0, erf_a, -erf_a)
    return 0.5 * x * (1.0 + erf_z)


# --------------------------- fused Pallas kernel -----------------------------
def _fused_block_kernel(x1_ref, x2_ref, xm_ref, u_ref, w_ref, out_ref, smap_ref):
    """Whole BidirectionAttentionBlock for one batch element, channel-major.

    x1 : (1, IN_CH, Ns)   coarse feature at its original (small) resolution
    x2 : (1, OUT_CH, Nf)  skip feature (target resolution)
    xm : (1, MAP_DIM, Nm) semantic map (un-normalized; BN2 folded into map_qv)
    u  : (Ns, Nf)         trilinear align_corners interpolation matrix
    w  : (SLAB_ROWS, 128) packed folded weights / biases / affines
    out: (1, OUT_DIM, Nf),  smap: (1, MAP_DIM, Nm)
    """
    f32 = jnp.float32
    x1s = x1_ref[0]                                               # (8, Ns)
    x2 = x2_ref[0]                                                # (8, Nf)
    xm = xm_ref[0]                                                # (8, Nm)

    # ---- trilinear (align_corners=True) upsample fused as one MXU dot
    x1u = jnp.dot(x1s, u_ref[...], preferred_element_type=f32)    # (8, Nf)

    # ---- qv projections (BN + attention scale pre-folded; feat split keeps
    #      the x1/x2 concat out of the kernel)
    wqvf = w_ref[R_WQVF:R_WQVF + 2 * INNER, 0:FEAT_DIM]           # (64, 16)
    bqvf = w_ref[R_BQVF:R_BQVF + 2 * INNER, 0:1]                  # (64, 1)
    qv_f = (jnp.dot(wqvf[:, :IN_CH], x1u, preferred_element_type=f32)
            + jnp.dot(wqvf[:, IN_CH:], x2, preferred_element_type=f32)
            + bqvf)                                               # (64, Nf)

    wqvm = w_ref[R_WQVM:R_WQVM + 2 * INNER, 0:MAP_DIM]            # (64, 8)
    bqvm = w_ref[R_BQVM:R_BQVM + 2 * INNER, 0:1]                  # (64, 1)
    qv_m = jnp.dot(wqvm, xm, preferred_element_type=f32) + bqvm   # (64, Nm)

    wfo = w_ref[R_WFO:R_WFO + OUT_DIM, 0:INNER]                   # (8, 32)
    wmo = w_ref[R_WMO:R_WMO + MAP_DIM, 0:INNER]                   # (8, 32)

    # ---- bidirectional attention, heads unrolled; rows grouped as
    #      [q_h0 | q_h1 | v_h0 | v_h1] by the weight permutation.
    feat_attn = None
    map_res = None
    for h in range(HEADS):
        q0 = h * DIM_HEAD
        v0 = INNER + h * DIM_HEAD
        fq = qv_f[q0:q0 + DIM_HEAD]          # (dh, Nf)  (already * scale)
        fv = qv_f[v0:v0 + DIM_HEAD]          # (dh, Nf)
        mq = qv_m[q0:q0 + DIM_HEAD]          # (dh, Nm)
        mv = qv_m[v0:v0 + DIM_HEAD]          # (dh, Nm)

        # attn[j, i] = <mq[:, j], fq[:, i]>  -> lane-dense (Nm, Nf)
        attn = lax.dot_general(mq, fq, (((0,), (0,)), ((), ())),
                               preferred_element_type=f32)        # (Nm, Nf)

        # softmax over map tokens (axis 0), consumed immediately
        e1 = jnp.exp(attn - jnp.max(attn, axis=0, keepdims=True))
        a1 = e1 / jnp.sum(e1, axis=0, keepdims=True)
        fo_h = jnp.dot(mv, a1, preferred_element_type=f32)        # (dh, Nf)
        fa_h = jnp.dot(wfo[:, q0:q0 + DIM_HEAD], fo_h,
                       preferred_element_type=f32)                # (OUT, Nf)
        feat_attn = fa_h if feat_attn is None else feat_attn + fa_h

        # softmax over feat tokens (axis 1), consumed immediately
        e2 = jnp.exp(attn - jnp.max(attn, axis=1, keepdims=True))
        a2 = e2 / jnp.sum(e2, axis=1, keepdims=True)
        mo_h = lax.dot_general(fv, a2, (((1,), (1,)), ((), ())),
                               preferred_element_type=f32)        # (dh, Nm)
        mr_h = jnp.dot(wmo[:, q0:q0 + DIM_HEAD], mo_h,
                       preferred_element_type=f32)                # (MAP, Nm)
        map_res = mr_h if map_res is None else map_res + mr_h

    # ---- shortcut: ConvNormAct(preact=True) = 1x1 conv(GELU(BN(x)))
    # TODO(synk): ConvNormAct / FusedMBConv definitions were not provided;
    #             standard pre-activation 1x1 forms are assumed.
    sc_s = w_ref[R_SC_S:R_SC_S + FEAT_DIM, 0:1]
    sc_b = w_ref[R_SC_B:R_SC_B + FEAT_DIM, 0:1]
    wsc = w_ref[R_WSC:R_WSC + OUT_DIM, 0:FEAT_DIM]                # (8, 16)
    sc = (jnp.dot(wsc[:, :IN_CH],
                  _gelu(x1u * sc_s[:IN_CH] + sc_b[:IN_CH]),
                  preferred_element_type=f32)
          + jnp.dot(wsc[:, IN_CH:],
                    _gelu(x2 * sc_s[IN_CH:] + sc_b[IN_CH:]),
                    preferred_element_type=f32))                  # (8, Nf)
    out = feat_attn + sc

    # ---- feed-forward: FusedMBConv(expansion=2, k=1), pre-act, residual
    ff1_s = w_ref[R_FF1S:R_FF1S + OUT_DIM, 0:1]
    ff1_b = w_ref[R_FF1B:R_FF1B + OUT_DIM, 0:1]
    wff1 = w_ref[R_WFF1:R_WFF1 + OUT_DIM * EXPANSION, 0:OUT_DIM]
    h1 = jnp.dot(wff1, _gelu(out * ff1_s + ff1_b),
                 preferred_element_type=f32)                      # (16, Nf)

    ff2_s = w_ref[R_FF2S:R_FF2S + OUT_DIM * EXPANSION, 0:1]
    ff2_b = w_ref[R_FF2B:R_FF2B + OUT_DIM * EXPANSION, 0:1]
    wff2 = w_ref[R_WFF2:R_WFF2 + OUT_DIM, 0:OUT_DIM * EXPANSION]
    h2 = jnp.dot(wff2, _gelu(h1 * ff2_s + ff2_b),
                 preferred_element_type=f32)                      # (8, Nf)

    out_ref[0] = out + h2
    # Nm=64 < 128 lanes -> masked store, deliberately left un-padded (the
    # map-side cost is tiny and padding would need attention masking).
    smap_ref[0] = xm + map_res                                    # mapp += semantic_map


def fused_bidirection_attention_block(wslab, U, x1s, x2f, xmf):
    """x1s: (B, 8, Ns), x2f: (B, 8, Nf), xmf: (B, 8, Nm) channel-major slabs."""
    B, _, Ns = x1s.shape
    Nf = x2f.shape[2]
    Nm = xmf.shape[2]

    in_specs = [
        pl.BlockSpec((1, IN_CH, Ns), lambda i: (i, 0, 0)),
        pl.BlockSpec((1, OUT_CH, Nf), lambda i: (i, 0, 0)),
        pl.BlockSpec((1, MAP_DIM, Nm), lambda i: (i, 0, 0)),
        pl.BlockSpec((Ns, Nf), lambda i: (0, 0)),                 # U (resident)
        pl.BlockSpec((SLAB_ROWS, SLAB_COLS), lambda i: (0, 0)),   # weights (resident)
    ]
    out_specs = (pl.BlockSpec((1, OUT_DIM, Nf), lambda i: (i, 0, 0)),
                 pl.BlockSpec((1, MAP_DIM, Nm), lambda i: (i, 0, 0)))
    out_shape = (jax.ShapeDtypeStruct((B, OUT_DIM, Nf), jnp.float32),
                 jax.ShapeDtypeStruct((B, MAP_DIM, Nm), jnp.float32))

    return pl.pallas_call(
        _fused_block_kernel,
        out_shape=out_shape,
        grid=(B,),
        in_specs=in_specs,
        out_specs=out_specs,
        compiler_params=pltpu.CompilerParams(dimension_semantics=("parallel",)),
    )(x1s, x2f, xmf, U, wslab)


# --------------------------- trilinear interp matrix -------------------------
def _interp_matrix_1d(n_in, n_out):
    """1-D align_corners=True linear interpolation matrix (n_in, n_out)."""
    m = np.zeros((n_in, n_out), np.float64)
    for j in range(n_out):
        pos = 0.0 if n_out == 1 else j * (n_in - 1) / (n_out - 1)
        i0 = min(max(int(np.floor(pos)), 0), n_in - 1)
        i1 = min(i0 + 1, n_in - 1)
        frac = pos - i0
        m[i0, j] += 1.0 - frac
        m[i1, j] += frac
    return m


def _trilinear_matrix(in_size, out_size):
    mats = [_interp_matrix_1d(i, o) for i, o in zip(in_size, out_size)]
    return np.kron(np.kron(mats[0], mats[1]), mats[2]).astype(np.float32)


# --------------------------- top-level forward --------------------------------
def up_block_forward(wslab, x1, x2, map1, map2=None):
    """up_block.forward with map_shortcut=False, trans_num=1, conv_num=0."""
    B = x1.shape[0]
    din, hin, win = x1.shape[-3:]
    D, H, W = x2.shape[-3:]
    Ns, Nf = din * hin * win, D * H * W
    md, mh, mw = map1.shape[-3:]
    Nm = md * mh * mw

    # constant interpolation matrix, baked at trace time (fused into kernel)
    U = jnp.asarray(_trilinear_matrix((din, hin, win), (D, H, W)))

    # channel-major slabs: pure reshapes, no transposes, no host upsample
    x1s = x1.reshape(B, IN_CH, Ns)
    x2f = x2.reshape(B, OUT_CH, Nf)
    xmf = map1.reshape(B, MAP_DIM, Nm)                            # map_shortcut=False

    out_cm, smap_cm = fused_bidirection_attention_block(wslab, U, x1s, x2f, xmf)

    out = out_cm.reshape(B, OUT_DIM, D, H, W)
    smap_out = smap_cm.reshape(B, MAP_DIM, md, mh, mw)
    # conv_num = 0 -> self.conv_blocks is an empty nn.Sequential (identity)
    return out, smap_out


# --------------------------- parameter init / folding ------------------------
def _bn_affine(key, c):
    """Eval-mode BatchNorm3d folded to per-channel (scale, shift)."""
    k1, k2, k3, k4 = jax.random.split(key, 4)
    gamma = 1.0 + 0.1 * jax.random.normal(k1, (c,), jnp.float32)
    beta = 0.1 * jax.random.normal(k2, (c,), jnp.float32)
    mean = 0.1 * jax.random.normal(k3, (c,), jnp.float32)
    var = 1.0 + 0.2 * jax.random.uniform(k4, (c,), jnp.float32)
    scale = gamma / jnp.sqrt(var + BN_EPS)
    shift = beta - mean * scale
    return scale, shift


def _w(key, cin, cout):
    return jax.random.normal(key, (cin, cout), jnp.float32) * (1.0 / np.sqrt(cin))


def init_params(key):
    keys = jax.random.split(key, 12)
    p = {}
    p["bn1_scale"], p["bn1_shift"] = _bn_affine(keys[0], FEAT_DIM)
    p["bn2_scale"], p["bn2_shift"] = _bn_affine(keys[1], MAP_DIM)
    p["feat_qv_w"] = _w(keys[2], FEAT_DIM, 2 * INNER)     # token-major (Cin, Cout)
    p["map_qv_w"] = _w(keys[3], MAP_DIM, 2 * INNER)
    p["feat_out_w"] = _w(keys[4], INNER, OUT_DIM)
    p["map_out_w"] = _w(keys[5], INNER, MAP_DIM)
    p["sc_bn_scale"], p["sc_bn_shift"] = _bn_affine(keys[6], FEAT_DIM)
    p["sc_w"] = _w(keys[7], FEAT_DIM, OUT_DIM)
    p["ff_bn1_scale"], p["ff_bn1_shift"] = _bn_affine(keys[8], OUT_DIM)
    p["ff_w1"] = _w(keys[9], OUT_DIM, OUT_DIM * EXPANSION)
    p["ff_bn2_scale"], p["ff_bn2_shift"] = _bn_affine(keys[10], OUT_DIM * EXPANSION)
    p["ff_w2"] = _w(keys[11], OUT_DIM * EXPANSION, OUT_DIM)
    return p


def _fold_bn_np(scale, shift, w):
    """y = (x*scale+shift) @ w  ->  channel-major W' (Cout,Cin), bias (Cout,1)."""
    scale, shift, w = np.array(scale), np.array(shift), np.array(w)
    w_folded = (w * scale[:, None]).T          # (Cout, Cin)
    b = (shift @ w)[:, None]                   # (Cout, 1)
    return w_folded, b


def prepare_kernel_params(p):
    """Fold BN + attention scale into weights, bake head split/merge into
    weight row/column order, and pack everything into one (384,128) slab."""
    # PyTorch rearrange1/rearrange2 use channel index l = dh*heads + head.
    # Kernel uses grouped order k = head*DIM_HEAD + dh.
    qv_perm = np.array([part * INNER + d * HEADS + h
                        for part in range(2)            # q then v (chunk(2, dim=1))
                        for h in range(HEADS)
                        for d in range(DIM_HEAD)], dtype=np.int64)
    inner_perm = np.array([d * HEADS + h
                           for h in range(HEADS)
                           for d in range(DIM_HEAD)], dtype=np.int64)
    attn_scale = DIM_HEAD ** (-0.5)

    # feat_qv: fold norm1, regroup heads, fold attention scale into q rows
    wf, bf = _fold_bn_np(p["bn1_scale"], p["bn1_shift"], p["feat_qv_w"])  # (64,16),(64,1)
    wf, bf = wf[qv_perm], bf[qv_perm]
    wf[:INNER] *= attn_scale
    bf[:INNER] *= attn_scale

    # map_qv: fold norm2, regroup heads
    wm, bm = _fold_bn_np(p["bn2_scale"], p["bn2_shift"], p["map_qv_w"])   # (64,8),(64,1)
    wm, bm = wm[qv_perm], bm[qv_perm]

    # output projections: permute input channels to [head0 dims | head1 dims]
    wfo = np.array(p["feat_out_w"]).T[:, inner_perm]          # (OUT_DIM, INNER)
    wmo = np.array(p["map_out_w"]).T[:, inner_perm]           # (MAP_DIM, INNER)

    wsc = np.array(p["sc_w"]).T                               # (OUT_DIM, FEAT_DIM)
    wff1 = np.array(p["ff_w1"]).T                             # (EXP*OUT, OUT)
    wff2 = np.array(p["ff_w2"]).T                             # (OUT, EXP*OUT)

    slab = np.zeros((SLAB_ROWS, SLAB_COLS), np.float32)
    slab[R_WQVF:R_WQVF + 2 * INNER, :FEAT_DIM] = wf
    slab[R_WQVM:R_WQVM + 2 * INNER, :MAP_DIM] = wm
    slab[R_BQVF:R_BQVF + 2 * INNER, 0:1] = bf
    slab[R_BQVM:R_BQVM + 2 * INNER, 0:1] = bm
    slab[R_WFO:R_WFO + OUT_DIM, :INNER] = wfo
    slab[R_WMO:R_WMO + MAP_DIM, :INNER] = wmo
    slab[R_WSC:R_WSC + OUT_DIM, :FEAT_DIM] = wsc
    slab[R_WFF1:R_WFF1 + OUT_DIM * EXPANSION, :OUT_DIM] = wff1
    slab[R_WFF2:R_WFF2 + OUT_DIM, :OUT_DIM * EXPANSION] = wff2
    slab[R_SC_S:R_SC_S + FEAT_DIM, 0] = np.array(p["sc_bn_scale"])
    slab[R_SC_B:R_SC_B + FEAT_DIM, 0] = np.array(p["sc_bn_shift"])
    slab[R_FF1S:R_FF1S + OUT_DIM, 0] = np.array(p["ff_bn1_scale"])
    slab[R_FF1B:R_FF1B + OUT_DIM, 0] = np.array(p["ff_bn1_shift"])
    slab[R_FF2S:R_FF2S + OUT_DIM * EXPANSION, 0] = np.array(p["ff_bn2_scale"])
    slab[R_FF2B:R_FF2B + OUT_DIM * EXPANSION, 0] = np.array(p["ff_bn2_shift"])
    return jnp.asarray(slab)


# --------------------------- pure-JAX reference ------------------------------
def _lerp_axis(x, axis, out_size):
    in_size = x.shape[axis]
    if in_size == out_size:
        return x
    if out_size == 1:
        return jnp.take(x, jnp.array([0]), axis=axis)
    pos = jnp.arange(out_size, dtype=jnp.float32) * (in_size - 1) / (out_size - 1)
    i0 = jnp.clip(jnp.floor(pos).astype(jnp.int32), 0, in_size - 1)
    i1 = jnp.clip(i0 + 1, 0, in_size - 1)
    frac = pos - i0.astype(jnp.float32)
    x0 = jnp.take(x, i0, axis=axis)
    x1 = jnp.take(x, i1, axis=axis)
    shape = [1] * x.ndim
    shape[axis] = out_size
    frac = frac.reshape(shape)
    return x0 * (1.0 - frac) + x1 * frac


def trilinear_resize_align_corners(x, size):
    """F.interpolate(x, size, mode='trilinear', align_corners=True) on NCDHW."""
    for ax, s in zip((2, 3, 4), size):
        x = _lerp_axis(x, ax, s)
    return x


def up_block_reference(p, x1, x2, map1):
    """Straight-line jnp re-implementation of the (assumed) module math."""
    B = x1.shape[0]
    D, H, W = x2.shape[-3:]
    md, mh, mw = map1.shape[-3:]

    def bn(x, s, b):
        return x * s[None, :, None, None, None] + b[None, :, None, None, None]

    def conv1x1(x, w):                       # w: token-major (Cin, Cout)
        b_, c, d, h, w_ = x.shape
        y = jnp.einsum('io,bin->bon', w, x.reshape(b_, c, -1))
        return y.reshape(b_, w.shape[1], d, h, w_)

    x1u = trilinear_resize_align_corners(x1, (D, H, W))
    feat = jnp.concatenate([x1u, x2], axis=1)
    smap = map1

    feat_n = bn(feat, p["bn1_scale"], p["bn1_shift"])
    map_n = bn(smap, p["bn2_scale"], p["bn2_shift"])

    fq, fv = jnp.split(conv1x1(feat_n, p["feat_qv_w"]), 2, axis=1)
    mq, mv = jnp.split(conv1x1(map_n, p["map_qv_w"]), 2, axis=1)

    def rearr1(x):
        b_, l, d, h, w_ = x.shape
        x = x.reshape(b_, l // HEADS, HEADS, d * h * w_)
        return jnp.transpose(x, (0, 2, 3, 1))        # (b, heads, N, dh)

    fq, fv, mq, mv = map(rearr1, (fq, fv, mq, mv))
    attn = jnp.einsum('bhid,bhjd->bhij', fq, mq) * (DIM_HEAD ** -0.5)
    fm_attn = jax.nn.softmax(attn, axis=-1)
    mf_attn = jax.nn.softmax(attn, axis=-2)
    feat_out = jnp.einsum('bhij,bhjd->bhid', fm_attn, mv)    # (b,h,Nf,dh)
    map_out = jnp.einsum('bhji,bhjd->bhid', mf_attn, fv)     # (b,h,Nm,dh)

    def rearr2(x, d, h, w_):
        b_, hd, n, dh = x.shape
        x = jnp.transpose(x, (0, 3, 1, 2))
        return x.reshape(b_, hd * dh, d, h, w_)

    feat_out = conv1x1(rearr2(feat_out, D, H, W), p["feat_out_w"])
    map_out = conv1x1(rearr2(map_out, md, mh, mw), p["map_out_w"])

    gelu = lambda x: jax.nn.gelu(x, approximate=False)
    sc = conv1x1(gelu(bn(feat, p["sc_bn_scale"], p["sc_bn_shift"])), p["sc_w"])
    out = feat_out + sc
    h1 = conv1x1(gelu(bn(out, p["ff_bn1_scale"], p["ff_bn1_shift"])), p["ff_w1"])
    h2 = conv1x1(gelu(bn(h1, p["ff_bn2_scale"], p["ff_bn2_shift"])), p["ff_w2"])
    return out + h2, map_out + smap


# --------------------------- main --------------------------------------------
if __name__ == "__main__":
    key = jax.random.PRNGKey(0)
    kroot, k1, k2, k3 = jax.random.split(key, 4)
    params = init_params(kroot)
    wslab = prepare_kernel_params(params)

    B = 2
    x1 = jax.random.normal(k1, (B, IN_CH, 4, 4, 4), jnp.float32)    # coarse feature
    x2 = jax.random.normal(k2, (B, OUT_CH, 8, 8, 8), jnp.float32)   # skip feature
    map1 = jax.random.normal(k3, (B, MAP_DIM, *MAP_SIZE), jnp.float32)

    fwd = jax.jit(up_block_forward)
    out, smap = fwd(wslab, x1, x2, map1)
    out = jax.block_until_ready(out)
    smap = jax.block_until_ready(smap)

    assert out.shape == (B, OUT_DIM, 8, 8, 8), out.shape
    assert smap.shape == (B, MAP_DIM, *MAP_SIZE), smap.shape
    assert bool(jnp.all(jnp.isfinite(out))) and bool(jnp.all(jnp.isfinite(smap)))

    # correctness vs. pure-JAX reference of the same (assumed) module math
    ref_out, ref_smap = jax.jit(up_block_reference)(params, x1, x2, map1)
    err_out = float(jnp.max(jnp.abs(out - ref_out)))
    err_map = float(jnp.max(jnp.abs(smap - ref_smap)))
    assert err_out < 3e-2 and err_map < 3e-2, (err_out, err_map)

    print("KERNEL_OK")
</pallas_src>

<mosaic_0001>
module attributes {stable_mosaic.version = 11 : i64} {
  func.func @_fused_block_kernel(%arg0: i32, %arg1: memref<1x8x64xf32, #tpu.memory_space<vmem>>, %arg2: memref<1x8x512xf32, #tpu.memory_space<vmem>>, %arg3: memref<1x8x64xf32, #tpu.memory_space<vmem>>, %arg4: memref<64x512xf32, #tpu.memory_space<vmem>>, %arg5: memref<384x128xf32, #tpu.memory_space<vmem>>, %arg6: memref<1x8x512xf32, #tpu.memory_space<vmem>>, %arg7: memref<1x8x64xf32, #tpu.memory_space<vmem>>) attributes {dimension_semantics = [#tpu.dimension_semantics<parallel>], iteration_bounds = array<i64: 2>, scalar_prefetch = 0 : i64, scratch_operands = 0 : i64, tpu.core_type = #tpu.core_type<tc>, window_params = [{transform_indices = @transform_0, window_bounds = array<i64: 1, 8, 64>}, {transform_indices = @transform_1, window_bounds = array<i64: 1, 8, 512>}, {transform_indices = @transform_2, window_bounds = array<i64: 1, 8, 64>}, {pipeline_mode = #tpu.pipeline_mode<synchronous>, transform_indices = @transform_3, window_bounds = array<i64: 64, 512>}, {pipeline_mode = #tpu.pipeline_mode<synchronous>, transform_indices = @transform_4, window_bounds = array<i64: 384, 128>}, {transform_indices = @transform_5, window_bounds = array<i64: 1, 8, 512>}, {transform_indices = @transform_6, window_bounds = array<i64: 1, 8, 64>}]} {
    %c0 = arith.constant 0 : index
    %c0_0 = arith.constant 0 : index
    %c0_1 = arith.constant 0 : index
    %0 = vector.load %arg1[%c0, %c0_0, %c0_1] : memref<1x8x64xf32, #tpu.memory_space<vmem>>, vector<1x8x64xf32>
    %1 = vector.shape_cast %0 : vector<1x8x64xf32> to vector<8x64xf32>
    %c0_2 = arith.constant 0 : index
    %c0_3 = arith.constant 0 : index
    %c0_4 = arith.constant 0 : index
    %2 = vector.load %arg2[%c0_2, %c0_3, %c0_4] : memref<1x8x512xf32, #tpu.memory_space<vmem>>, vector<1x8x512xf32>
    %3 = vector.shape_cast %2 : vector<1x8x512xf32> to vector<8x512xf32>
    %c0_5 = arith.constant 0 : index
    %c0_6 = arith.constant 0 : index
    %c0_7 = arith.constant 0 : index
    %4 = vector.load %arg3[%c0_5, %c0_6, %c0_7] : memref<1x8x64xf32, #tpu.memory_space<vmem>>, vector<1x8x64xf32>
    %5 = vector.shape_cast %4 : vector<1x8x64xf32> to vector<8x64xf32>
    %c0_8 = arith.constant 0 : index
    %c0_9 = arith.constant 0 : index
    %6 = vector.load %arg4[%c0_8, %c0_9] : memref<64x512xf32, #tpu.memory_space<vmem>>, vector<64x512xf32>
    %cst = arith.constant dense<0.000000e+00> : vector<8x512xf32>
    %7 = tpu.matmul %1, %6, %cst {dimension_numbers = #tpu.dot_dimension_numbers<[1], [0], [0], [1], [0, 0, 1, 1], [], []>} : vector<8x64xf32>, vector<64x512xf32>, vector<8x512xf32> -> vector<8x512xf32>
    %c0_10 = arith.constant 0 : index
    %c0_11 = arith.constant 0 : index
    %8 = vector.load %arg5[%c0_10, %c0_11] : memref<384x128xf32, #tpu.memory_space<vmem>>, vector<64x16xf32>
    %c128 = arith.constant 128 : index
    %c0_12 = arith.constant 0 : index
    %9 = vector.load %arg5[%c128, %c0_12] : memref<384x128xf32, #tpu.memory_space<vmem>>, vector<64x1xf32>
    %10 = vector.extract_strided_slice %8 {offsets = [0, 0], sizes = [64, 8], strides = [1, 1]} : vector<64x16xf32> to vector<64x8xf32>
    %cst_13 = arith.constant dense<0.000000e+00> : vector<64x512xf32>
    %11 = tpu.matmul %10, %7, %cst_13 {dimension_numbers = #tpu.dot_dimension_numbers<[1], [0], [0], [1], [0, 0, 1, 1], [], []>} : vector<64x8xf32>, vector<8x512xf32>, vector<64x512xf32> -> vector<64x512xf32>
    %12 = vector.extract_strided_slice %8 {offsets = [0, 8], sizes = [64, 8], strides = [1, 1]} : vector<64x16xf32> to vector<64x8xf32>
    %cst_14 = arith.constant dense<0.000000e+00> : vector<64x512xf32>
    %13 = tpu.matmul %12, %3, %cst_14 {dimension_numbers = #tpu.dot_dimension_numbers<[1], [0], [0], [1], [0, 0, 1, 1], [], []>} : vector<64x8xf32>, vector<8x512xf32>, vector<64x512xf32> -> vector<64x512xf32>
    %14 = arith.addf %11, %13 : vector<64x512xf32>
    %15 = vector.broadcast %9 : vector<64x1xf32> to vector<64x512xf32>
    %16 = arith.addf %14, %15 : vector<64x512xf32>
    %c64 = arith.constant 64 : index
    %c0_15 = arith.constant 0 : index
    %17 = vector.load %arg5[%c64, %c0_15] : memref<384x128xf32, #tpu.memory_space<vmem>>, vector<64x8xf32>
    %c192 = arith.constant 192 : index
    %c0_16 = arith.constant 0 : index
    %18 = vector.load %arg5[%c192, %c0_16] : memref<384x128xf32, #tpu.memory_space<vmem>>, vector<64x1xf32>
    %cst_17 = arith.constant dense<0.000000e+00> : vector<64x64xf32>
    %19 = tpu.matmul %17, %5, %cst_17 {dimension_numbers = #tpu.dot_dimension_numbers<[1], [0], [0], [1], [0, 0, 1, 1], [], []>} : vector<64x8xf32>, vector<8x64xf32>, vector<64x64xf32> -> vector<64x64xf32>
    %20 = vector.broadcast %18 : vector<64x1xf32> to vector<64x64xf32>
    %21 = arith.addf %19, %20 : vector<64x64xf32>
    %c256 = arith.constant 256 : index
    %c0_18 = arith.constant 0 : index
    %22 = vector.load %arg5[%c256, %c0_18] : memref<384x128xf32, #tpu.memory_space<vmem>>, vector<8x32xf32>
    %c264 = arith.constant 264 : index
    %c0_19 = arith.constant 0 : index
    %23 = vector.load %arg5[%c264, %c0_19] : memref<384x128xf32, #tpu.memory_space<vmem>>, vector<8x32xf32>
    %24 = vector.extract_strided_slice %16 {offsets = [0, 0], sizes = [16, 512], strides = [1, 1]} : vector<64x512xf32> to vector<16x512xf32>
    %25 = vector.extract_strided_slice %16 {offsets = [32, 0], sizes = [16, 512], strides = [1, 1]} : vector<64x512xf32> to vector<16x512xf32>
    %26 = vector.extract_strided_slice %21 {offsets = [0, 0], sizes = [16, 64], strides = [1, 1]} : vector<64x64xf32> to vector<16x64xf32>
    %27 = vector.extract_strided_slice %21 {offsets = [32, 0], sizes = [16, 64], strides = [1, 1]} : vector<64x64xf32> to vector<16x64xf32>
    %cst_20 = arith.constant dense<0.000000e+00> : vector<64x512xf32>
    %28 = tpu.matmul %26, %24, %cst_20 {dimension_numbers = #tpu.dot_dimension_numbers<[0], [0], [1], [1], [0, 1, 1, 1], [], []>} : vector<16x64xf32>, vector<16x512xf32>, vector<64x512xf32> -> vector<64x512xf32>
    %cst_21 = arith.constant dense<0xFF800000> : vector<512xf32>
    %29 = vector.multi_reduction <maximumf>, %28, %cst_21 [0] : vector<64x512xf32> to vector<512xf32>
    %30 = vector.shape_cast %29 : vector<512xf32> to vector<1x512xf32>
    %31 = vector.broadcast %30 : vector<1x512xf32> to vector<64x512xf32>
    %32 = arith.subf %28, %31 : vector<64x512xf32>
    %33 = math.exp %32 : vector<64x512xf32>
    %cst_22 = arith.constant dense<0.000000e+00> : vector<512xf32>
    %34 = vector.multi_reduction <add>, %33, %cst_22 [0] : vector<64x512xf32> to vector<512xf32>
    %35 = vector.shape_cast %34 : vector<512xf32> to vector<1x512xf32>
    %36 = vector.broadcast %35 : vector<1x512xf32> to vector<64x512xf32>
    %37 = arith.divf %33, %36 : vector<64x512xf32>
    %cst_23 = arith.constant dense<0.000000e+00> : vector<16x512xf32>
    %38 = tpu.matmul %27, %37, %cst_23 {dimension_numbers = #tpu.dot_dimension_numbers<[1], [0], [0], [1], [0, 0, 1, 1], [], []>} : vector<16x64xf32>, vector<64x512xf32>, vector<16x512xf32> -> vector<16x512xf32>
    %39 = vector.extract_strided_slice %22 {offsets = [0, 0], sizes = [8, 16], strides = [1, 1]} : vector<8x32xf32> to vector<8x16xf32>
    %cst_24 = arith.constant dense<0.000000e+00> : vector<8x512xf32>
    %40 = tpu.matmul %39, %38, %cst_24 {dimension_numbers = #tpu.dot_dimension_numbers<[1], [0], [0], [1], [0, 0, 1, 1], [], []>} : vector<8x16xf32>, vector<16x512xf32>, vector<8x512xf32> -> vector<8x512xf32>
    %cst_25 = arith.constant dense<0xFF800000> : vector<64xf32>
    %41 = vector.multi_reduction <maximumf>, %28, %cst_25 [1] : vector<64x512xf32> to vector<64xf32>
    %42 = vector.shape_cast %41 : vector<64xf32> to vector<64x1xf32>
    %43 = vector.broadcast %42 : vector<64x1xf32> to vector<64x512xf32>
    %44 = arith.subf %28, %43 : vector<64x512xf32>
    %45 = math.exp %44 : vector<64x512xf32>
    %cst_26 = arith.constant dense<0.000000e+00> : vector<64xf32>
    %46 = vector.multi_reduction <add>, %45, %cst_26 [1] : vector<64x512xf32> to vector<64xf32>
    %47 = vector.shape_cast %46 : vector<64xf32> to vector<64x1xf32>
    %48 = vector.broadcast %47 : vector<64x1xf32> to vector<64x512xf32>
    %49 = arith.divf %45, %48 : vector<64x512xf32>
    %cst_27 = arith.constant dense<0.000000e+00> : vector<16x64xf32>
    %50 = tpu.matmul %25, %49, %cst_27 {dimension_numbers = #tpu.dot_dimension_numbers<[1], [1], [0], [0], [0, 0, 1, 0], [], []>} : vector<16x512xf32>, vector<64x512xf32>, vector<16x64xf32> -> vector<16x64xf32>
    %51 = vector.extract_strided_slice %23 {offsets = [0, 0], sizes = [8, 16], strides = [1, 1]} : vector<8x32xf32> to vector<8x16xf32>
    %cst_28 = arith.constant dense<0.000000e+00> : vector<8x64xf32>
    %52 = tpu.matmul %51, %50, %cst_28 {dimension_numbers = #tpu.dot_dimension_numbers<[1], [0], [0], [1], [0, 0, 1, 1], [], []>} : vector<8x16xf32>, vector<16x64xf32>, vector<8x64xf32> -> vector<8x64xf32>
    %53 = vector.extract_strided_slice %16 {offsets = [16, 0], sizes = [16, 512], strides = [1, 1]} : vector<64x512xf32> to vector<16x512xf32>
    %54 = vector.extract_strided_slice %16 {offsets = [48, 0], sizes = [16, 512], strides = [1, 1]} : vector<64x512xf32> to vector<16x512xf32>
    %55 = vector.extract_strided_slice %21 {offsets = [16, 0], sizes = [16, 64], strides = [1, 1]} : vector<64x64xf32> to vector<16x64xf32>
    %56 = vector.extract_strided_slice %21 {offsets = [48, 0], sizes = [16, 64], strides = [1, 1]} : vector<64x64xf32> to vector<16x64xf32>
    %cst_29 = arith.constant dense<0.000000e+00> : vector<64x512xf32>
    %57 = tpu.matmul %55, %53, %cst_29 {dimension_numbers = #tpu.dot_dimension_numbers<[0], [0], [1], [1], [0, 1, 1, 1], [], []>} : vector<16x64xf32>, vector<16x512xf32>, vector<64x512xf32> -> vector<64x512xf32>
    %cst_30 = arith.constant dense<0xFF800000> : vector<512xf32>
    %58 = vector.multi_reduction <maximumf>, %57, %cst_30 [0] : vector<64x512xf32> to vector<512xf32>
    %59 = vector.shape_cast %58 : vector<512xf32> to vector<1x512xf32>
    %60 = vector.broadcast %59 : vector<1x512xf32> to vector<64x512xf32>
    %61 = arith.subf %57, %60 : vector<64x512xf32>
    %62 = math.exp %61 : vector<64x512xf32>
    %cst_31 = arith.constant dense<0.000000e+00> : vector<512xf32>
    %63 = vector.multi_reduction <add>, %62, %cst_31 [0] : vector<64x512xf32> to vector<512xf32>
    %64 = vector.shape_cast %63 : vector<512xf32> to vector<1x512xf32>
    %65 = vector.broadcast %64 : vector<1x512xf32> to vector<64x512xf32>
    %66 = arith.divf %62, %65 : vector<64x512xf32>
    %cst_32 = arith.constant dense<0.000000e+00> : vector<16x512xf32>
    %67 = tpu.matmul %56, %66, %cst_32 {dimension_numbers = #tpu.dot_dimension_numbers<[1], [0], [0], [1], [0, 0, 1, 1], [], []>} : vector<16x64xf32>, vector<64x512xf32>, vector<16x512xf32> -> vector<16x512xf32>
    %68 = vector.extract_strided_slice %22 {offsets = [0, 16], sizes = [8, 16], strides = [1, 1]} : vector<8x32xf32> to vector<8x16xf32>
    %cst_33 = arith.constant dense<0.000000e+00> : vector<8x512xf32>
    %69 = tpu.matmul %68, %67, %cst_33 {dimension_numbers = #tpu.dot_dimension_numbers<[1], [0], [0], [1], [0, 0, 1, 1], [], []>} : vector<8x16xf32>, vector<16x512xf32>, vector<8x512xf32> -> vector<8x512xf32>
    %70 = arith.addf %40, %69 : vector<8x512xf32>
    %cst_34 = arith.constant dense<0xFF800000> : vector<64xf32>
    %71 = vector.multi_reduction <maximumf>, %57, %cst_34 [1] : vector<64x512xf32> to vector<64xf32>
    %72 = vector.shape_cast %71 : vector<64xf32> to vector<64x1xf32>
    %73 = vector.broadcast %72 : vector<64x1xf32> to vector<64x512xf32>
    %74 = arith.subf %57, %73 : vector<64x512xf32>
    %75 = math.exp %74 : vector<64x512xf32>
    %cst_35 = arith.constant dense<0.000000e+00> : vector<64xf32>
    %76 = vector.multi_reduction <add>, %75, %cst_35 [1] : vector<64x512xf32> to vector<64xf32>
    %77 = vector.shape_cast %76 : vector<64xf32> to vector<64x1xf32>
    %78 = vector.broadcast %77 : vector<64x1xf32> to vector<64x512xf32>
    %79 = arith.divf %75, %78 : vector<64x512xf32>
    %cst_36 = arith.constant dense<0.000000e+00> : vector<16x64xf32>
    %80 = tpu.matmul %54, %79, %cst_36 {dimension_numbers = #tpu.dot_dimension_numbers<[1], [1], [0], [0], [0, 0, 1, 0], [], []>} : vector<16x512xf32>, vector<64x512xf32>, vector<16x64xf32> -> vector<16x64xf32>
    %81 = vector.extract_strided_slice %23 {offsets = [0, 16], sizes = [8, 16], strides = [1, 1]} : vector<8x32xf32> to vector<8x16xf32>
    %cst_37 = arith.constant dense<0.000000e+00> : vector<8x64xf32>
    %82 = tpu.matmul %81, %80, %cst_37 {dimension_numbers = #tpu.dot_dimension_numbers<[1], [0], [0], [1], [0, 0, 1, 1], [], []>} : vector<8x16xf32>, vector<16x64xf32>, vector<8x64xf32> -> vector<8x64xf32>
    %83 = arith.addf %52, %82 : vector<8x64xf32>
    %c304 = arith.constant 304 : index
    %c0_38 = arith.constant 0 : index
    %84 = vector.load %arg5[%c304, %c0_38] : memref<384x128xf32, #tpu.memory_space<vmem>>, vector<16x1xf32>
    %c320 = arith.constant 320 : index
    %c0_39 = arith.constant 0 : index
    %85 = vector.load %arg5[%c320, %c0_39] : memref<384x128xf32, #tpu.memory_space<vmem>>, vector<16x1xf32>
    %c272 = arith.constant 272 : index
    %c0_40 = arith.constant 0 : index
    %86 = vector.load %arg5[%c272, %c0_40] : memref<384x128xf32, #tpu.memory_space<vmem>>, vector<8x16xf32>
    %87 = vector.extract_strided_slice %86 {offsets = [0, 0], sizes = [8, 8], strides = [1, 1]} : vector<8x16xf32> to vector<8x8xf32>
    %88 = vector.extract_strided_slice %84 {offsets = [0, 0], sizes = [8, 1], strides = [1, 1]} : vector<16x1xf32> to vector<8x1xf32>
    %89 = vector.broadcast %88 : vector<8x1xf32> to vector<8x512xf32>
    %90 = arith.mulf %7, %89 : vector<8x512xf32>
    %91 = vector.extract_strided_slice %85 {offsets = [0, 0], sizes = [8, 1], strides = [1, 1]} : vector<16x1xf32> to vector<8x1xf32>
    %92 = vector.broadcast %91 : vector<8x1xf32> to vector<8x512xf32>
    %93 = arith.addf %90, %92 : vector<8x512xf32>
    %cst_41 = arith.constant 0.707106769 : f32
    %94 = vector.broadcast %cst_41 : f32 to vector<8x512xf32>
    %95 = arith.mulf %93, %94 : vector<8x512xf32>
    %96 = math.absf %95 : vector<8x512xf32>
    %cst_42 = arith.constant 0.327591091 : f32
    %97 = vector.broadcast %cst_42 : f32 to vector<8x512xf32>
    %98 = arith.mulf %97, %96 : vector<8x512xf32>
    %cst_43 = arith.constant 1.000000e+00 : f32
    %99 = vector.broadcast %cst_43 : f32 to vector<8x512xf32>
    %100 = arith.addf %99, %98 : vector<8x512xf32>
    %cst_44 = arith.constant 1.000000e+00 : f32
    %101 = vector.broadcast %cst_44 : f32 to vector<8x512xf32>
    %102 = arith.divf %101, %100 : vector<8x512xf32>
    %cst_45 = arith.constant 1.06140542 : f32
    %103 = vector.broadcast %cst_45 : f32 to vector<8x512xf32>
    %104 = arith.mulf %102, %103 : vector<8x512xf32>
    %cst_46 = arith.constant -1.45315206 : f32
    %105 = vector.broadcast %cst_46 : f32 to vector<8x512xf32>
    %106 = arith.addf %105, %104 : vector<8x512xf32>
    %107 = arith.mulf %102, %106 : vector<8x512xf32>
    %cst_47 = arith.constant 1.42141378 : f32
    %108 = vector.broadcast %cst_47 : f32 to vector<8x512xf32>
    %109 = arith.addf %108, %107 : vector<8x512xf32>
    %110 = arith.mulf %102, %109 : vector<8x512xf32>
    %cst_48 = arith.constant -0.284496725 : f32
    %111 = vector.broadcast %cst_48 : f32 to vector<8x512xf32>
    %112 = arith.addf %111, %110 : vector<8x512xf32>
    %113 = arith.mulf %102, %112 : vector<8x512xf32>
    %cst_49 = arith.constant 0.254829586 : f32
    %114 = vector.broadcast %cst_49 : f32 to vector<8x512xf32>
    %115 = arith.addf %114, %113 : vector<8x512xf32>
    %116 = arith.mulf %102, %115 : vector<8x512xf32>
    %117 = arith.mulf %96, %96 : vector<8x512xf32>
    %cst_50 = arith.constant 0.000000e+00 : f32
    %118 = vector.broadcast %cst_50 : f32 to vector<8x512xf32>
    %119 = arith.subf %118, %117 : vector<8x512xf32>
    %120 = math.exp %119 : vector<8x512xf32>
    %121 = arith.mulf %116, %120 : vector<8x512xf32>
    %cst_51 = arith.constant 1.000000e+00 : f32
    %122 = vector.broadcast %cst_51 : f32 to vector<8x512xf32>
    %123 = arith.subf %122, %121 : vector<8x512xf32>
    %cst_52 = arith.constant 0.000000e+00 : f32
    %124 = vector.broadcast %cst_52 : f32 to vector<8x512xf32>
    %125 = arith.cmpf oge, %95, %124 : vector<8x512xf32>
    %cst_53 = arith.constant 0.000000e+00 : f32
    %126 = vector.broadcast %cst_53 : f32 to vector<8x512xf32>
    %127 = arith.subf %126, %123 : vector<8x512xf32>
    %128 = arith.select %125, %123, %127 : vector<8x512xi1>, vector<8x512xf32>
    %cst_54 = arith.constant 5.000000e-01 : f32
    %129 = vector.broadcast %cst_54 : f32 to vector<8x512xf32>
    %130 = arith.mulf %129, %93 : vector<8x512xf32>
    %cst_55 = arith.constant 1.000000e+00 : f32
    %131 = vector.broadcast %cst_55 : f32 to vector<8x512xf32>
    %132 = arith.addf %131, %128 : vector<8x512xf32>
    %133 = arith.mulf %130, %132 : vector<8x512xf32>
    %cst_56 = arith.constant dense<0.000000e+00> : vector<8x512xf32>
    %134 = tpu.matmul %87, %133, %cst_56 {dimension_numbers = #tpu.dot_dimension_numbers<[1], [0], [0], [1], [0, 0, 1, 1], [], []>} : vector<8x8xf32>, vector<8x512xf32>, vector<8x512xf32> -> vector<8x512xf32>
    %135 = vector.extract_strided_slice %86 {offsets = [0, 8], sizes = [8, 8], strides = [1, 1]} : vector<8x16xf32> to vector<8x8xf32>
    %136 = vector.extract_strided_slice %84 {offsets = [8, 0], sizes = [8, 1], strides = [1, 1]} : vector<16x1xf32> to vector<8x1xf32>
    %137 = vector.broadcast %136 : vector<8x1xf32> to vector<8x512xf32>
    %138 = arith.mulf %3, %137 : vector<8x512xf32>
    %139 = vector.extract_strided_slice %85 {offsets = [8, 0], sizes = [8, 1], strides = [1, 1]} : vector<16x1xf32> to vector<8x1xf32>
    %140 = vector.broadcast %139 : vector<8x1xf32> to vector<8x512xf32>
    %141 = arith.addf %138, %140 : vector<8x512xf32>
    %cst_57 = arith.constant 0.707106769 : f32
    %142 = vector.broadcast %cst_57 : f32 to vector<8x512xf32>
    %143 = arith.mulf %141, %142 : vector<8x512xf32>
    %144 = math.absf %143 : vector<8x512xf32>
    %cst_58 = arith.constant 0.327591091 : f32
    %145 = vector.broadcast %cst_58 : f32 to vector<8x512xf32>
    %146 = arith.mulf %145, %144 : vector<8x512xf32>
    %cst_59 = arith.constant 1.000000e+00 : f32
    %147 = vector.broadcast %cst_59 : f32 to vector<8x512xf32>
    %148 = arith.addf %147, %146 : vector<8x512xf32>
    %cst_60 = arith.constant 1.000000e+00 : f32
    %149 = vector.broadcast %cst_60 : f32 to vector<8x512xf32>
    %150 = arith.divf %149, %148 : vector<8x512xf32>
    %cst_61 = arith.constant 1.06140542 : f32
    %151 = vector.broadcast %cst_61 : f32 to vector<8x512xf32>
    %152 = arith.mulf %150, %151 : vector<8x512xf32>
    %cst_62 = arith.constant -1.45315206 : f32
    %153 = vector.broadcast %cst_62 : f32 to vector<8x512xf32>
    %154 = arith.addf %153, %152 : vector<8x512xf32>
    %155 = arith.mulf %150, %154 : vector<8x512xf32>
    %cst_63 = arith.constant 1.42141378 : f32
    %156 = vector.broadcast %cst_63 : f32 to vector<8x512xf32>
    %157 = arith.addf %156, %155 : vector<8x512xf32>
    %158 = arith.mulf %150, %157 : vector<8x512xf32>
    %cst_64 = arith.constant -0.284496725 : f32
    %159 = vector.broadcast %cst_64 : f32 to vector<8x512xf32>
    %160 = arith.addf %159, %158 : vector<8x512xf32>
    %161 = arith.mulf %150, %160 : vector<8x512xf32>
    %cst_65 = arith.constant 0.254829586 : f32
    %162 = vector.broadcast %cst_65 : f32 to vector<8x512xf32>
    %163 = arith.addf %162, %161 : vector<8x512xf32>
    %164 = arith.mulf %150, %163 : vector<8x512xf32>
    %165 = arith.mulf %144, %144 : vector<8x512xf32>
    %cst_66 = arith.constant 0.000000e+00 : f32
    %166 = vector.broadcast %cst_66 : f32 to vector<8x512xf32>
    %167 = arith.subf %166, %165 : vector<8x512xf32>
    %168 = math.exp %167 : vector<8x512xf32>
    %169 = arith.mulf %164, %168 : vector<8x512xf32>
    %cst_67 = arith.constant 1.000000e+00 : f32
    %170 = vector.broadcast %cst_67 : f32 to vector<8x512xf32>
    %171 = arith.subf %170, %169 : vector<8x512xf32>
    %cst_68 = arith.constant 0.000000e+00 : f32
    %172 = vector.broadcast %cst_68 : f32 to vector<8x512xf32>
    %173 = arith.cmpf oge, %143, %172 : vector<8x512xf32>
    %cst_69 = arith.constant 0.000000e+00 : f32
    %174 = vector.broadcast %cst_69 : f32 to vector<8x512xf32>
    %175 = arith.subf %174, %171 : vector<8x512xf32>
    %176 = arith.select %173, %171, %175 : vector<8x512xi1>, vector<8x512xf32>
    %cst_70 = arith.constant 5.000000e-01 : f32
    %177 = vector.broadcast %cst_70 : f32 to vector<8x512xf32>
    %178 = arith.mulf %177, %141 : vector<8x512xf32>
    %cst_71 = arith.constant 1.000000e+00 : f32
    %179 = vector.broadcast %cst_71 : f32 to vector<8x512xf32>
    %180 = arith.addf %179, %176 : vector<8x512xf32>
    %181 = arith.mulf %178, %180 : vector<8x512xf32>
    %cst_72 = arith.constant dense<0.000000e+00> : vector<8x512xf32>
    %182 = tpu.matmul %135, %181, %cst_72 {dimension_numbers = #tpu.dot_dimension_numbers<[1], [0], [0], [1], [0, 0, 1, 1], [], []>} : vector<8x8xf32>, vector<8x512xf32>, vector<8x512xf32> -> vector<8x512xf32>
    %183 = arith.addf %134, %182 : vector<8x512xf32>
    %184 = arith.addf %70, %183 : vector<8x512xf32>
    %c336 = arith.constant 336 : index
    %c0_73 = arith.constant 0 : index
    %185 = vector.load %arg5[%c336, %c0_73] : memref<384x128xf32, #tpu.memory_space<vmem>>, vector<8x1xf32>
    %c344 = arith.constant 344 : index
    %c0_74 = arith.constant 0 : index
    %186 = vector.load %arg5[%c344, %c0_74] : memref<384x128xf32, #tpu.memory_space<vmem>>, vector<8x1xf32>
    %c280 = arith.constant 280 : index
    %c0_75 = arith.constant 0 : index
    %187 = vector.load %arg5[%c280, %c0_75] : memref<384x128xf32, #tpu.memory_space<vmem>>, vector<16x8xf32>
    %188 = vector.broadcast %185 : vector<8x1xf32> to vector<8x512xf32>
    %189 = arith.mulf %184, %188 : vector<8x512xf32>
    %190 = vector.broadcast %186 : vector<8x1xf32> to vector<8x512xf32>
    %191 = arith.addf %189, %190 : vector<8x512xf32>
    %cst_76 = arith.constant 0.707106769 : f32
    %192 = vector.broadcast %cst_76 : f32 to vector<8x512xf32>
    %193 = arith.mulf %191, %192 : vector<8x512xf32>
    %194 = math.absf %193 : vector<8x512xf32>
    %cst_77 = arith.constant 0.327591091 : f32
    %195 = vector.broadcast %cst_77 : f32 to vector<8x512xf32>
    %196 = arith.mulf %195, %194 : vector<8x512xf32>
    %cst_78 = arith.constant 1.000000e+00 : f32
    %197 = vector.broadcast %cst_78 : f32 to vector<8x512xf32>
    %198 = arith.addf %197, %196 : vector<8x512xf32>
    %cst_79 = arith.constant 1.000000e+00 : f32
    %199 = vector.broadcast %cst_79 : f32 to vector<8x512xf32>
    %200 = arith.divf %199, %198 : vector<8x512xf32>
    %cst_80 = arith.constant 1.06140542 : f32
    %201 = vector.broadcast %cst_80 : f32 to vector<8x512xf32>
    %202 = arith.mulf %200, %201 : vector<8x512xf32>
    %cst_81 = arith.constant -1.45315206 : f32
    %203 = vector.broadcast %cst_81 : f32 to vector<8x512xf32>
    %204 = arith.addf %203, %202 : vector<8x512xf32>
    %205 = arith.mulf %200, %204 : vector<8x512xf32>
    %cst_82 = arith.constant 1.42141378 : f32
    %206 = vector.broadcast %cst_82 : f32 to vector<8x512xf32>
    %207 = arith.addf %206, %205 : vector<8x512xf32>
    %208 = arith.mulf %200, %207 : vector<8x512xf32>
    %cst_83 = arith.constant -0.284496725 : f32
    %209 = vector.broadcast %cst_83 : f32 to vector<8x512xf32>
    %210 = arith.addf %209, %208 : vector<8x512xf32>
    %211 = arith.mulf %200, %210 : vector<8x512xf32>
    %cst_84 = arith.constant 0.254829586 : f32
    %212 = vector.broadcast %cst_84 : f32 to vector<8x512xf32>
    %213 = arith.addf %212, %211 : vector<8x512xf32>
    %214 = arith.mulf %200, %213 : vector<8x512xf32>
    %215 = arith.mulf %194, %194 : vector<8x512xf32>
    %cst_85 = arith.constant 0.000000e+00 : f32
    %216 = vector.broadcast %cst_85 : f32 to vector<8x512xf32>
    %217 = arith.subf %216, %215 : vector<8x512xf32>
    %218 = math.exp %217 : vector<8x512xf32>
    %219 = arith.mulf %214, %218 : vector<8x512xf32>
    %cst_86 = arith.constant 1.000000e+00 : f32
    %220 = vector.broadcast %cst_86 : f32 to vector<8x512xf32>
    %221 = arith.subf %220, %219 : vector<8x512xf32>
    %cst_87 = arith.constant 0.000000e+00 : f32
    %222 = vector.broadcast %cst_87 : f32 to vector<8x512xf32>
    %223 = arith.cmpf oge, %193, %222 : vector<8x512xf32>
    %cst_88 = arith.constant 0.000000e+00 : f32
    %224 = vector.broadcast %cst_88 : f32 to vector<8x512xf32>
    %225 = arith.subf %224, %221 : vector<8x512xf32>
    %226 = arith.select %223, %221, %225 : vector<8x512xi1>, vector<8x512xf32>
    %cst_89 = arith.constant 5.000000e-01 : f32
    %227 = vector.broadcast %cst_89 : f32 to vector<8x512xf32>
    %228 = arith.mulf %227, %191 : vector<8x512xf32>
    %cst_90 = arith.constant 1.000000e+00 : f32
    %229 = vector.broadcast %cst_90 : f32 to vector<8x512xf32>
    %230 = arith.addf %229, %226 : vector<8x512xf32>
    %231 = arith.mulf %228, %230 : vector<8x512xf32>
    %cst_91 = arith.constant dense<0.000000e+00> : vector<16x512xf32>
    %232 = tpu.matmul %187, %231, %cst_91 {dimension_numbers = #tpu.dot_dimension_numbers<[1], [0], [0], [1], [0, 0, 1, 1], [], []>} : vector<16x8xf32>, vector<8x512xf32>, vector<16x512xf32> -> vector<16x512xf32>
    %c352 = arith.constant 352 : index
    %c0_92 = arith.constant 0 : index
    %233 = vector.load %arg5[%c352, %c0_92] : memref<384x128xf32, #tpu.memory_space<vmem>>, vector<16x1xf32>
    %c368 = arith.constant 368 : index
    %c0_93 = arith.constant 0 : index
    %234 = vector.load %arg5[%c368, %c0_93] : memref<384x128xf32, #tpu.memory_space<vmem>>, vector<16x1xf32>
    %c296 = arith.constant 296 : index
    %c0_94 = arith.constant 0 : index
    %235 = vector.load %arg5[%c296, %c0_94] : memref<384x128xf32, #tpu.memory_space<vmem>>, vector<8x16xf32>
    %236 = vector.broadcast %233 : vector<16x1xf32> to vector<16x512xf32>
    %237 = arith.mulf %232, %236 : vector<16x512xf32>
    %238 = vector.broadcast %234 : vector<16x1xf32> to vector<16x512xf32>
    %239 = arith.addf %237, %238 : vector<16x512xf32>
    %cst_95 = arith.constant 0.707106769 : f32
    %240 = vector.broadcast %cst_95 : f32 to vector<16x512xf32>
    %241 = arith.mulf %239, %240 : vector<16x512xf32>
    %242 = math.absf %241 : vector<16x512xf32>
    %cst_96 = arith.constant 0.327591091 : f32
    %243 = vector.broadcast %cst_96 : f32 to vector<16x512xf32>
    %244 = arith.mulf %243, %242 : vector<16x512xf32>
    %cst_97 = arith.constant 1.000000e+00 : f32
    %245 = vector.broadcast %cst_97 : f32 to vector<16x512xf32>
    %246 = arith.addf %245, %244 : vector<16x512xf32>
    %cst_98 = arith.constant 1.000000e+00 : f32
    %247 = vector.broadcast %cst_98 : f32 to vector<16x512xf32>
    %248 = arith.divf %247, %246 : vector<16x512xf32>
    %cst_99 = arith.constant 1.06140542 : f32
    %249 = vector.broadcast %cst_99 : f32 to vector<16x512xf32>
    %250 = arith.mulf %248, %249 : vector<16x512xf32>
    %cst_100 = arith.constant -1.45315206 : f32
    %251 = vector.broadcast %cst_100 : f32 to vector<16x512xf32>
    %252 = arith.addf %251, %250 : vector<16x512xf32>
    %253 = arith.mulf %248, %252 : vector<16x512xf32>
    %cst_101 = arith.constant 1.42141378 : f32
    %254 = vector.broadcast %cst_101 : f32 to vector<16x512xf32>
    %255 = arith.addf %254, %253 : vector<16x512xf32>
    %256 = arith.mulf %248, %255 : vector<16x512xf32>
    %cst_102 = arith.constant -0.284496725 : f32
    %257 = vector.broadcast %cst_102 : f32 to vector<16x512xf32>
    %258 = arith.addf %257, %256 : vector<16x512xf32>
    %259 = arith.mulf %248, %258 : vector<16x512xf32>
    %cst_103 = arith.constant 0.254829586 : f32
    %260 = vector.broadcast %cst_103 : f32 to vector<16x512xf32>
    %261 = arith.addf %260, %259 : vector<16x512xf32>
    %262 = arith.mulf %248, %261 : vector<16x512xf32>
    %263 = arith.mulf %242, %242 : vector<16x512xf32>
    %cst_104 = arith.constant 0.000000e+00 : f32
    %264 = vector.broadcast %cst_104 : f32 to vector<16x512xf32>
    %265 = arith.subf %264, %263 : vector<16x512xf32>
    %266 = math.exp %265 : vector<16x512xf32>
    %267 = arith.mulf %262, %266 : vector<16x512xf32>
    %cst_105 = arith.constant 1.000000e+00 : f32
    %268 = vector.broadcast %cst_105 : f32 to vector<16x512xf32>
    %269 = arith.subf %268, %267 : vector<16x512xf32>
    %cst_106 = arith.constant 0.000000e+00 : f32
    %270 = vector.broadcast %cst_106 : f32 to vector<16x512xf32>
    %271 = arith.cmpf oge, %241, %270 : vector<16x512xf32>
    %cst_107 = arith.constant 0.000000e+00 : f32
    %272 = vector.broadcast %cst_107 : f32 to vector<16x512xf32>
    %273 = arith.subf %272, %269 : vector<16x512xf32>
    %274 = arith.select %271, %269, %273 : vector<16x512xi1>, vector<16x512xf32>
    %cst_108 = arith.constant 5.000000e-01 : f32
    %275 = vector.broadcast %cst_108 : f32 to vector<16x512xf32>
    %276 = arith.mulf %275, %239 : vector<16x512xf32>
    %cst_109 = arith.constant 1.000000e+00 : f32
    %277 = vector.broadcast %cst_109 : f32 to vector<16x512xf32>
    %278 = arith.addf %277, %274 : vector<16x512xf32>
    %279 = arith.mulf %276, %278 : vector<16x512xf32>
    %cst_110 = arith.constant dense<0.000000e+00> : vector<8x512xf32>
    %280 = tpu.matmul %235, %279, %cst_110 {dimension_numbers = #tpu.dot_dimension_numbers<[1], [0], [0], [1], [0, 0, 1, 1], [], []>} : vector<8x16xf32>, vector<16x512xf32>, vector<8x512xf32> -> vector<8x512xf32>
    %281 = arith.addf %184, %280 : vector<8x512xf32>
    %c0_111 = arith.constant 0 : index
    %c0_112 = arith.constant 0 : index
    %c0_113 = arith.constant 0 : index
    %282 = vector.load %arg6[%c0_111, %c0_112, %c0_113] : memref<1x8x512xf32, #tpu.memory_space<vmem>>, vector<1x8x512xf32>
    %283 = vector.shape_cast %282 : vector<1x8x512xf32> to vector<8x512xf32>
    %284 = vector.shape_cast %281 : vector<8x512xf32> to vector<1x8x512xf32>
    tpu.vector_store %arg6[%c0_111, %c0_112, %c0_113], %284 {strides = array<i32>} : memref<1x8x512xf32, #tpu.memory_space<vmem>>, vector<1x8x512xf32>,
    %285 = arith.addf %5, %83 : vector<8x64xf32>
    %c0_114 = arith.constant 0 : index
    %c0_115 = arith.constant 0 : index
    %c0_116 = arith.constant 0 : index
    %286 = vector.load %arg7[%c0_114, %c0_115, %c0_116] : memref<1x8x64xf32, #tpu.memory_space<vmem>>, vector<1x8x64xf32>
    %287 = vector.shape_cast %286 : vector<1x8x64xf32> to vector<8x64xf32>
    %288 = vector.shape_cast %285 : vector<8x64xf32> to vector<1x8x64xf32>
    tpu.vector_store %arg7[%c0_114, %c0_115, %c0_116], %288 {strides = array<i32>} : memref<1x8x64xf32, #tpu.memory_space<vmem>>, vector<1x8x64xf32>,
    return
  }
  func.func @transform_0(%arg0: i32) -> (i32, i32, i32) {
    %c0_i32 = arith.constant 0 : i32
    %c0_i32_0 = arith.constant 0 : i32
    %c0_i32_1 = arith.constant 0 : i32
    return %arg0, %c0_i32, %c0_i32_0 : i32, i32, i32
  }
  func.func @transform_1(%arg0: i32) -> (i32, i32, i32) {
    %c0_i32 = arith.constant 0 : i32
    %c0_i32_0 = arith.constant 0 : i32
    %c0_i32_1 = arith.constant 0 : i32
    return %arg0, %c0_i32, %c0_i32_0 : i32, i32, i32
  }
  func.func @transform_2(%arg0: i32) -> (i32, i32, i32) {
    %c0_i32 = arith.constant 0 : i32
    %c0_i32_0 = arith.constant 0 : i32
    %c0_i32_1 = arith.constant 0 : i32
    return %arg0, %c0_i32, %c0_i32_0 : i32, i32, i32
  }
  func.func @transform_3(%arg0: i32) -> (i32, i32) {
    %c0_i32 = arith.constant 0 : i32
    %c0_i32_0 = arith.constant 0 : i32
    %c0_i32_1 = arith.constant 0 : i32
    return %c0_i32, %c0_i32_0 : i32, i32
  }
  func.func @transform_4(%arg0: i32) -> (i32, i32) {
    %c0_i32 = arith.constant 0 : i32
    %c0_i32_0 = arith.constant 0 : i32
    %c0_i32_1 = arith.constant 0 : i32
    return %c0_i32, %c0_i32_0 : i32, i32
  }
  func.func @transform_5(%arg0: i32) -> (i32, i32, i32) {
    %c0_i32 = arith.constant 0 : i32
    %c0_i32_0 = arith.constant 0 : i32
    %c0_i32_1 = arith.constant 0 : i32
    return %arg0, %c0_i32, %c0_i32_0 : i32, i32, i32
  }
  func.func @transform_6(%arg0: i32) -> (i32, i32, i32) {
    %c0_i32 = arith.constant 0 : i32
    %c0_i32_0 = arith.constant 0 : i32
    %c0_i32_1 = arith.constant 0 : i32
    return %arg0, %c0_i32, %c0_i32_0 : i32, i32, i32
  }
}

</mosaic_0001>

<llo_original>
// kernel: up_block_forward.1
$region0: #{up_block_forward.1}
  #allocation0 [shape = 'u32[]', space=smem, size = 0x4, offset = 0x4, fixed_abs, tag = 'smem constant byte address 0x4 - core index']
  #allocation1 [shape = 'u32[144,128]{1,0:T(1,128)}', space=vmem, size = 0x12000, scoped, tag = 'internal scratch']
  %s0 = inlined_call_operand.vmem [shape: f32[2,8,64], index: 0, kind: input, shape index: {}]
  %s1 = inlined_call_operand.vmem [shape: f32[2,8,512], index: 1, kind: input, shape index: {}]
  %s2 = inlined_call_operand.vmem [shape: f32[2,8,64], index: 2, kind: input, shape index: {}]
  %s3 = inlined_call_operand.vmem [shape: f32[64,512], index: 3, kind: input, shape index: {}]
  %s4 = inlined_call_operand.vmem [shape: f32[384,128], index: 4, kind: input, shape index: {}]
  %s5 = inlined_call_operand.vmem [shape: f32[2,8,512], index: 5, kind: output, shape index: {0}]
  %s6 = inlined_call_operand.vmem [shape: f32[2,8,64], index: 6, kind: output, shape index: {1}]
  %7 = xla_tuple %s5, %s6
  %s8 = sld [smem:[#allocation0]]
  $region61: #{up_block_forward.1} parent=0
    _
  %s10 = ssub.s32 1, %s8
  %s11 = scalar_select 0, %s10, %s8
  loop: start=0, step=1, limit=4
  $region2: #{up_block_forward.1} parent=0 // loop_pre_header
    _
  $region3: #{up_block_forward.1} parent=0 // loop_header
    %s13 = sphi 0, %s17
    %p14 = scmp.ge.s32.totalorder %s13, 4
    %s23 = sphi 0, %s25
    %s26 = sphi 0, %s23
    %s27 = sphi 0, %s26
    %s43 = sphi 0, %s27
    %s49 = sphi 0, %s51
    %s52 = sphi 0, %s49
    %s53 = sphi 0, %s52
    %s69 = sphi 0, %s53
    %s75 = sphi 0, %s77
    %s78 = sphi 0, %s75
    %s79 = sphi 0, %s78
    %s95 = sphi 0, %s79
    %s99 = sphi 0, %s99
    %s101 = sphi 0, %s99
    %s102 = sphi 0, %s101
    %s116 = sphi 0, %s102
    %s120 = sphi 0, %s120
    %s122 = sphi 0, %s120
    %s123 = sphi 0, %s122
    %s137 = sphi 0, %s123
    %s143 = sphi 0, %s145
    %s146 = sphi 0, %s143
    %s147 = sphi 0, %s146
    %s163 = sphi 0, %s147
    %s169 = sphi 0, %s171
    %s172 = sphi 0, %s169
    %s173 = sphi 0, %s172
    %s189 = sphi 0, %s173
  $region4: #{up_block_forward.1} parent=0 // loop_header_branch
    %16 = sbr.rel (%p14) target = $region8
  $region5: #{up_block_forward.1} parent=0 // loop_body
    %s18 = ssub.s32 %s13, 1
    %s19 = ssub.s32 %s13, 2
    %s20 = sadd.s32 %s13, 1
    %s21 = ssub.s32 %s13, %s20
    %p22 = scmp.eq.s32.totalorder %s21, 0
    %s24 = sadd.s32 %s23, 1
    %s25 = scalar_select %p22, %s23, %s24
    %p28 = pneg %p22
    %p29 = scmp.eq.s32.totalorder %s13, 1
    %p30 = por %p28, %p29
    %p31 = scmp.ne.s32.totalorder %s23, %s26
    %p32 = scmp.eq.s32.totalorder %s13, 0
    %p33 = por %p31, %p32
    %p34 = scmp.ne.s32.totalorder %s23, %s26
    %p35 = scmp.eq.s32.totalorder %s18, 1
    %p36 = por %p34, %p35
    %p37 = scmp.ne.s32.totalorder %s26, %s27
    %p38 = scmp.eq.s32.totalorder %s18, 0
    %p39 = por %p37, %p38
    %p40 = scmp.ne.s32.totalorder %s26, %s27
    %p41 = scmp.eq.s32.totalorder %s19, 1
    %p42 = por %p40, %p41
    %p44 = scmp.ne.s32.totalorder %s27, %s43
    %p45 = scmp.eq.s32.totalorder %s19, 0
    %p46 = por %p44, %p45
    %s47 = ssub.s32 %s13, %s20
    %p48 = scmp.eq.s32.totalorder %s47, 0
    %s50 = sadd.s32 %s49, 1
    %s51 = scalar_select %p48, %s49, %s50
    %p54 = pneg %p48
    %p55 = scmp.eq.s32.totalorder %s13, 1
    %p56 = por %p54, %p55
    %p57 = scmp.ne.s32.totalorder %s49, %s52
    %p58 = scmp.eq.s32.totalorder %s13, 0
    %p59 = por %p57, %p58
    %p60 = scmp.ne.s32.totalorder %s49, %s52
    %p61 = scmp.eq.s32.totalorder %s18, 1
    %p62 = por %p60, %p61
    %p63 = scmp.ne.s32.totalorder %s52, %s53
    %p64 = scmp.eq.s32.totalorder %s18, 0
    %p65 = por %p63, %p64
    %p66 = scmp.ne.s32.totalorder %s52, %s53
    %p67 = scmp.eq.s32.totalorder %s19, 1
    %p68 = por %p66, %p67
    %p70 = scmp.ne.s32.totalorder %s53, %s69
    %p71 = scmp.eq.s32.totalorder %s19, 0
    %p72 = por %p70, %p71
    %s73 = ssub.s32 %s13, %s20
    %p74 = scmp.eq.s32.totalorder %s73, 0
    %s76 = sadd.s32 %s75, 1
    %s77 = scalar_select %p74, %s75, %s76
    %p80 = pneg %p74
    %p81 = scmp.eq.s32.totalorder %s13, 1
    %p82 = por %p80, %p81
    %p83 = scmp.ne.s32.totalorder %s75, %s78
    %p84 = scmp.eq.s32.totalorder %s13, 0
    %p85 = por %p83, %p84
    %p86 = scmp.ne.s32.totalorder %s75, %s78
    %p87 = scmp.eq.s32.totalorder %s18, 1
    %p88 = por %p86, %p87
    %p89 = scmp.ne.s32.totalorder %s78, %s79
    %p90 = scmp.eq.s32.totalorder %s18, 0
    %p91 = por %p89, %p90
    %p92 = scmp.ne.s32.totalorder %s78, %s79
    %p93 = scmp.eq.s32.totalorder %s19, 1
    %p94 = por %p92, %p93
    %p96 = scmp.ne.s32.totalorder %s79, %s95
    %p97 = scmp.eq.s32.totalorder %s19, 0
    %p98 = por %p96, %p97
    %s100 = sadd.s32 %s99, 1
    %p103 = scmp.eq.s32.totalorder %s13, 1
    %p104 = scmp.ne.s32.totalorder %s99, %s101
    %p105 = scmp.eq.s32.totalorder %s13, 0
    %p106 = por %p104, %p105
    %p107 = scmp.ne.s32.totalorder %s99, %s101
    %p108 = scmp.eq.s32.totalorder %s18, 1
    %p109 = por %p107, %p108
    %p110 = scmp.ne.s32.totalorder %s101, %s102
    %p111 = scmp.eq.s32.totalorder %s18, 0
    %p112 = por %p110, %p111
    %p113 = scmp.ne.s32.totalorder %s101, %s102
    %p114 = scmp.eq.s32.totalorder %s19, 1
    %p115 = por %p113, %p114
    %p117 = scmp.ne.s32.totalorder %s102, %s116
    %p118 = scmp.eq.s32.totalorder %s19, 0
    %p119 = por %p117, %p118
    %s121 = sadd.s32 %s120, 1
    %p124 = scmp.eq.s32.totalorder %s13, 1
    %p125 = scmp.ne.s32.totalorder %s120, %s122
    %p126 = scmp.eq.s32.totalorder %s13, 0
    %p127 = por %p125, %p126
    %p128 = scmp.ne.s32.totalorder %s120, %s122
    %p129 = scmp.eq.s32.totalorder %s18, 1
    %p130 = por %p128, %p129
    %p131 = scmp.ne.s32.totalorder %s122, %s123
    %p132 = scmp.eq.s32.totalorder %s18, 0
    %p133 = por %p131, %p132
    %p134 = scmp.ne.s32.totalorder %s122, %s123
    %p135 = scmp.eq.s32.totalorder %s19, 1
    %p136 = por %p134, %p135
    %p138 = scmp.ne.s32.totalorder %s123, %s137
    %p139 = scmp.eq.s32.totalorder %s19, 0
    %p140 = por %p138, %p139
    %s141 = ssub.s32 %s13, %s20
    %p142 = scmp.eq.s32.totalorder %s141, 0
    %s144 = sadd.s32 %s143, 1
    %s145 = scalar_select %p142, %s143, %s144
    %p148 = pneg %p142
    %p149 = scmp.eq.s32.totalorder %s13, 1
    %p150 = por %p148, %p149
    %p151 = scmp.ne.s32.totalorder %s143, %s146
    %p152 = scmp.eq.s32.totalorder %s13, 0
    %p153 = por %p151, %p152
    %p154 = scmp.ne.s32.totalorder %s143, %s146
    %p155 = scmp.eq.s32.totalorder %s18, 1
    %p156 = por %p154, %p155
    %p157 = scmp.ne.s32.totalorder %s146, %s147
    %p158 = scmp.eq.s32.totalorder %s18, 0
    %p159 = por %p157, %p158
    %p160 = scmp.ne.s32.totalorder %s146, %s147
    %p161 = scmp.eq.s32.totalorder %s19, 1
    %p162 = por %p160, %p161
    %p164 = scmp.ne.s32.totalorder %s147, %s163
    %p165 = scmp.eq.s32.totalorder %s19, 0
    %p166 = por %p164, %p165
    %s167 = ssub.s32 %s13, %s20
    %p168 = scmp.eq.s32.totalorder %s167, 0
    %s170 = sadd.s32 %s169, 1
    %s171 = scalar_select %p168, %s169, %s170
    %p174 = pneg %p168
    %p175 = scmp.eq.s32.totalorder %s13, 1
    %p176 = por %p174, %p175
    %p177 = scmp.ne.s32.totalorder %s169, %s172
    %p178 = scmp.eq.s32.totalorder %s13, 0
    %p179 = por %p177, %p178
    %p180 = scmp.ne.s32.totalorder %s169, %s172
    %p181 = scmp.eq.s32.totalorder %s18, 1
    %p182 = por %p180, %p181
    %p183 = scmp.ne.s32.totalorder %s172, %s173
    %p184 = scmp.eq.s32.totalorder %s18, 0
    %p185 = por %p183, %p184
    %p186 = scmp.ne.s32.totalorder %s172, %s173
    %p187 = scmp.eq.s32.totalorder %s19, 1
    %p188 = por %p186, %p187
    %p190 = scmp.ne.s32.totalorder %s173, %s189
    %p191 = scmp.eq.s32.totalorder %s19, 0
    %p192 = por %p190, %p191
    %p193 = scmp.le.s32.totalorder 1, %s13
    %p194 = scmp.lt.s32.totalorder %s13, 3
    %p195 = pnand %p193, %p194
    %p196 = pneg %p195
    // Predicated region
    $region9: #{up_block_forward.1} parent=5 // pred_check
      _
    $region10: #{up_block_forward.1} parent=5 // pred_check_branch
      %198 = sbr.rel (%p195) target = $region12
    $region11: #{up_block_forward.1} parent=5 // pred_region
      %s199 = ssub.s32 %s13, 1
      // Predicated region
      $region13: #{up_block_forward.1} parent=11 // pred_check
        %p200 = pneg %p112
      $region14: #{up_block_forward.1} parent=11 // pred_check_branch
        %202 = sbr.rel (%p200) target = $region16
      $region15: #{up_block_forward.1} parent=11 // pred_region
        _
      $region16: #{up_block_forward.1} parent=11 // pred_fallthru
        _
      // Predicated region
      $region17: #{up_block_forward.1} parent=11 // pred_check
        %p203 = pneg %p133
      $region18: #{up_block_forward.1} parent=11 // pred_check_branch
        %205 = sbr.rel (%p203) target = $region20
      $region19: #{up_block_forward.1} parent=11 // pred_region
        _
      $region20: #{up_block_forward.1} parent=11 // pred_fallthru
        _
    $region12: #{up_block_forward.1} parent=5 // pred_fallthru
      _
    %p206 = scmp.lt.s32.totalorder %s13, 2
    // Predicated region
    $region21: #{up_block_forward.1} parent=5 // pred_check
      %p207 = pneg %p206
    $region22: #{up_block_forward.1} parent=5 // pred_check_branch
      %209 = sbr.rel (%p207) target = $region24
    $region23: #{up_block_forward.1} parent=5 // pred_region
      // Predicated region
      $region25: #{up_block_forward.1} parent=23 // pred_check
        %p210 = pneg %p33
      $region26: #{up_block_forward.1} parent=23 // pred_check_branch
        %212 = sbr.rel (%p210) target = $region28
      $region27: #{up_block_forward.1} parent=23 // pred_region
        %p213 = scmp.lt.s32.totalorder %s13, 1
        %s214 = scalar_select %p213, %s13, 1
        %s215 = smul.addr %s214, 8
        %s216 = scalar_lea.vmem %s0, %s215
      $region28: #{up_block_forward.1} parent=23 // pred_fallthru
        _
      // Predicated region
      $region29: #{up_block_forward.1} parent=23 // pred_check
        %p217 = pneg %p59
      $region30: #{up_block_forward.1} parent=23 // pred_check_branch
        %219 = sbr.rel (%p217) target = $region32
      $region31: #{up_block_forward.1} parent=23 // pred_region
        %p220 = scmp.lt.s32.totalorder %s13, 1
        %s221 = scalar_select %p220, %s13, 1
        %s222 = smul.addr %s221, 4
        %s223 = smul.addr %s222, 8
        %s224 = scalar_lea.vmem %s1, %s223
      $region32: #{up_block_forward.1} parent=23 // pred_fallthru
        _
      // Predicated region
      $region33: #{up_block_forward.1} parent=23 // pred_check
        %p225 = pneg %p85
      $region34: #{up_block_forward.1} parent=23 // pred_check_branch
        %227 = sbr.rel (%p225) target = $region36
      $region35: #{up_block_forward.1} parent=23 // pred_region
        %p228 = scmp.lt.s32.totalorder %s13, 1
        %s229 = scalar_select %p228, %s13, 1
        %s230 = smul.addr %s229, 8
        %s231 = scalar_lea.vmem %s2, %s230
      $region36: #{up_block_forward.1} parent=23 // pred_fallthru
        _
    $region24: #{up_block_forward.1} parent=5 // pred_fallthru
      _
    %p232 = scmp.le.s32.totalorder 1, %s13
    %p233 = scmp.lt.s32.totalorder %s13, 3
    %p234 = pnand %p232, %p233
    %p235 = pneg %p234
    // Predicated region
    $region37: #{up_block_forward.1} parent=5 // pred_check
      _
    $region38: #{up_block_forward.1} parent=5 // pred_check_branch
      %237 = sbr.rel (%p234) target = $region40
    $region39: #{up_block_forward.1} parent=5 // pred_region
      %s238 = ssub.s32 %s13, 1
      %p239 = scmp.lt.s32.totalorder %s18, 1
      %s240 = scalar_select %p239, %s18, 1
      %s241 = smul.addr %s240, 8
      %s242 = scalar_lea.vmem %s0, %s241
      %p243 = pneg %p39
      %p244 = pneg %p36
      %p245 = scmp.lt.s32.totalorder %s18, 1
      %s246 = scalar_select %p245, %s18, 1
      %s247 = smul.addr %s246, 4
      %s248 = smul.addr %s247, 8
      %s249 = scalar_lea.vmem %s1, %s248
      %p250 = pneg %p65
      %p251 = pneg %p62
      %p252 = scmp.lt.s32.totalorder %s18, 1
      %s253 = scalar_select %p252, %s18, 1
      %s254 = smul.addr %s253, 8
      %s255 = scalar_lea.vmem %s2, %s254
      %p256 = pneg %p91
      %p257 = pneg %p88
      %p258 = pneg %p112
      %p259 = pneg %p109
      %p260 = pneg %p133
      %p261 = pneg %p130
      %p262 = pneg %p159
      %p263 = pneg %p156
      %p264 = scmp.lt.s32.totalorder %s18, 1
      %s265 = scalar_select %p264, %s18, 1
      %s266 = smul.addr %s265, 4
      %s267 = smul.addr %s266, 8
      %s268 = scalar_lea.vmem %s5, %s267
      %p269 = pneg %p185
      %p270 = pneg %p182
      %p271 = scmp.lt.s32.totalorder %s18, 1
      %s272 = scalar_select %p271, %s18, 1
      %s273 = smul.addr %s272, 8
      %s274 = scalar_lea.vmem %s6, %s273
      %p275 = scmp.lt.s32.totalorder %s18, 1
      %s276 = scalar_select %p275, %s18, 1
      %s277 = smul.addr %s276, 8
      %s278 = scalar_lea.vmem %s0, %s277
      %p279 = scmp.lt.s32.totalorder %s18, 1
      %s280 = scalar_select %p279, %s18, 1
      %s281 = smul.addr %s280, 4
      %s282 = smul.addr %s281, 8
      %s283 = scalar_lea.vmem %s1, %s282
      %p284 = scmp.lt.s32.totalorder %s18, 1
      %s285 = scalar_select %p284, %s18, 1
      %s286 = smul.addr %s285, 8
      %s287 = scalar_lea.vmem %s2, %s286
      %p288 = scmp.lt.s32.totalorder %s18, 1
      %s289 = scalar_select %p288, %s18, 1
      %s290 = smul.addr %s289, 4
      %s291 = smul.addr %s290, 8
      %s292 = scalar_lea.vmem %s5, %s291
      %p293 = scmp.lt.s32.totalorder %s18, 1
      %s294 = scalar_select %p293, %s18, 1
      %s295 = smul.addr %s294, 8
      %s296 = scalar_lea.vmem %s6, %s295
      %v297 = vld [vmem:[%s278] sm:$0xff]
      %v298 = vld [vmem:[%s283] sm:$0xff]
      %v299 = vld [vmem:[%s283 + $0x8] sm:$0xff]
      %v300 = vld [vmem:[%s283 + $0x10] sm:$0xff]
      %v301 = vld [vmem:[%s283 + $0x18] sm:$0xff]
      %v302 = vld [vmem:[%s287] sm:$0xff]
      %v303 = vld [vmem:[%s3] sm:$0xff]
      %v304 = vld [vmem:[%s3 + $0x8] sm:$0xff]
      %v305 = vld [vmem:[%s3 + $0x10] sm:$0xff]
      %v306 = vld [vmem:[%s3 + $0x18] sm:$0xff]
      %v307 = vld [vmem:[%s3 + $0x20] sm:$0xff]
      %v308 = vld [vmem:[%s3 + $0x28] sm:$0xff]
      %v309 = vld [vmem:[%s3 + $0x30] sm:$0xff]
      %v310 = vld [vmem:[%s3 + $0x38] sm:$0xff]
      %v311 = vld [vmem:[%s3 + $0x40] sm:$0xff]
      %v312 = vld [vmem:[%s3 + $0x48] sm:$0xff]
      %v313 = vld [vmem:[%s3 + $0x50] sm:$0xff]
      %v314 = vld [vmem:[%s3 + $0x58] sm:$0xff]
      %v315 = vld [vmem:[%s3 + $0x60] sm:$0xff]
      %v316 = vld [vmem:[%s3 + $0x68] sm:$0xff]
      %v317 = vld [vmem:[%s3 + $0x70] sm:$0xff]
      %v318 = vld [vmem:[%s3 + $0x78] sm:$0xff]
      %v319 = vld [vmem:[%s3 + $0x80] sm:$0xff]
      %v320 = vld [vmem:[%s3 + $0x88] sm:$0xff]
      %v321 = vld [vmem:[%s3 + $0x90] sm:$0xff]
      %v322 = vld [vmem:[%s3 + $0x98] sm:$0xff]
      %v323 = vld [vmem:[%s3 + $0xa0] sm:$0xff]
      %v324 = vld [vmem:[%s3 + $0xa8] sm:$0xff]
      %v325 = vld [vmem:[%s3 + $0xb0] sm:$0xff]
      %v326 = vld [vmem:[%s3 + $0xb8] sm:$0xff]
      %v327 = vld [vmem:[%s3 + $0xc0] sm:$0xff]
      %v328 = vld [vmem:[%s3 + $0xc8] sm:$0xff]
      %v329 = vld [vmem:[%s3 + $0xd0] sm:$0xff]
      %v330 = vld [vmem:[%s3 + $0xd8] sm:$0xff]
      %v331 = vld [vmem:[%s3 + $0xe0] sm:$0xff]
      %v332 = vld [vmem:[%s3 + $0xe8] sm:$0xff]
      %v333 = vld [vmem:[%s3 + $0xf0] sm:$0xff]
      %v334 = vld [vmem:[%s3 + $0xf8] sm:$0xff]
      %vm335 = vcmask 523264
      %v337 = vsel %vm335, %v297, 0
      %339 = vmatprep.subr.mxu0 %v304
      %340 = vmatpush1.msra.mxu0 %v303
      %341 = vmatprep.subr.mxu0 %v308
      %342 = vmatpush1.msra.mxu0 %v307
      %343 = vmatprep.subr.mxu0 %v312
      %344 = vmatpush1.msra.mxu0 %v311
      %345 = vmatprep.subr.mxu0 %v316
      %346 = vmatpush1.msra.mxu0 %v315
      %347 = vmatprep.subr.mxu0 %v320
      %348 = vmatpush1.msra.mxu0 %v319
      %349 = vmatprep.subr.mxu0 %v324
      %350 = vmatpush1.msra.mxu0 %v323
      %351 = vmatprep.subr.mxu0 %v328
      %352 = vmatpush1.msra.mxu0 %v327
      %353 = vmatprep.subr.mxu0 %v332
      %354 = vmatpush1.msra.mxu0 %v331
      %355 = vmatprep.subr.mxu0 0.0
      %356 = vmatpush1.msra.mxu0 0.0
      %357 = vmatprep.subr.mxu0 0.0
      %358 = vmatpush1.msra.mxu0 0.0
      %359 = vmatprep.subr.mxu0 0.0
      %360 = vmatpush1.msra.mxu0 0.0
      %361 = vmatprep.subr.mxu0 0.0
      %362 = vmatpush1.msra.mxu0 0.0
      %363 = vmatprep.subr.mxu0 0.0
      %364 = vmatpush1.msra.mxu0 0.0
      %365 = vmatprep.subr.mxu0 0.0
      %366 = vmatpush1.msra.mxu0 0.0
      %367 = vmatprep.subr.mxu0 0.0
      %368 = vmatpush1.msra.mxu0 0.0
      %369 = vmatprep.subr.mxu0 0.0
      %370 = vmatpush1.msra.mxu0 0.0
      %371 = vmatprep.subr.mxu0 0.0
      %372 = vmatpush1.msra.mxu0 0.0
      %373 = vmatprep.subr.mxu0 0.0
      %374 = vmatpush1.msra.mxu0 0.0
      %375 = vmatprep.subr.mxu0 0.0
      %376 = vmatpush1.msra.mxu0 0.0
      %377 = vmatprep.subr.mxu0 0.0
      %378 = vmatpush1.msra.mxu0 0.0
      %379 = vmatprep.subr.mxu0 0.0
      %380 = vmatpush1.msra.mxu0 0.0
      %381 = vmatprep.subr.mxu0 0.0
      %382 = vmatpush1.msra.mxu0 0.0
      %383 = vmatprep.subr.mxu0 0.0
      %384 = vmatpush1.msra.mxu0 0.0
      %385 = vmatprep.subr.mxu0 0.0
      %386 = vmatpush1.msra.mxu0 0.0
      %387 = vmatprep.subr.mxu0 0.0
      %388 = vmatpush1.msra.mxu0 0.0
      %389 = vmatprep.subr.mxu0 0.0
      %390 = vmatpush1.msra.mxu0 0.0
      %391 = vmatprep.subr.mxu0 0.0
      %392 = vmatpush1.msra.mxu0 0.0
      %393 = vmatprep.subr.mxu0 0.0
      %394 = vmatpush1.msra.mxu0 0.0
      %395 = vmatprep.subr.mxu0 0.0
      %396 = vmatpush1.msra.mxu0 0.0
      %397 = vmatprep.subr.mxu0 0.0
      %398 = vmatpush1.msra.mxu0 0.0
      %399 = vmatprep.subr.mxu0 0.0
      %400 = vmatpush1.msra.mxu0 0.0
      %401 = vmatprep.subr.mxu0 0.0
      %402 = vmatpush1.msra.mxu0 0.0
      %403 = vmatprep.mubr.f32.mxu0 0.0
      %404 = vmatmul.mubr.f32.gmra.mrb[0].mxu0 %v337
      %v405 = vpop.f32.mrb[0].mxu0
      %v406 = vadd.f32 0.0, %v405
      %v407 = vpop.f32.mrb[0].mxu0
      %v408 = vadd.f32 0.0, %v407
      %409 = vdwg.mxu0
      %410 = vmatprep.subr.mxu0 %v306
      %411 = vmatpush1.msra.mxu0 %v305
      %412 = vmatprep.subr.mxu0 %v310
      %413 = vmatpush1.msra.mxu0 %v309
      %414 = vmatprep.subr.mxu0 %v314
      %415 = vmatpush1.msra.mxu0 %v313
      %416 = vmatprep.subr.mxu0 %v318
      %417 = vmatpush1.msra.mxu0 %v317
      %418 = vmatprep.subr.mxu0 %v322
      %419 = vmatpush1.msra.mxu0 %v321
      %420 = vmatprep.subr.mxu0 %v326
      %421 = vmatpush1.msra.mxu0 %v325
      %422 = vmatprep.subr.mxu0 %v330
      %423 = vmatpush1.msra.mxu0 %v329
      %424 = vmatprep.subr.mxu0 %v334
      %425 = vmatpush1.msra.mxu0 %v333
      %426 = vmatprep.subr.mxu0 0.0
      %427 = vmatpush1.msra.mxu0 0.0
      %428 = vmatprep.subr.mxu0 0.0
      %429 = vmatpush1.msra.mxu0 0.0
      %430 = vmatprep.subr.mxu0 0.0
      %431 = vmatpush1.msra.mxu0 0.0
      %432 = vmatprep.subr.mxu0 0.0
      %433 = vmatpush1.msra.mxu0 0.0
      %434 = vmatprep.subr.mxu0 0.0
      %435 = vmatpush1.msra.mxu0 0.0
      %436 = vmatprep.subr.mxu0 0.0
      %437 = vmatpush1.msra.mxu0 0.0
      %438 = vmatprep.subr.mxu0 0.0
      %439 = vmatpush1.msra.mxu0 0.0
      %440 = vmatprep.subr.mxu0 0.0
      %441 = vmatpush1.msra.mxu0 0.0
      %442 = vmatprep.subr.mxu0 0.0
      %443 = vmatpush1.msra.mxu0 0.0
      %444 = vmatprep.subr.mxu0 0.0
      %445 = vmatpush1.msra.mxu0 0.0
      %446 = vmatprep.subr.mxu0 0.0
      %447 = vmatpush1.msra.mxu0 0.0
      %448 = vmatprep.subr.mxu0 0.0
      %449 = vmatpush1.msra.mxu0 0.0
      %450 = vmatprep.subr.mxu0 0.0
      %451 = vmatpush1.msra.mxu0 0.0
      %452 = vmatprep.subr.mxu0 0.0
      %453 = vmatpush1.msra.mxu0 0.0
      %454 = vmatprep.subr.mxu0 0.0
      %455 = vmatpush1.msra.mxu0 0.0
      %456 = vmatprep.subr.mxu0 0.0
      %457 = vmatpush1.msra.mxu0 0.0
      %458 = vmatprep.subr.mxu0 0.0
      %459 = vmatpush1.msra.mxu0 0.0
      %460 = vmatprep.subr.mxu0 0.0
      %461 = vmatpush1.msra.mxu0 0.0
      %462 = vmatprep.subr.mxu0 0.0
      %463 = vmatpush1.msra.mxu0 0.0
      %464 = vmatprep.subr.mxu0 0.0
      %465 = vmatpush1.msra.mxu0 0.0
      %466 = vmatprep.subr.mxu0 0.0
      %467 = vmatpush1.msra.mxu0 0.0
      %468 = vmatprep.subr.mxu0 0.0
      %469 = vmatpush1.msra.mxu0 0.0
      %470 = vmatprep.subr.mxu0 0.0
      %471 = vmatpush1.msra.mxu0 0.0
      %472 = vmatprep.subr.mxu0 0.0
      %473 = vmatpush1.msra.mxu0 0.0
      %474 = vmatprep.mubr.f32.mxu0 0.0
      %475 = vmatmul.mubr.f32.gmra.mrb[0].mxu0 %v337
      %v476 = vpop.f32.mrb[0].mxu0
      %v477 = vadd.f32 0.0, %v476
      %v478 = vpop.f32.mrb[0].mxu0
      %v479 = vadd.f32 0.0, %v478
      %480 = vdwg.mxu0
      %v481 = vld [vmem:[%s4] sm:$0xff]
      %v482 = vld [vmem:[%s4 + $0x8] sm:$0xff]
      %v483 = vld [vmem:[%s4 + $0x10] sm:$0xff]
      %v484 = vld [vmem:[%s4 + $0x18] sm:$0xff]
      %v485 = vld [vmem:[%s4 + $0x20] sm:$0xff]
      %v486 = vld [vmem:[%s4 + $0x28] sm:$0xff]
      %v487 = vld [vmem:[%s4 + $0x30] sm:$0xff]
      %v488 = vld [vmem:[%s4 + $0x38] sm:$0xff]
      %v489 = vld [vmem:[%s4 + $0x80] sm:$0xff]
      %v490 = vld [vmem:[%s4 + $0x88] sm:$0xff]
      %v491 = vld [vmem:[%s4 + $0x90] sm:$0xff]
      %v492 = vld [vmem:[%s4 + $0x98] sm:$0xff]
      %v493 = vld [vmem:[%s4 + $0xa0] sm:$0xff]
      %v494 = vld [vmem:[%s4 + $0xa8] sm:$0xff]
      %v495 = vld [vmem:[%s4 + $0xb0] sm:$0xff]
      %v496 = vld [vmem:[%s4 + $0xb8] sm:$0xff]
      %505 = vrot.lane.b32.xlu0 %v481, 120
      %v506 = vpop.permute.xlu0 %505
      %507 = vrot.lane.b32.xlu0 %v482, 120
      %v508 = vpop.permute.xlu0 %507
      %509 = vrot.lane.b32.xlu0 %v483, 120
      %v510 = vpop.permute.xlu0 %509
      %511 = vrot.lane.b32.xlu0 %v484, 120
      %v512 = vpop.permute.xlu0 %511
      %513 = vrot.lane.b32.xlu0 %v485, 120
      %v514 = vpop.permute.xlu0 %513
      %515 = vrot.lane.b32.xlu0 %v486, 120
      %v516 = vpop.permute.xlu0 %515
      %517 = vrot.lane.b32.xlu0 %v487, 120
      %v518 = vpop.permute.xlu0 %517
      %519 = vrot.lane.b32.xlu0 %v488, 120
      %v520 = vpop.permute.xlu0 %519
      %vm521 = vcmask 64512
      %v522 = vsel %vm521, %v506, 0
      %v524 = vsel %vm521, %v508, 0
      %v526 = vsel %vm521, %v510, 0
      %v528 = vsel %vm521, %v512, 0
      %v530 = vsel %vm521, %v514, 0
      %v532 = vsel %vm521, %v516, 0
      %v534 = vsel %vm521, %v518, 0
      %v536 = vsel %vm521, %v520, 0
      %538 = vmatprep.subr.mxu0 %v299
      %539 = vmatpush1.msra.mxu0 %v298
      %540 = vmatprep.subr.mxu0 0.0
      %541 = vmatpush1.msra.mxu0 0.0
      %542 = vmatprep.subr.mxu0 0.0
      %543 = vmatpush1.msra.mxu0 0.0
      %544 = vmatprep.subr.mxu0 0.0
      %545 = vmatpush1.msra.mxu0 0.0
      %546 = vmatprep.subr.mxu0 0.0
      %547 = vmatpush1.msra.mxu0 0.0
      %548 = vmatprep.subr.mxu0 0.0
      %549 = vmatpush1.msra.mxu0 0.0
      %550 = vmatprep.subr.mxu0 0.0
      %551 = vmatpush1.msra.mxu0 0.0
      %552 = vmatprep.subr.mxu0 0.0
      %553 = vmatpush1.msra.mxu0 0.0
      %554 = vmatprep.subr.mxu0 0.0
      %555 = vmatpush1.msra.mxu0 0.0
      %556 = vmatprep.subr.mxu0 0.0
      %557 = vmatpush1.msra.mxu0 0.0
      %558 = vmatprep.subr.mxu0 0.0
      %559 = vmatpush1.msra.mxu0 0.0
      %560 = vmatprep.subr.mxu0 0.0
      %561 = vmatpush1.msra.mxu0 0.0
      %562 = vmatprep.subr.mxu0 0.0
      %563 = vmatpush1.msra.mxu0 0.0
      %564 = vmatprep.subr.mxu0 0.0
      %565 = vmatpush1.msra.mxu0 0.0
      %566 = vmatprep.subr.mxu0 0.0
      %567 = vmatpush1.msra.mxu0 0.0
      %568 = vmatprep.subr.mxu0 0.0
      %569 = vmatpush1.msra.mxu0 0.0
      %570 = vmatprep.subr.mxu0 0.0
      %571 = vmatpush1.msra.mxu0 0.0
      %572 = vmatprep.subr.mxu0 0.0
      %573 = vmatpush1.msra.mxu0 0.0
      %574 = vmatprep.subr.mxu0 0.0
      %575 = vmatpush1.msra.mxu0 0.0
      %576 = vmatprep.subr.mxu0 0.0
      %577 = vmatpush1.msra.mxu0 0.0
      %578 = vmatprep.subr.mxu0 0.0
      %579 = vmatpush1.msra.mxu0 0.0
      %580 = vmatprep.subr.mxu0 0.0
      %581 = vmatpush1.msra.mxu0 0.0
      %582 = vmatprep.subr.mxu0 0.0
      %583 = vmatpush1.msra.mxu0 0.0
      %584 = vmatprep.subr.mxu0 0.0
      %585 = vmatpush1.msra.mxu0 0.0
      %586 = vmatprep.subr.mxu0 0.0
      %587 = vmatpush1.msra.mxu0 0.0
      %588 = vmatprep.subr.mxu0 0.0
      %589 = vmatpush1.msra.mxu0 0.0
      %590 = vmatprep.subr.mxu0 0.0
      %591 = vmatpush1.msra.mxu0 0.0
      %592 = vmatprep.subr.mxu0 0.0
      %593 = vmatpush1.msra.mxu0 0.0
      %594 = vmatprep.subr.mxu0 0.0
      %595 = vmatpush1.msra.mxu0 0.0
      %596 = vmatprep.subr.mxu0 0.0
      %597 = vmatpush1.msra.mxu0 0.0
      %598 = vmatprep.subr.mxu0 0.0
      %599 = vmatpush1.msra.mxu0 0.0
      %600 = vmatprep.subr.mxu0 0.0
      %601 = vmatpush1.msra.mxu0 0.0
      %602 = vmatprep.mubr.f32.mxu0 0.0
      %603 = vmatmul.mubr.f32.gmra.mrb[0].mxu0 %v522
      %v604 = vpop.f32.mrb[0].mxu0
      %v605 = vadd.f32 0.0, %v604
      %v606 = vpop.f32.mrb[0].mxu0
      %v607 = vadd.f32 0.0, %v606
      %608 = vmatprep.mubr.f32.mxu0 0.0
      %609 = vmatmul.mubr.f32.gmra.mrb[0].mxu0 %v524
      %v610 = vpop.f32.mrb[0].mxu0
      %v611 = vadd.f32 0.0, %v610
      %v612 = vpop.f32.mrb[0].mxu0
      %v613 = vadd.f32 0.0, %v612
      %614 = vmatprep.mubr.f32.mxu0 0.0
      %615 = vmatmul.mubr.f32.gmra.mrb[0].mxu0 %v526
      %v616 = vpop.f32.mrb[0].mxu0
      %v617 = vadd.f32 0.0, %v616
      %v618 = vpop.f32.mrb[0].mxu0
      %v619 = vadd.f32 0.0, %v618
      %620 = vmatprep.mubr.f32.mxu0 0.0
      %621 = vmatmul.mubr.f32.gmra.mrb[0].mxu0 %v528
      %v622 = vpop.f32.mrb[0].mxu0
      %v623 = vadd.f32 0.0, %v622
      %v624 = vpop.f32.mrb[0].mxu0
      %v625 = vadd.f32 0.0, %v624
      %626 = vmatprep.mubr.f32.mxu0 0.0
      %627 = vmatmul.mubr.f32.gmra.mrb[0].mxu0 %v530
      %v628 = vpop.f32.mrb[0].mxu0
      %v629 = vadd.f32 0.0, %v628
      %v630 = vpop.f32.mrb[0].mxu0
      %v631 = vadd.f32 0.0, %v630
      %632 = vmatprep.mubr.f32.mxu0 0.0
      %633 = vmatmul.mubr.f32.gmra.mrb[0].mxu0 %v532
      %v634 = vpop.f32.mrb[0].mxu0
      %v635 = vadd.f32 0.0, %v634
      %v636 = vpop.f32.mrb[0].mxu0
      %v637 = vadd.f32 0.0, %v636
      %638 = vmatprep.mubr.f32.mxu0 0.0
      %639 = vmatmul.mubr.f32.gmra.mrb[0].mxu0 %v534
      %v640 = vpop.f32.mrb[0].mxu0
      %v641 = vadd.f32 0.0, %v640
      %v642 = vpop.f32.mrb[0].mxu0
      %v643 = vadd.f32 0.0, %v642
      %644 = vmatprep.mubr.f32.mxu0 0.0
      %645 = vmatmul.mubr.f32.gmra.mrb[0].mxu0 %v536
      %v646 = vpop.f32.mrb[0].mxu0
      %v647 = vadd.f32 0.0, %v646
      %v648 = vpop.f32.mrb[0].mxu0
      %v649 = vadd.f32 0.0, %v648
      %650 = vdwg.mxu0
      %651 = vmatprep.subr.mxu0 %v301
      %652 = vmatpush1.msra.mxu0 %v300
      %653 = vmatprep.subr.mxu0 0.0
      %654 = vmatpush1.msra.mxu0 0.0
      %655 = vmatprep.subr.mxu0 0.0
      %656 = vmatpush1.msra.mxu0 0.0
      %657 = vmatprep.subr.mxu0 0.0
      %658 = vmatpush1.msra.mxu0 0.0
      %659 = vmatprep.subr.mxu0 0.0
      %660 = vmatpush1.msra.mxu0 0.0
      %661 = vmatprep.subr.mxu0 0.0
      %662 = vmatpush1.msra.mxu0 0.0
      %663 = vmatprep.subr.mxu0 0.0
      %664 = vmatpush1.msra.mxu0 0.0
      %665 = vmatprep.subr.mxu0 0.0
      %666 = vmatpush1.msra.mxu0 0.0
      %667 = vmatprep.subr.mxu0 0.0
      %668 = vmatpush1.msra.mxu0 0.0
      %669 = vmatprep.subr.mxu0 0.0
      %670 = vmatpush1.msra.mxu0 0.0
      %671 = vmatprep.subr.mxu0 0.0
      %672 = vmatpush1.msra.mxu0 0.0
      %673 = vmatprep.subr.mxu0 0.0
      %674 = vmatpush1.msra.mxu0 0.0
      %675 = vmatprep.subr.mxu0 0.0
      %676 = vmatpush1.msra.mxu0 0.0
      %677 = vmatprep.subr.mxu0 0.0
      %678 = vmatpush1.msra.mxu0 0.0
      %679 = vmatprep.subr.mxu0 0.0
      %680 = vmatpush1.msra.mxu0 0.0
      %681 = vmatprep.subr.mxu0 0.0
      %682 = vmatpush1.msra.mxu0 0.0
      %683 = vmatprep.subr.mxu0 0.0
      %684 = vmatpush1.msra.mxu0 0.0
      %685 = vmatprep.subr.mxu0 0.0
      %686 = vmatpush1.msra.mxu0 0.0
      %687 = vmatprep.subr.mxu0 0.0
      %688 = vmatpush1.msra.mxu0 0.0
      %689 = vmatprep.subr.mxu0 0.0
      %690 = vmatpush1.msra.mxu0 0.0
      %691 = vmatprep.subr.mxu0 0.0
      %692 = vmatpush1.msra.mxu0 0.0
      %693 = vmatprep.subr.mxu0 0.0
      %694 = vmatpush1.msra.mxu0 0.0
      %695 = vmatprep.subr.mxu0 0.0
      %696 = vmatpush1.msra.mxu0 0.0
      %697 = vmatprep.subr.mxu0 0.0
      %698 = vmatpush1.msra.mxu0 0.0
      %699 = vmatprep.subr.mxu0 0.0
      %700 = vmatpush1.msra.mxu0 0.0
      %701 = vmatprep.subr.mxu0 0.0
      %702 = vmatpush1.msra.mxu0 0.0
      %703 = vmatprep.subr.mxu0 0.0
      %704 = vmatpush1.msra.mxu0 0.0
      %705 = vmatprep.subr.mxu0 0.0
      %706 = vmatpush1.msra.mxu0 0.0
      %707 = vmatprep.subr.mxu0 0.0
      %708 = vmatpush1.msra.mxu0 0.0
      %709 = vmatprep.subr.mxu0 0.0
      %710 = vmatpush1.msra.mxu0 0.0
      %711 = vmatprep.subr.mxu0 0.0
      %712 = vmatpush1.msra.mxu0 0.0
      %713 = vmatprep.subr.mxu0 0.0
      %714 = vmatpush1.msra.mxu0 0.0
      %715 = vmatprep.mubr.f32.mxu0 0.0
      %716 = vmatmul.mubr.f32.gmra.mrb[0].mxu0 %v522
      %v717 = vpop.f32.mrb[0].mxu0
      %v718 = vadd.f32 0.0, %v717
      %v719 = vpop.f32.mrb[0].mxu0
      %v720 = vadd.f32 0.0, %v719
      %721 = vmatprep.mubr.f32.mxu0 0.0
      %722 = vmatmul.mubr.f32.gmra.mrb[0].mxu0 %v524
      %v723 = vpop.f32.mrb[0].mxu0
      %v724 = vadd.f32 0.0, %v723
      %v725 = vpop.f32.mrb[0].mxu0
      %v726 = vadd.f32 0.0, %v725
      %727 = vmatprep.mubr.f32.mxu0 0.0
      %728 = vmatmul.mubr.f32.gmra.mrb[0].mxu0 %v526
      %v729 = vpop.f32.mrb[0].mxu0
      %v730 = vadd.f32 0.0, %v729
      %v731 = vpop.f32.mrb[0].mxu0
      %v732 = vadd.f32 0.0, %v731
      %733 = vmatprep.mubr.f32.mxu0 0.0
      %734 = vmatmul.mubr.f32.gmra.mrb[0].mxu0 %v528
      %v735 = vpop.f32.mrb[0].mxu0
      %v736 = vadd.f32 0.0, %v735
      %v737 = vpop.f32.mrb[0].mxu0
      %v738 = vadd.f32 0.0, %v737
      %739 = vmatprep.mubr.f32.mxu0 0.0
      %740 = vmatmul.mubr.f32.gmra.mrb[0].mxu0 %v530
      %v741 = vpop.f32.mrb[0].mxu0
      %v742 = vadd.f32 0.0, %v741
      %v743 = vpop.f32.mrb[0].mxu0
      %v744 = vadd.f32 0.0, %v743
      %745 = vmatprep.mubr.f32.mxu0 0.0
      %746 = vmatmul.mubr.f32.gmra.mrb[0].mxu0 %v532
      %v747 = vpop.f32.mrb[0].mxu0
      %v748 = vadd.f32 0.0, %v747
      %v749 = vpop.f32.mrb[0].mxu0
      %v750 = vadd.f32 0.0, %v749
      %751 = vmatprep.mubr.f32.mxu0 0.0
      %752 = vmatmul.mubr.f32.gmra.mrb[0].mxu0 %v534
      %v753 = vpop.f32.mrb[0].mxu0
      %v754 = vadd.f32 0.0, %v753
      %v755 = vpop.f32.mrb[0].mxu0
      %v756 = vadd.f32 0.0, %v755
      %757 = vmatprep.mubr.f32.mxu0 0.0
      %758 = vmatmul.mubr.f32.gmra.mrb[0].mxu0 %v536
      %v759 = vpop.f32.mrb[0].mxu0
      %v760 = vadd.f32 0.0, %v759
      %v761 = vpop.f32.mrb[0].mxu0
      %v762 = vadd.f32 0.0, %v761
      %763 = vdwg.mxu0
      %v764 = vsel %vm521, %v481, 0
      %v766 = vsel %vm521, %v482, 0
      %v768 = vsel %vm521, %v483, 0
      %v770 = vsel %vm521, %v484, 0
      %v772 = vsel %vm521, %v485, 0
      %v774 = vsel %vm521, %v486, 0
      %v776 = vsel %vm521, %v487, 0
      %v778 = vsel %vm521, %v488, 0
      %780 = vmatprep.subr.mxu0 %v408
      %781 = vmatpush1.msra.mxu0 %v406
      %782 = vmatprep.subr.mxu0 0.0
      %783 = vmatpush1.msra.mxu0 0.0
      %784 = vmatprep.subr.mxu0 0.0
      %785 = vmatpush1.msra.mxu0 0.0
      %786 = vmatprep.subr.mxu0 0.0
      %787 = vmatpush1.msra.mxu0 0.0
      %788 = vmatprep.subr.mxu0 0.0
      %789 = vmatpush1.msra.mxu0 0.0
      %790 = vmatprep.subr.mxu0 0.0
      %791 = vmatpush1.msra.mxu0 0.0
      %792 = vmatprep.subr.mxu0 0.0
      %793 = vmatpush1.msra.mxu0 0.0
      %794 = vmatprep.subr.mxu0 0.0
      %795 = vmatpush1.msra.mxu0 0.0
      %796 = vmatprep.subr.mxu0 0.0
      %797 = vmatpush1.msra.mxu0 0.0
      %798 = vmatprep.subr.mxu0 0.0
      %799 = vmatpush1.msra.mxu0 0.0
      %800 = vmatprep.subr.mxu0 0.0
      %801 = vmatpush1.msra.mxu0 0.0
      %802 = vmatprep.subr.mxu0 0.0
      %803 = vmatpush1.msra.mxu0 0.0
      %804 = vmatprep.subr.mxu0 0.0
      %805 = vmatpush1.msra.mxu0 0.0
      %806 = vmatprep.subr.mxu0 0.0
      %807 = vmatpush1.msra.mxu0 0.0
      %808 = vmatprep.subr.mxu0 0.0
      %809 = vmatpush1.msra.mxu0 0.0
      %810 = vmatprep.subr.mxu0 0.0
      %811 = vmatpush1.msra.mxu0 0.0
      %812 = vmatprep.subr.mxu0 0.0
      %813 = vmatpush1.msra.mxu0 0.0
      %814 = vmatprep.subr.mxu0 0.0
      %815 = vmatpush1.msra.mxu0 0.0
      %816 = vmatprep.subr.mxu0 0.0
      %817 = vmatpush1.msra.mxu0 0.0
      %818 = vmatprep.subr.mxu0 0.0
      %819 = vmatpush1.msra.mxu0 0.0
      %820 = vmatprep.subr.mxu0 0.0
      %821 = vmatpush1.msra.mxu0 0.0
      %822 = vmatprep.subr.mxu0 0.0
      %823 = vmatpush1.msra.mxu0 0.0
      %824 = vmatprep.subr.mxu0 0.0
      %825 = vmatpush1.msra.mxu0 0.0
      %826 = vmatprep.subr.mxu0 0.0
      %827 = vmatpush1.msra.mxu0 0.0
      %828 = vmatprep.subr.mxu0 0.0
      %829 = vmatpush1.msra.mxu0 0.0
      %830 = vmatprep.subr.mxu0 0.0
      %831 = vmatpush1.msra.mxu0 0.0
      %832 = vmatprep.subr.mxu0 0.0
      %833 = vmatpush1.msra.mxu0 0.0
      %834 = vmatprep.subr.mxu0 0.0
      %835 = vmatpush1.msra.mxu0 0.0
      %836 = vmatprep.subr.mxu0 0.0
      %837 = vmatpush1.msra.mxu0 0.0
      %838 = vmatprep.subr.mxu0 0.0
      %839 = vmatpush1.msra.mxu0 0.0
      %840 = vmatprep.subr.mxu0 0.0
      %841 = vmatpush1.msra.mxu0 0.0
      %842 = vmatprep.subr.mxu0 0.0
      %843 = vmatpush1.msra.mxu0 0.0
      %844 = vmatprep.mubr.f32.mxu0 0.0
      %845 = vmatmul.mubr.f32.gmra.mrb[0].mxu0 %v764
      %v846 = vpop.f32.mrb[0].mxu0
      %v847 = vadd.f32 %v605, %v846
      %v848 = vpop.f32.mrb[0].mxu0
      %v849 = vadd.f32 %v607, %v848
      %850 = vmatprep.mubr.f32.mxu0 0.0
      %851 = vmatmul.mubr.f32.gmra.mrb[0].mxu0 %v766
      %v852 = vpop.f32.mrb[0].mxu0
      %v853 = vadd.f32 %v611, %v852
      %v854 = vpop.f32.mrb[0].mxu0
      %v855 = vadd.f32 %v613, %v854
      %856 = vmatprep.mubr.f32.mxu0 0.0
      %857 = vmatmul.mubr.f32.gmra.mrb[0].mxu0 %v768
      %v858 = vpop.f32.mrb[0].mxu0
      %v859 = vadd.f32 %v617, %v858
      %v860 = vpop.f32.mrb[0].mxu0
      %v861 = vadd.f32 %v619, %v860
      %862 = vmatprep.mubr.f32.mxu0 0.0
      %863 = vmatmul.mubr.f32.gmra.mrb[0].mxu0 %v770
      %v864 = vpop.f32.mrb[0].mxu0
      %v865 = vadd.f32 %v623, %v864
      %v866 = vpop.f32.mrb[0].mxu0
      %v867 = vadd.f32 %v625, %v866
      %868 = vmatprep.mubr.f32.mxu0 0.0
      %869 = vmatmul.mubr.f32.gmra.mrb[0].mxu0 %v772
      %v870 = vpop.f32.mrb[0].mxu0
      %v871 = vadd.f32 %v629, %v870
      %v872 = vpop.f32.mrb[0].mxu0
      %v873 = vadd.f32 %v631, %v872
      %874 = vmatprep.mubr.f32.mxu0 0.0
      %875 = vmatmul.mubr.f32.gmra.mrb[0].mxu0 %v774
      %v876 = vpop.f32.mrb[0].mxu0
      %v877 = vadd.f32 %v635, %v876
      %v878 = vpop.f32.mrb[0].mxu0
      %v879 = vadd.f32 %v637, %v878
      %880 = vmatprep.mubr.f32.mxu0 0.0
      %881 = vmatmul.mubr.f32.gmra.mrb[0].mxu0 %v776
      %v882 = vpop.f32.mrb[0].mxu0
      %v883 = vadd.f32 %v641, %v882
      %v884 = vpop.f32.mrb[0].mxu0
      %v885 = vadd.f32 %v643, %v884
      %886 = vmatprep.mubr.f32.mxu0 0.0
      %887 = vmatmul.mubr.f32.gmra.mrb[0].mxu0 %v778
      %v888 = vpop.f32.mrb[0].mxu0
      %v889 = vadd.f32 %v647, %v888
      %v890 = vpop.f32.mrb[0].mxu0
      %v891 = vadd.f32 %v649, %v890
      %892 = vdwg.mxu0
      %893 = vmatprep.subr.mxu0 %v479
      %894 = vmatpush1.msra.mxu0 %v477
      %895 = vmatprep.subr.mxu0 0.0
      %896 = vmatpush1.msra.mxu0 0.0
      %897 = vmatprep.subr.mxu0 0.0
      %898 = vmatpush1.msra.mxu0 0.0
      %899 = vmatprep.subr.mxu0 0.0
      %900 = vmatpush1.msra.mxu0 0.0
      %901 = vmatprep.subr.mxu0 0.0
      %902 = vmatpush1.msra.mxu0 0.0
      %903 = vmatprep.subr.mxu0 0.0
      %904 = vmatpush1.msra.mxu0 0.0
      %905 = vmatprep.subr.mxu0 0.0
      %906 = vmatpush1.msra.mxu0 0.0
      %907 = vmatprep.subr.mxu0 0.0
      %908 = vmatpush1.msra.mxu0 0.0
      %909 = vmatprep.subr.mxu0 0.0
      %910 = vmatpush1.msra.mxu0 0.0
      %911 = vmatprep.subr.mxu0 0.0
      %912 = vmatpush1.msra.mxu0 0.0
      %913 = vmatprep.subr.mxu0 0.0
      %914 = vmatpush1.msra.mxu0 0.0
      %915 = vmatprep.subr.mxu0 0.0
      %916 = vmatpush1.msra.mxu0 0.0
      %917 = vmatprep.subr.mxu0 0.0
      %918 = vmatpush1.msra.mxu0 0.0
      %919 = vmatprep.subr.mxu0 0.0
      %920 = vmatpush1.msra.mxu0 0.0
      %921 = vmatprep.subr.mxu0 0.0
      %922 = vmatpush1.msra.mxu0 0.0
      %923 = vmatprep.subr.mxu0 0.0
      %924 = vmatpush1.msra.mxu0 0.0
      %925 = vmatprep.subr.mxu0 0.0
      %926 = vmatpush1.msra.mxu0 0.0
      %927 = vmatprep.subr.mxu0 0.0
      %928 = vmatpush1.msra.mxu0 0.0
      %929 = vmatprep.subr.mxu0 0.0
      %930 = vmatpush1.msra.mxu0 0.0
      %931 = vmatprep.subr.mxu0 0.0
      %932 = vmatpush1.msra.mxu0 0.0
      %933 = vmatprep.subr.mxu0 0.0
      %934 = vmatpush1.msra.mxu0 0.0
      %935 = vmatprep.subr.mxu0 0.0
      %936 = vmatpush1.msra.mxu0 0.0
      %937 = vmatprep.subr.mxu0 0.0
      %938 = vmatpush1.msra.mxu0 0.0
      %939 = vmatprep.subr.mxu0 0.0
      %940 = vmatpush1.msra.mxu0 0.0
      %941 = vmatprep.subr.mxu0 0.0
      %942 = vmatpush1.msra.mxu0 0.0
      %943 = vmatprep.subr.mxu0 0.0
      %944 = vmatpush1.msra.mxu0 0.0
      %945 = vmatprep.subr.mxu0 0.0
      %946 = vmatpush1.msra.mxu0 0.0
      %947 = vmatprep.subr.mxu0 0.0
      %948 = vmatpush1.msra.mxu0 0.0
      %949 = vmatprep.subr.mxu0 0.0
      %950 = vmatpush1.msra.mxu0 0.0
      %951 = vmatprep.subr.mxu0 0.0
      %952 = vmatpush1.msra.mxu0 0.0
      %953 = vmatprep.subr.mxu0 0.0
      %954 = vmatpush1.msra.mxu0 0.0
      %955 = vmatprep.subr.mxu0 0.0
      %956 = vmatpush1.msra.mxu0 0.0
      %957 = vmatprep.mubr.f32.mxu0 0.0
      %958 = vmatmul.mubr.f32.gmra.mrb[0].mxu0 %v764
      %v959 = vpop.f32.mrb[0].mxu0
      %v960 = vadd.f32 %v718, %v959
      %v961 = vpop.f32.mrb[0].mxu0
      %v962 = vadd.f32 %v720, %v961
      %963 = vmatprep.mubr.f32.mxu0 0.0
      %964 = vmatmul.mubr.f32.gmra.mrb[0].mxu0 %v766
      %v965 = vpop.f32.mrb[0].mxu0
      %v966 = vadd.f32 %v724, %v965
      %v967 = vpop.f32.mrb[0].mxu0
      %v968 = vadd.f32 %v726, %v967
      %969 = vmatprep.mubr.f32.mxu0 0.0
      %970 = vmatmul.mubr.f32.gmra.mrb[0].mxu0 %v768
      %v971 = vpop.f32.mrb[0].mxu0
      %v972 = vadd.f32 %v730, %v971
      %v973 = vpop.f32.mrb[0].mxu0
      %v974 = vadd.f32 %v732, %v973
      %975 = vmatprep.mubr.f32.mxu0 0.0
      %976 = vmatmul.mubr.f32.gmra.mrb[0].mxu0 %v770
      %v977 = vpop.f32.mrb[0].mxu0
      %v978 = vadd.f32 %v736, %v977
      %v979 = vpop.f32.mrb[0].mxu0
      %v980 = vadd.f32 %v738, %v979
      %981 = vmatprep.mubr.f32.mxu0 0.0
      %982 = vmatmul.mubr.f32.gmra.mrb[0].mxu0 %v772
      %v983 = vpop.f32.mrb[0].mxu0
      %v984 = vadd.f32 %v742, %v983
      %v985 = vpop.f32.mrb[0].mxu0
      %v986 = vadd.f32 %v744, %v985
      %987 = vmatprep.mubr.f32.mxu0 0.0
      %988 = vmatmul.mubr.f32.gmra.mrb[0].mxu0 %v774
      %v989 = vpop.f32.mrb[0].mxu0
      %v990 = vadd.f32 %v748, %v989
      %v991 = vpop.f32.mrb[0].mxu0
      %v992 = vadd.f32 %v750, %v991
      %993 = vmatprep.mubr.f32.mxu0 0.0
      %994 = vmatmul.mubr.f32.gmra.mrb[0].mxu0 %v776
      %v995 = vpop.f32.mrb[0].mxu0
      %v996 = vadd.f32 %v754, %v995
      %v997 = vpop.f32.mrb[0].mxu0
      %v998 = vadd.f32 %v756, %v997
      %999 = vmatprep.mubr.f32.mxu0 0.0
      %1000 = vmatmul.mubr.f32.gmra.mrb[0].mxu0 %v778
      %v1001 = vpop.f32.mrb[0].mxu0
      %v1002 = vadd.f32 %v760, %v1001
      %v1003 = vpop.f32.mrb[0].mxu0
      %v1004 = vadd.f32 %v762, %v1003
      %1005 = vdwg.mxu0
      %1007 = vset.pattern.permute.xlu0 0
      %1008 = vperm.xlu0 %1007, %v489
      %v1009 = vpop.permute.xlu0 %1008
      %1012 = vset.pattern.permute.xlu0 0
      %1013 = vperm.xlu0 %1012, %v490
      %v1014 = vpop.permute.xlu0 %1013
      %1017 = vset.pattern.permute.xlu0 0
      %1018 = vperm.xlu0 %1017, %v491
      %v1019 = vpop.permute.xlu0 %1018
      %1022 = vset.pattern.permute.xlu0 0
      %1023 = vperm.xlu0 %1022, %v492
      %v1024 = vpop.permute.xlu0 %1023
      %1027 = vset.pattern.permute.xlu0 0
      %1028 = vperm.xlu0 %1027, %v493
      %v1029 = vpop.permute.xlu0 %1028
      %1032 = vset.pattern.permute.xlu0 0
      %1033 = vperm.xlu0 %1032, %v494
      %v1034 = vpop.permute.xlu0 %1033
      %1037 = vset.pattern.permute.xlu0 0
      %1038 = vperm.xlu0 %1037, %v495
      %v1039 = vpop.permute.xlu0 %1038
      %1042 = vset.pattern.permute.xlu0 0
      %1043 = vperm.xlu0 %1042, %v496
      %v1044 = vpop.permute.xlu0 %1043
      %v1046 = vadd.f32 %v847, %v1009
      %v1047 = vadd.f32 %v849, %v1009
      %v1048 = vadd.f32 %v960, %v1009
      %v1049 = vadd.f32 %v962, %v1009
      %v1050 = vadd.f32 %v853, %v1014
      %v1051 = vadd.f32 %v855, %v1014
      %v1052 = vadd.f32 %v966, %v1014
      %v1053 = vadd.f32 %v968, %v1014
      %v1054 = vadd.f32 %v859, %v1019
      %v1055 = vadd.f32 %v861, %v1019
      %v1056 = vadd.f32 %v972, %v1019
      %v1057 = vadd.f32 %v974, %v1019
      %v1058 = vadd.f32 %v865, %v1024
      %v1059 = vadd.f32 %v867, %v1024
      %v1060 = vadd.f32 %v978, %v1024
      %v1061 = vadd.f32 %v980, %v1024
      %v1062 = vadd.f32 %v871, %v1029
      %v1063 = vadd.f32 %v873, %v1029
      %v1064 = vadd.f32 %v984, %v1029
      %v1065 = vadd.f32 %v986, %v1029
      %v1066 = vadd.f32 %v877, %v1034
      %v1067 = vadd.f32 %v879, %v1034
      %v1068 = vadd.f32 %v990, %v1034
      %v1069 = vadd.f32 %v992, %v1034
      %v1070 = vadd.f32 %v883, %v1039
      %v1071 = vadd.f32 %v885, %v1039
      %v1072 = vadd.f32 %v996, %v1039
      %v1073 = vadd.f32 %v998, %v1039
      %v1074 = vadd.f32 %v889, %v1044
      %v1075 = vadd.f32 %v891, %v1044
      %v1076 = vadd.f32 %v1002, %v1044
      %v1077 = vadd.f32 %v1004, %v1044
      %v1078 = vld [vmem:[%s4 + $0x40] sm:$0xff]
      %v1079 = vld [vmem:[%s4 + $0x48] sm:$0xff]
      %v1080 = vld [vmem:[%s4 + $0x50] sm:$0xff]
      %v1081 = vld [vmem:[%s4 + $0x58] sm:$0xff]
      %v1082 = vld [vmem:[%s4 + $0x60] sm:$0xff]
      %v1083 = vld [vmem:[%s4 + $0x68] sm:$0xff]
      %v1084 = vld [vmem:[%s4 + $0x70] sm:$0xff]
      %v1085 = vld [vmem:[%s4 + $0x78] sm:$0xff]
      %v1086 = vld [vmem:[%s4 + $0xc0] sm:$0xff]
      %v1087 = vld [vmem:[%s4 + $0xc8] sm:$0xff]
      %v1088 = vld [vmem:[%s4 + $0xd0] sm:$0xff]
      %v1089 = vld [vmem:[%s4 + $0xd8] sm:$0xff]
      %v1090 = vld [vmem:[%s4 + $0xe0] sm:$0xff]
      %v1091 = vld [vmem:[%s4 + $0xe8] sm:$0xff]
      %v1092 = vld [vmem:[%s4 + $0xf0] sm:$0xff]
      %v1093 = vld [vmem:[%s4 + $0xf8] sm:$0xff]
      %1095 = vset.pattern.permute.xlu0 0
      %1096 = vperm.xlu0 %1095, %v1086
      %v1097 = vpop.permute.xlu0 %1096
      %1100 = vset.pattern.permute.xlu0 0
      %1101 = vperm.xlu0 %1100, %v1087
      %v1102 = vpop.permute.xlu0 %1101
      %1105 = vset.pattern.permute.xlu0 0
      %1106 = vperm.xlu0 %1105, %v1088
      %v1107 = vpop.permute.xlu0 %1106
      %1110 = vset.pattern.permute.xlu0 0
      %1111 = vperm.xlu0 %1110, %v1089
      %v1112 = vpop.permute.xlu0 %1111
      %1115 = vset.pattern.permute.xlu0 0
      %1116 = vperm.xlu0 %1115, %v1090
      %v1117 = vpop.permute.xlu0 %1116
      %1120 = vset.pattern.permute.xlu0 0
      %1121 = vperm.xlu0 %1120, %v1091
      %v1122 = vpop.permute.xlu0 %1121
      %1125 = vset.pattern.permute.xlu0 0
      %1126 = vperm.xlu0 %1125, %v1092
      %v1127 = vpop.permute.xlu0 %1126
      %1130 = vset.pattern.permute.xlu0 0
      %1131 = vperm.xlu0 %1130, %v1093
      %v1132 = vpop.permute.xlu0 %1131
      %v1135 = vsel %vm521, %v1078, 0
      %v1138 = vsel %vm521, %v1079, 0
      %v1141 = vsel %vm521, %v1080, 0
      %v1144 = vsel %vm521, %v1081, 0
      %v1147 = vsel %vm521, %v1082, 0
      %v1150 = vsel %vm521, %v1083, 0
      %v1153 = vsel %vm521, %v1084, 0
      %v1156 = vsel %vm521, %v1085, 0
      %1158 = vmatprep.subr.mxu0 0.0
      %1159 = vmatpush1.msra.mxu0 %v302
      %1160 = vmatprep.subr.mxu0 0.0
      %1161 = vmatpush1.msra.mxu0 0.0
      %1162 = vmatprep.subr.mxu0 0.0
      %1163 = vmatpush1.msra.mxu0 0.0
      %1164 = vmatprep.subr.mxu0 0.0
      %1165 = vmatpush1.msra.mxu0 0.0
      %1166 = vmatprep.subr.mxu0 0.0
      %1167 = vmatpush1.msra.mxu0 0.0
      %1168 = vmatprep.subr.mxu0 0.0
      %1169 = vmatpush1.msra.mxu0 0.0
      %1170 = vmatprep.subr.mxu0 0.0
      %1171 = vmatpush1.msra.mxu0 0.0
      %1172 = vmatprep.subr.mxu0 0.0
      %1173 = vmatpush1.msra.mxu0 0.0
      %1174 = vmatprep.subr.mxu0 0.0
      %1175 = vmatpush1.msra.mxu0 0.0
      %1176 = vmatprep.subr.mxu0 0.0
      %1177 = vmatpush1.msra.mxu0 0.0
      %1178 = vmatprep.subr.mxu0 0.0
      %1179 = vmatpush1.msra.mxu0 0.0
      %1180 = vmatprep.subr.mxu0 0.0
      %1181 = vmatpush1.msra.mxu0 0.0
      %1182 = vmatprep.subr.mxu0 0.0
      %1183 = vmatpush1.msra.mxu0 0.0
      %1184 = vmatprep.subr.mxu0 0.0
      %1185 = vmatpush1.msra.mxu0 0.0
      %1186 = vmatprep.subr.mxu0 0.0
      %1187 = vmatpush1.msra.mxu0 0.0
      %1188 = vmatprep.subr.mxu0 0.0
      %1189 = vmatpush1.msra.mxu0 0.0
      %1190 = vmatprep.subr.mxu0 0.0
      %1191 = vmatpush1.msra.mxu0 0.0
      %1192 = vmatprep.subr.mxu0 0.0
      %1193 = vmatpush1.msra.mxu0 0.0
      %1194 = vmatprep.subr.mxu0 0.0
      %1195 = vmatpush1.msra.mxu0 0.0
      %1196 = vmatprep.subr.mxu0 0.0
      %1197 = vmatpush1.msra.mxu0 0.0
      %1198 = vmatprep.subr.mxu0 0.0
      %1199 = vmatpush1.msra.mxu0 0.0
      %1200 = vmatprep.subr.mxu0 0.0
      %1201 = vmatpush1.msra.mxu0 0.0
      %1202 = vmatprep.subr.mxu0 0.0
      %1203 = vmatpush1.msra.mxu0 0.0
      %1204 = vmatprep.subr.mxu0 0.0
      %1205 = vmatpush1.msra.mxu0 0.0
      %1206 = vmatprep.subr.mxu0 0.0
      %1207 = vmatpush1.msra.mxu0 0.0
      %1208 = vmatprep.subr.mxu0 0.0
      %1209 = vmatpush1.msra.mxu0 0.0
      %1210 = vmatprep.subr.mxu0 0.0
      %1211 = vmatpush1.msra.mxu0 0.0
      %1212 = vmatprep.subr.mxu0 0.0
      %1213 = vmatpush1.msra.mxu0 0.0
      %1214 = vmatprep.subr.mxu0 0.0
      %1215 = vmatpush1.msra.mxu0 0.0
      %1216 = vmatprep.subr.mxu0 0.0
      %1217 = vmatpush1.msra.mxu0 0.0
      %1218 = vmatprep.subr.mxu0 0.0
      %1219 = vmatpush1.msra.mxu0 0.0
      %1220 = vmatprep.subr.mxu0 0.0
      %1221 = vmatpush1.msra.mxu0 0.0
      %1222 = vmatprep.mubr.f32.mxu0 0.0
      %1223 = vmatmul.mubr.f32.gmra.mrb[0].mxu0 %v1135
      %v1224 = vpop.f32.mrb[0].mxu0
      %v1225 = vadd.f32 %v1097, %v1224
      %v1226 = vpop.f32.mrb[0].mxu0
      %1227 = vmatprep.mubr.f32.mxu0 0.0
      %1228 = vmatmul.mubr.f32.gmra.mrb[0].mxu0 %v1138
      %v1229 = vpop.f32.mrb[0].mxu0
      %v1230 = vadd.f32 %v1102, %v1229
      %v1231 = vpop.f32.mrb[0].mxu0
      %1232 = vmatprep.mubr.f32.mxu0 0.0
      %1233 = vmatmul.mubr.f32.gmra.mrb[0].mxu0 %v1141
      %v1234 = vpop.f32.mrb[0].mxu0
      %v1235 = vadd.f32 %v1107, %v1234
      %v1236 = vpop.f32.mrb[0].mxu0
      %1237 = vmatprep.mubr.f32.mxu0 0.0
      %1238 = vmatmul.mubr.f32.gmra.mrb[0].mxu0 %v1144
      %v1239 = vpop.f32.mrb[0].mxu0
      %v1240 = vadd.f32 %v1112, %v1239
      %v1241 = vpop.f32.mrb[0].mxu0
      %1242 = vmatprep.mubr.f32.mxu0 0.0
      %1243 = vmatmul.mubr.f32.gmra.mrb[0].mxu0 %v1147
      %v1244 = vpop.f32.mrb[0].mxu0
      %v1245 = vadd.f32 %v1117, %v1244
      %v1246 = vpop.f32.mrb[0].mxu0
      %1247 = vmatprep.mubr.f32.mxu0 0.0
      %1248 = vmatmul.mubr.f32.gmra.mrb[0].mxu0 %v1150
      %v1249 = vpop.f32.mrb[0].mxu0
      %v1250 = vadd.f32 %v1122, %v1249
      %v1251 = vpop.f32.mrb[0].mxu0
      %1252 = vmatprep.mubr.f32.mxu0 0.0
      %1253 = vmatmul.mubr.f32.gmra.mrb[0].mxu0 %v1153
      %v1254 = vpop.f32.mrb[0].mxu0
      %v1255 = vadd.f32 %v1127, %v1254
      %v1256 = vpop.f32.mrb[0].mxu0
      %1257 = vmatprep.mubr.f32.mxu0 0.0
      %1258 = vmatmul.mubr.f32.gmra.mrb[0].mxu0 %v1156
      %v1259 = vpop.f32.mrb[0].mxu0
      %v1260 = vadd.f32 %v1132, %v1259
      %v1261 = vpop.f32.mrb[0].mxu0
      %1262 = vdwg.mxu0
      %v1263 = vld [vmem:[%s4 + $0x100] sm:$0xff]
      %v1264 = vld [vmem:[%s4 + $0x108] sm:$0xff]
      %1265 = vxpose.xlu0.b32.start [1/16] %v1225, 128
      %1266 = vxpose.xlu0.b32.cont [2/16] %v1230, 128
      %1267 = vxpose.xlu0.b32.cont [3/16] 0.0, 128
      %1268 = vxpose.xlu0.b32.cont [4/16] 0.0, 128
      %1269 = vxpose.xlu0.b32.cont [5/16] 0.0, 128
      %1270 = vxpose.xlu0.b32.cont [6/16] 0.0, 128
      %1271 = vxpose.xlu0.b32.cont [7/16] 0.0, 128
      %1272 = vxpose.xlu0.b32.cont [8/16] 0.0, 128
      %1273 = vxpose.xlu0.b32.cont [9/16] 0.0, 128
      %1274 = vxpose.xlu0.b32.cont [10/16] 0.0, 128
      %1275 = vxpose.xlu0.b32.cont [11/16] 0.0, 128
      %1276 = vxpose.xlu0.b32.cont [12/16] 0.0, 128
      %1277 = vxpose.xlu0.b32.cont [13/16] 0.0, 128
      %1278 = vxpose.xlu0.b32.cont [14/16] 0.0, 128
      %1279 = vxpose.xlu0.b32.cont [15/16] 0.0, 128
      %1280 = vxpose.xlu0.b32.end [16/16] 0.0, 128
      %v1281 = vpop.trf.xlu0
      %v1282 = vpop.trf.xlu0
      %v1283 = vpop.trf.xlu0
      %v1284 = vpop.trf.xlu0
      %v1285 = vpop.trf.xlu0
      %v1286 = vpop.trf.xlu0
      %v1287 = vpop.trf.xlu0
      %v1288 = vpop.trf.xlu0
      %v1289 = vpop.trf.xlu0
      %v1290 = vpop.trf.xlu0
      %v1291 = vpop.trf.xlu0
      %v1292 = vpop.trf.xlu0
      %v1293 = vpop.trf.xlu0
      %v1294 = vpop.trf.xlu0
      %v1295 = vpop.trf.xlu0
      %v1296 = vpop.trf.xlu0
      %vm1297 = vcmask 130048
      %v1299 = vsel %vm1297, %v1281, 0
      %v1302 = vsel %vm1297, %v1282, 0
      %v1305 = vsel %vm1297, %v1283, 0
      %v1308 = vsel %vm1297, %v1284, 0
      %v1311 = vsel %vm1297, %v1285, 0
      %v1314 = vsel %vm1297, %v1286, 0
      %v1317 = vsel %vm1297, %v1287, 0
      %v1320 = vsel %vm1297, %v1288, 0
      %1322 = vmatprep.subr.mxu0 %v1047
      %1323 = vmatpush1.msra.mxu0 %v1046
      %1324 = vmatprep.subr.mxu0 %v1051
      %1325 = vmatpush1.msra.mxu0 %v1050
      %1326 = vmatprep.subr.mxu0 0.0
      %1327 = vmatpush1.msra.mxu0 0.0
      %1328 = vmatprep.subr.mxu0 0.0
      %1329 = vmatpush1.msra.mxu0 0.0
      %1330 = vmatprep.subr.mxu0 0.0
      %1331 = vmatpush1.msra.mxu0 0.0
      %1332 = vmatprep.subr.mxu0 0.0
      %1333 = vmatpush1.msra.mxu0 0.0
      %1334 = vmatprep.subr.mxu0 0.0
      %1335 = vmatpush1.msra.mxu0 0.0
      %1336 = vmatprep.subr.mxu0 0.0
      %1337 = vmatpush1.msra.mxu0 0.0
      %1338 = vmatprep.subr.mxu0 0.0
      %1339 = vmatpush1.msra.mxu0 0.0
      %1340 = vmatprep.subr.mxu0 0.0
      %1341 = vmatpush1.msra.mxu0 0.0
      %1342 = vmatprep.subr.mxu0 0.0
      %1343 = vmatpush1.msra.mxu0 0.0
      %1344 = vmatprep.subr.mxu0 0.0
      %1345 = vmatpush1.msra.mxu0 0.0
      %1346 = vmatprep.subr.mxu0 0.0
      %1347 = vmatpush1.msra.mxu0 0.0
      %1348 = vmatprep.subr.mxu0 0.0
      %1349 = vmatpush1.msra.mxu0 0.0
      %1350 = vmatprep.subr.mxu0 0.0
      %1351 = vmatpush1.msra.mxu0 0.0
      %1352 = vmatprep.subr.mxu0 0.0
      %1353 = vmatpush1.msra.mxu0 0.0
      %1354 = vmatprep.subr.mxu0 0.0
      %1355 = vmatpush1.msra.mxu0 0.0
      %1356 = vmatprep.subr.mxu0 0.0
      %1357 = vmatpush1.msra.mxu0 0.0
      %1358 = vmatprep.subr.mxu0 0.0
      %1359 = vmatpush1.msra.mxu0 0.0
      %1360 = vmatprep.subr.mxu0 0.0
      %1361 = vmatpush1.msra.mxu0 0.0
      %1362 = vmatprep.subr.mxu0 0.0
      %1363 = vmatpush1.msra.mxu0 0.0
      %1364 = vmatprep.subr.mxu0 0.0
      %1365 = vmatpush1.msra.mxu0 0.0
      %1366 = vmatprep.subr.mxu0 0.0
      %1367 = vmatpush1.msra.mxu0 0.0
      %1368 = vmatprep.subr.mxu0 0.0
      %1369 = vmatpush1.msra.mxu0 0.0
      %1370 = vmatprep.subr.mxu0 0.0
      %1371 = vmatpush1.msra.mxu0 0.0
      %1372 = vmatprep.subr.mxu0 0.0
      %1373 = vmatpush1.msra.mxu0 0.0
      %1374 = vmatprep.subr.mxu0 0.0
      %1375 = vmatpush1.msra.mxu0 0.0
      %1376 = vmatprep.subr.mxu0 0.0
      %1377 = vmatpush1.msra.mxu0 0.0
      %1378 = vmatprep.subr.mxu0 0.0
      %1379 = vmatpush1.msra.mxu0 0.0
      %1380 = vmatprep.subr.mxu0 0.0
      %1381 = vmatpush1.msra.mxu0 0.0
      %1382 = vmatprep.subr.mxu0 0.0
      %1383 = vmatpush1.msra.mxu0 0.0
      %1384 = vmatprep.subr.mxu0 0.0
      %1385 = vmatpush1.msra.mxu0 0.0
      %1386 = vmatprep.mubr.f32.mxu0 0.0
      %1387 = vmatmul.mubr.f32.gmra.mrb[0].mxu0 %v1299
      %v1388 = vpop.f32.mrb[0].mxu0
      %v1389 = vadd.f32 0.0, %v1388
      %v1390 = vpop.f32.mrb[0].mxu0
      %v1391 = vadd.f32 0.0, %v1390
      %1392 = vmatprep.mubr.f32.mxu0 0.0
      %1393 = vmatmul.mubr.f32.gmra.mrb[0].mxu0 %v1302
      %v1394 = vpop.f32.mrb[0].mxu0
      %v1395 = vadd.f32 0.0, %v1394
      %v1396 = vpop.f32.mrb[0].mxu0
      %v1397 = vadd.f32 0.0, %v1396
      %1398 = vmatprep.mubr.f32.mxu0 0.0
      %1399 = vmatmul.mubr.f32.gmra.mrb[0].mxu0 %v1305
      %v1400 = vpop.f32.mrb[0].mxu0
      %v1401 = vadd.f32 0.0, %v1400
      %v1402 = vpop.f32.mrb[0].mxu0
      %v1403 = vadd.f32 0.0, %v1402
      %1404 = vmatprep.mubr.f32.mxu0 0.0
      %1405 = vmatmul.mubr.f32.gmra.mrb[0].mxu0 %v1308
      %v1406 = vpop.f32.mrb[0].mxu0
      %v1407 = vadd.f32 0.0, %v1406
      %v1408 = vpop.f32.mrb[0].mxu0
      %v1409 = vadd.f32 0.0, %v1408
      %1410 = vmatprep.mubr.f32.mxu0 0.0
      %1411 = vmatmul.mubr.f32.gmra.mrb[0].mxu0 %v1311
      %v1412 = vpop.f32.mrb[0].mxu0
      %v1413 = vadd.f32 0.0, %v1412
      %v1414 = vpop.f32.mrb[0].mxu0
      %v1415 = vadd.f32 0.0, %v1414
      %1416 = vmatprep.mubr.f32.mxu0 0.0
      %1417 = vmatmul.mubr.f32.gmra.mrb[0].mxu0 %v1314
      %v1418 = vpop.f32.mrb[0].mxu0
      %v1419 = vadd.f32 0.0, %v1418
      %v1420 = vpop.f32.mrb[0].mxu0
      %v1421 = vadd.f32 0.0, %v1420
      %1422 = vmatprep.mubr.f32.mxu0 0.0
      %1423 = vmatmul.mubr.f32.gmra.mrb[0].mxu0 %v1317
      %v1424 = vpop.f32.mrb[0].mxu0
      %v1425 = vadd.f32 0.0, %v1424
      %v1426 = vpop.f32.mrb[0].mxu0
      %v1427 = vadd.f32 0.0, %v1426
      %1428 = vmatprep.mubr.f32.mxu0 0.0
      %1429 = vmatmul.mubr.f32.gmra.mrb[0].mxu0 %v1320
      %v1430 = vpop.f32.mrb[0].mxu0
      %v1431 = vadd.f32 0.0, %v1430
      %v1432 = vpop.f32.mrb[0].mxu0
      %v1433 = vadd.f32 0.0, %v1432
      %1434 = vdwg.mxu0
      %1435 = vmatprep.subr.mxu0 %v1049
      %1436 = vmatpush1.msra.mxu0 %v1048
      %1437 = vmatprep.subr.mxu0 %v1053
      %1438 = vmatpush1.msra.mxu0 %v1052
      %1439 = vmatprep.subr.mxu0 0.0
      %1440 = vmatpush1.msra.mxu0 0.0
      %1441 = vmatprep.subr.mxu0 0.0
      %1442 = vmatpush1.msra.mxu0 0.0
      %1443 = vmatprep.subr.mxu0 0.0
      %1444 = vmatpush1.msra.mxu0 0.0
      %1445 = vmatprep.subr.mxu0 0.0
      %1446 = vmatpush1.msra.mxu0 0.0
      %1447 = vmatprep.subr.mxu0 0.0
      %1448 = vmatpush1.msra.mxu0 0.0
      %1449 = vmatprep.subr.mxu0 0.0
      %1450 = vmatpush1.msra.mxu0 0.0
      %1451 = vmatprep.subr.mxu0 0.0
      %1452 = vmatpush1.msra.mxu0 0.0
      %1453 = vmatprep.subr.mxu0 0.0
      %1454 = vmatpush1.msra.mxu0 0.0
      %1455 = vmatprep.subr.mxu0 0.0
      %1456 = vmatpush1.msra.mxu0 0.0
      %1457 = vmatprep.subr.mxu0 0.0
      %1458 = vmatpush1.msra.mxu0 0.0
      %1459 = vmatprep.subr.mxu0 0.0
      %1460 = vmatpush1.msra.mxu0 0.0
      %1461 = vmatprep.subr.mxu0 0.0
      %1462 = vmatpush1.msra.mxu0 0.0
      %1463 = vmatprep.subr.mxu0 0.0
      %1464 = vmatpush1.msra.mxu0 0.0
      %1465 = vmatprep.subr.mxu0 0.0
      %1466 = vmatpush1.msra.mxu0 0.0
      %1467 = vmatprep.subr.mxu0 0.0
      %1468 = vmatpush1.msra.mxu0 0.0
      %1469 = vmatprep.subr.mxu0 0.0
      %1470 = vmatpush1.msra.mxu0 0.0
      %1471 = vmatprep.subr.mxu0 0.0
      %1472 = vmatpush1.msra.mxu0 0.0
      %1473 = vmatprep.subr.mxu0 0.0
      %1474 = vmatpush1.msra.mxu0 0.0
      %1475 = vmatprep.subr.mxu0 0.0
      %1476 = vmatpush1.msra.mxu0 0.0
      %1477 = vmatprep.subr.mxu0 0.0
      %1478 = vmatpush1.msra.mxu0 0.0
      %1479 = vmatprep.subr.mxu0 0.0
      %1480 = vmatpush1.msra.mxu0 0.0
      %1481 = vmatprep.subr.mxu0 0.0
      %1482 = vmatpush1.msra.mxu0 0.0
      %1483 = vmatprep.subr.mxu0 0.0
      %1484 = vmatpush1.msra.mxu0 0.0
      %1485 = vmatprep.subr.mxu0 0.0
      %1486 = vmatpush1.msra.mxu0 0.0
      %1487 = vmatprep.subr.mxu0 0.0
      %1488 = vmatpush1.msra.mxu0 0.0
      %1489 = vmatprep.subr.mxu0 0.0
      %1490 = vmatpush1.msra.mxu0 0.0
      %1491 = vmatprep.subr.mxu0 0.0
      %1492 = vmatpush1.msra.mxu0 0.0
      %1493 = vmatprep.subr.mxu0 0.0
      %1494 = vmatpush1.msra.mxu0 0.0
      %1495 = vmatprep.subr.mxu0 0.0
      %1496 = vmatpush1.msra.mxu0 0.0
      %1497 = vmatprep.subr.mxu0 0.0
      %1498 = vmatpush1.msra.mxu0 0.0
      %1499 = vmatprep.mubr.f32.mxu0 0.0
      %1500 = vmatmul.mubr.f32.gmra.mrb[0].mxu0 %v1299
      %v1501 = vpop.f32.mrb[0].mxu0
      %v1502 = vadd.f32 0.0, %v1501
      %v1503 = vpop.f32.mrb[0].mxu0
      %v1504 = vadd.f32 0.0, %v1503
      %1505 = vmatprep.mubr.f32.mxu0 0.0
      %1506 = vmatmul.mubr.f32.gmra.mrb[0].mxu0 %v1302
      %v1507 = vpop.f32.mrb[0].mxu0
      %v1508 = vadd.f32 0.0, %v1507
      %v1509 = vpop.f32.mrb[0].mxu0
      %v1510 = vadd.f32 0.0, %v1509
      %1511 = vmatprep.mubr.f32.mxu0 0.0
      %1512 = vmatmul.mubr.f32.gmra.mrb[0].mxu0 %v1305
      %v1513 = vpop.f32.mrb[0].mxu0
      %v1514 = vadd.f32 0.0, %v1513
      %v1515 = vpop.f32.mrb[0].mxu0
      %v1516 = vadd.f32 0.0, %v1515
      %1517 = vmatprep.mubr.f32.mxu0 0.0
      %1518 = vmatmul.mubr.f32.gmra.mrb[0].mxu0 %v1308
      %v1519 = vpop.f32.mrb[0].mxu0
      %v1520 = vadd.f32 0.0, %v1519
      %v1521 = vpop.f32.mrb[0].mxu0
      %v1522 = vadd.f32 0.0, %v1521
      %1523 = vmatprep.mubr.f32.mxu0 0.0
      %1524 = vmatmul.mubr.f32.gmra.mrb[0].mxu0 %v1311
      %v1525 = vpop.f32.mrb[0].mxu0
      %v1526 = vadd.f32 0.0, %v1525
      %v1527 = vpop.f32.mrb[0].mxu0
      %v1528 = vadd.f32 0.0, %v1527
      %1529 = vmatprep.mubr.f32.mxu0 0.0
      %1530 = vmatmul.mubr.f32.gmra.mrb[0].mxu0 %v1314
      %v1531 = vpop.f32.mrb[0].mxu0
      %v1532 = vadd.f32 0.0, %v1531
      %v1533 = vpop.f32.mrb[0].mxu0
      %v1534 = vadd.f32 0.0, %v1533
      %1535 = vmatprep.mubr.f32.mxu0 0.0
      %1536 = vmatmul.mubr.f32.gmra.mrb[0].mxu0 %v1317
      %v1537 = vpop.f32.mrb[0].mxu0
      %v1538 = vadd.f32 0.0, %v1537
      %v1539 = vpop.f32.mrb[0].mxu0
      %v1540 = vadd.f32 0.0, %v1539
      %1541 = vmatprep.mubr.f32.mxu0 0.0
      %1542 = vmatmul.mubr.f32.gmra.mrb[0].mxu0 %v1320
      %v1543 = vpop.f32.mrb[0].mxu0
      %v1544 = vadd.f32 0.0, %v1543
      %v1545 = vpop.f32.mrb[0].mxu0
      %v1546 = vadd.f32 0.0, %v1545
      %1547 = vdwg.mxu0
      %v1548 = vmax.f32 %v1389, %v1395
      %v1549 = vmax.f32 %v1548, %v1401
      %v1550 = vmax.f32 %v1549, %v1407
      %v1551 = vmax.f32 %v1550, %v1413
      %v1552 = vmax.f32 %v1551, %v1419
      %v1553 = vmax.f32 %v1552, %v1425
      %v1554 = vmax.f32 %v1553, %v1431
      %v1555 = vrot.slane %v1554, 4
      %v1556 = vmax.f32 %v1554, %v1555
      %v1557 = vrot.slane %v1556, 2
      %v1558 = vmax.f32 %v1556, %v1557
      %v1559 = vrot.slane %v1558, 1
      %v1560 = vmax.f32 %v1558, %v1559
      %v1561 = vmax.f32 %v1391, %v1397
      %v1562 = vmax.f32 %v1561, %v1403
      %v1563 = vmax.f32 %v1562, %v1409
      %v1564 = vmax.f32 %v1563, %v1415
      %v1565 = vmax.f32 %v1564, %v1421
      %v1566 = vmax.f32 %v1565, %v1427
      %v1567 = vmax.f32 %v1566, %v1433
      %v1568 = vrot.slane %v1567, 4
      %v1569 = vmax.f32 %v1567, %v1568
      %v1570 = vrot.slane %v1569, 2
      %v1571 = vmax.f32 %v1569, %v1570
      %v1572 = vrot.slane %v1571, 1
      %v1573 = vmax.f32 %v1571, %v1572
      %v1574 = vmax.f32 %v1502, %v1508
      %v1575 = vmax.f32 %v1574, %v1514
      %v1576 = vmax.f32 %v1575, %v1520
      %v1577 = vmax.f32 %v1576, %v1526
      %v1578 = vmax.f32 %v1577, %v1532
      %v1579 = vmax.f32 %v1578, %v1538
      %v1580 = vmax.f32 %v1579, %v1544
      %v1581 = vrot.slane %v1580, 4
      %v1582 = vmax.f32 %v1580, %v1581
      %v1583 = vrot.slane %v1582, 2
      %v1584 = vmax.f32 %v1582, %v1583
      %v1585 = vrot.slane %v1584, 1
      %v1586 = vmax.f32 %v1584, %v1585
      %v1587 = vmax.f32 %v1504, %v1510
      %v1588 = vmax.f32 %v1587, %v1516
      %v1589 = vmax.f32 %v1588, %v1522
      %v1590 = vmax.f32 %v1589, %v1528
      %v1591 = vmax.f32 %v1590, %v1534
      %v1592 = vmax.f32 %v1591, %v1540
      %v1593 = vmax.f32 %v1592, %v1546
      %v1594 = vrot.slane %v1593, 4
      %v1595 = vmax.f32 %v1593, %v1594
      %v1596 = vrot.slane %v1595, 2
      %v1597 = vmax.f32 %v1595, %v1596
      %v1598 = vrot.slane %v1597, 1
      %v1599 = vmax.f32 %v1597, %v1598
      %v1600 = vsub.f32 %v1389, %v1560
      %v1601 = vsub.f32 %v1391, %v1573
      %v1602 = vsub.f32 %v1502, %v1586
      %v1603 = vsub.f32 %v1504, %v1599
      %v1604 = vsub.f32 %v1395, %v1560
      %v1605 = vsub.f32 %v1397, %v1573
      %v1606 = vsub.f32 %v1508, %v1586
      %v1607 = vsub.f32 %v1510, %v1599
      %v1608 = vsub.f32 %v1401, %v1560
      %v1609 = vsub.f32 %v1403, %v1573
      %v1610 = vsub.f32 %v1514, %v1586
      %v1611 = vsub.f32 %v1516, %v1599
      %v1612 = vsub.f32 %v1407, %v1560
      %v1613 = vsub.f32 %v1409, %v1573
      %v1614 = vsub.f32 %v1520, %v1586
      %v1615 = vsub.f32 %v1522, %v1599
      %v1616 = vsub.f32 %v1413, %v1560
      %v1617 = vsub.f32 %v1415, %v1573
      %v1618 = vsub.f32 %v1526, %v1586
      %v1619 = vsub.f32 %v1528, %v1599
      %v1620 = vsub.f32 %v1419, %v1560
      %v1621 = vsub.f32 %v1421, %v1573
      %v1622 = vsub.f32 %v1532, %v1586
      %v1623 = vsub.f32 %v1534, %v1599
      %v1624 = vsub.f32 %v1425, %v1560
      %v1625 = vsub.f32 %v1427, %v1573
      %v1626 = vsub.f32 %v1538, %v1586
      %v1627 = vsub.f32 %v1540, %v1599
      %v1628 = vsub.f32 %v1431, %v1560
      %v1629 = vsub.f32 %v1433, %v1573
      %v1630 = vsub.f32 %v1544, %v1586
      %v1631 = vsub.f32 %v1546, %v1599
      %v1632 = vmul.f32 %v1600, 1.442695
      %v1633 = vpow.pop %v1632
      %v1634 = vmul.f32 %v1601, 1.442695
      %v1635 = vpow.pop %v1634
      %v1636 = vmul.f32 %v1602, 1.442695
      %v1637 = vpow.pop %v1636
      %v1638 = vmul.f32 %v1603, 1.442695
      %v1639 = vpow.pop %v1638
      %v1640 = vmul.f32 %v1604, 1.442695
      %v1641 = vpow.pop %v1640
      %v1642 = vmul.f32 %v1605, 1.442695
      %v1643 = vpow.pop %v1642
      %v1644 = vmul.f32 %v1606, 1.442695
      %v1645 = vpow.pop %v1644
      %v1646 = vmul.f32 %v1607, 1.442695
      %v1647 = vpow.pop %v1646
      %v1648 = vmul.f32 %v1608, 1.442695
      %v1649 = vpow.pop %v1648
      %v1650 = vmul.f32 %v1609, 1.442695
      %v1651 = vpow.pop %v1650
      %v1652 = vmul.f32 %v1610, 1.442695
      %v1653 = vpow.pop %v1652
      %v1654 = vmul.f32 %v1611, 1.442695
      %v1655 = vpow.pop %v1654
      %v1656 = vmul.f32 %v1612, 1.442695
      %v1657 = vpow.pop %v1656
      %v1658 = vmul.f32 %v1613, 1.442695
      %v1659 = vpow.pop %v1658
      %v1660 = vmul.f32 %v1614, 1.442695
      %v1661 = vpow.pop %v1660
      %v1662 = vmul.f32 %v1615, 1.442695
      %v1663 = vpow.pop %v1662
      %v1664 = vmul.f32 %v1616, 1.442695
      %v1665 = vpow.pop %v1664
      %v1666 = vmul.f32 %v1617, 1.442695
      %v1667 = vpow.pop %v1666
      %v1668 = vmul.f32 %v1618, 1.442695
      %v1669 = vpow.pop %v1668
      %v1670 = vmul.f32 %v1619, 1.442695
      %v1671 = vpow.pop %v1670
      %v1672 = vmul.f32 %v1620, 1.442695
      %v1673 = vpow.pop %v1672
      %v1674 = vmul.f32 %v1621, 1.442695
      %v1675 = vpow.pop %v1674
      %v1676 = vmul.f32 %v1622, 1.442695
      %v1677 = vpow.pop %v1676
      %v1678 = vmul.f32 %v1623, 1.442695
      %v1679 = vpow.pop %v1678
      %v1680 = vmul.f32 %v1624, 1.442695
      %v1681 = vpow.pop %v1680
      %v1682 = vmul.f32 %v1625, 1.442695
      %v1683 = vpow.pop %v1682
      %v1684 = vmul.f32 %v1626, 1.442695
      %v1685 = vpow.pop %v1684
      %v1686 = vmul.f32 %v1627, 1.442695
      %v1687 = vpow.pop %v1686
      %v1688 = vmul.f32 %v1628, 1.442695
      %v1689 = vpow.pop %v1688
      %v1690 = vmul.f32 %v1629, 1.442695
      %v1691 = vpow.pop %v1690
      %v1692 = vmul.f32 %v1630, 1.442695
      %v1693 = vpow.pop %v1692
      %v1694 = vmul.f32 %v1631, 1.442695
      %v1695 = vpow.pop %v1694
      %v1696 = vadd.f32 %v1633, %v1641
      %v1697 = vadd.f32 %v1696, %v1649
      %v1698 = vadd.f32 %v1697, %v1657
      %v1699 = vadd.f32 %v1698, %v1665
      %v1700 = vadd.f32 %v1699, %v1673
      %v1701 = vadd.f32 %v1700, %v1681
      %v1702 = vadd.f32 %v1701, %v1689
      %v1703 = vrot.slane %v1702, 4
      %v1704 = vadd.f32 %v1702, %v1703
      %v1705 = vrot.slane %v1704, 2
      %v1706 = vadd.f32 %v1704, %v1705
      %v1707 = vrot.slane %v1706, 1
      %v1708 = vadd.f32 %v1706, %v1707
      %v1709 = vadd.f32 %v1635, %v1643
      %v1710 = vadd.f32 %v1709, %v1651
      %v1711 = vadd.f32 %v1710, %v1659
      %v1712 = vadd.f32 %v1711, %v1667
      %v1713 = vadd.f32 %v1712, %v1675
      %v1714 = vadd.f32 %v1713, %v1683
      %v1715 = vadd.f32 %v1714, %v1691
      %v1716 = vrot.slane %v1715, 4
      %v1717 = vadd.f32 %v1715, %v1716
      %v1718 = vrot.slane %v1717, 2
      %v1719 = vadd.f32 %v1717, %v1718
      %v1720 = vrot.slane %v1719, 1
      %v1721 = vadd.f32 %v1719, %v1720
      %v1722 = vadd.f32 %v1637, %v1645
      %v1723 = vadd.f32 %v1722, %v1653
      %v1724 = vadd.f32 %v1723, %v1661
      %v1725 = vadd.f32 %v1724, %v1669
      %v1726 = vadd.f32 %v1725, %v1677
      %v1727 = vadd.f32 %v1726, %v1685
      %v1728 = vadd.f32 %v1727, %v1693
      %v1729 = vrot.slane %v1728, 4
      %v1730 = vadd.f32 %v1728, %v1729
      %v1731 = vrot.slane %v1730, 2
      %v1732 = vadd.f32 %v1730, %v1731
      %v1733 = vrot.slane %v1732, 1
      %v1734 = vadd.f32 %v1732, %v1733
      %v1735 = vadd.f32 %v1639, %v1647
      %v1736 = vadd.f32 %v1735, %v1655
      %v1737 = vadd.f32 %v1736, %v1663
      %v1738 = vadd.f32 %v1737, %v1671
      %v1739 = vadd.f32 %v1738, %v1679
      %v1740 = vadd.f32 %v1739, %v1687
      %v1741 = vadd.f32 %v1740, %v1695
      %v1742 = vrot.slane %v1741, 4
      %v1743 = vadd.f32 %v1741, %v1742
      %v1744 = vrot.slane %v1743, 2
      %v1745 = vadd.f32 %v1743, %v1744
      %v1746 = vrot.slane %v1745, 1
      %v1747 = vadd.f32 %v1745, %v1746
      %v1748 = vrcp.pop %v1708
      %v1749 = vmul.f32 %v1633, %v1748
      %v1750 = vrcp.pop %v1721
      %v1751 = vmul.f32 %v1635, %v1750
      %v1752 = vrcp.pop %v1734
      %v1753 = vmul.f32 %v1637, %v1752
      %v1754 = vrcp.pop %v1747
      %v1755 = vmul.f32 %v1639, %v1754
      %v1756 = vmul.f32 %v1641, %v1748
      %v1757 = vmul.f32 %v1643, %v1750
      %v1758 = vmul.f32 %v1645, %v1752
      %v1759 = vmul.f32 %v1647, %v1754
      %v1760 = vmul.f32 %v1649, %v1748
      %v1761 = vmul.f32 %v1651, %v1750
      %v1762 = vmul.f32 %v1653, %v1752
      %v1763 = vmul.f32 %v1655, %v1754
      %v1764 = vmul.f32 %v1657, %v1748
      %v1765 = vmul.f32 %v1659, %v1750
      %v1766 = vmul.f32 %v1661, %v1752
      %v1767 = vmul.f32 %v1663, %v1754
      %v1768 = vmul.f32 %v1665, %v1748
      %v1769 = vmul.f32 %v1667, %v1750
      %v1770 = vmul.f32 %v1669, %v1752
      %v1771 = vmul.f32 %v1671, %v1754
      %v1772 = vmul.f32 %v1673, %v1748
      %v1773 = vmul.f32 %v1675, %v1750
      %v1774 = vmul.f32 %v1677, %v1752
      %v1775 = vmul.f32 %v1679, %v1754
      %v1776 = vmul.f32 %v1681, %v1748
      %v1777 = vmul.f32 %v1683, %v1750
      %v1778 = vmul.f32 %v1685, %v1752
      %v1779 = vmul.f32 %v1687, %v1754
      %v1780 = vmul.f32 %v1689, %v1748
      %v1781 = vmul.f32 %v1691, %v1750
      %v1782 = vmul.f32 %v1693, %v1752
      %v1783 = vmul.f32 %v1695, %v1754
      %v1785 = vsel %vm335, %v1245, 0
      %v1788 = vsel %vm335, %v1250, 0
      %1790 = vmatprep.subr.mxu0 %v1751
      %1791 = vmatpush1.msra.mxu0 %v1749
      %1792 = vmatprep.subr.mxu0 %v1757
      %1793 = vmatpush1.msra.mxu0 %v1756
      %1794 = vmatprep.subr.mxu0 %v1761
      %1795 = vmatpush1.msra.mxu0 %v1760
      %1796 = vmatprep.subr.mxu0 %v1765
      %1797 = vmatpush1.msra.mxu0 %v1764
      %1798 = vmatprep.subr.mxu0 %v1769
      %1799 = vmatpush1.msra.mxu0 %v1768
      %1800 = vmatprep.subr.mxu0 %v1773
      %1801 = vmatpush1.msra.mxu0 %v1772
      %1802 = vmatprep.subr.mxu0 %v1777
      %1803 = vmatpush1.msra.mxu0 %v1776
      %1804 = vmatprep.subr.mxu0 %v1781
      %1805 = vmatpush1.msra.mxu0 %v1780
      %1806 = vmatprep.subr.mxu0 0.0
      %1807 = vmatpush1.msra.mxu0 0.0
      %1808 = vmatprep.subr.mxu0 0.0
      %1809 = vmatpush1.msra.mxu0 0.0
      %1810 = vmatprep.subr.mxu0 0.0
      %1811 = vmatpush1.msra.mxu0 0.0
      %1812 = vmatprep.subr.mxu0 0.0
      %1813 = vmatpush1.msra.mxu0 0.0
      %1814 = vmatprep.subr.mxu0 0.0
      %1815 = vmatpush1.msra.mxu0 0.0
      %1816 = vmatprep.subr.mxu0 0.0
      %1817 = vmatpush1.msra.mxu0 0.0
      %1818 = vmatprep.subr.mxu0 0.0
      %1819 = vmatpush1.msra.mxu0 0.0
      %1820 = vmatprep.subr.mxu0 0.0
      %1821 = vmatpush1.msra.mxu0 0.0
      %1822 = vmatprep.subr.mxu0 0.0
      %1823 = vmatpush1.msra.mxu0 0.0
      %1824 = vmatprep.subr.mxu0 0.0
      %1825 = vmatpush1.msra.mxu0 0.0
      %1826 = vmatprep.subr.mxu0 0.0
      %1827 = vmatpush1.msra.mxu0 0.0
      %1828 = vmatprep.subr.mxu0 0.0
      %1829 = vmatpush1.msra.mxu0 0.0
      %1830 = vmatprep.subr.mxu0 0.0
      %1831 = vmatpush1.msra.mxu0 0.0
      %1832 = vmatprep.subr.mxu0 0.0
      %1833 = vmatpush1.msra.mxu0 0.0
      %1834 = vmatprep.subr.mxu0 0.0
      %1835 = vmatpush1.msra.mxu0 0.0
      %1836 = vmatprep.subr.mxu0 0.0
      %1837 = vmatpush1.msra.mxu0 0.0
      %1838 = vmatprep.subr.mxu0 0.0
      %1839 = vmatpush1.msra.mxu0 0.0
      %1840 = vmatprep.subr.mxu0 0.0
      %1841 = vmatpush1.msra.mxu0 0.0
      %1842 = vmatprep.subr.mxu0 0.0
      %1843 = vmatpush1.msra.mxu0 0.0
      %1844 = vmatprep.subr.mxu0 0.0
      %1845 = vmatpush1.msra.mxu0 0.0
      %1846 = vmatprep.subr.mxu0 0.0
      %1847 = vmatpush1.msra.mxu0 0.0
      %1848 = vmatprep.subr.mxu0 0.0
      %1849 = vmatpush1.msra.mxu0 0.0
      %1850 = vmatprep.subr.mxu0 0.0
      %1851 = vmatpush1.msra.mxu0 0.0
      %1852 = vmatprep.subr.mxu0 0.0
      %1853 = vmatpush1.msra.mxu0 0.0
      %1854 = vmatprep.mubr.f32.mxu0 0.0
      %1855 = vmatmul.mubr.f32.gmra.mrb[0].mxu0 %v1785
      %v1856 = vpop.f32.mrb[0].mxu0
      %v1857 = vadd.f32 0.0, %v1856
      %v1858 = vpop.f32.mrb[0].mxu0
      %v1859 = vadd.f32 0.0, %v1858
      %1860 = vmatprep.mubr.f32.mxu0 0.0
      %1861 = vmatmul.mubr.f32.gmra.mrb[0].mxu0 %v1788
      %v1862 = vpop.f32.mrb[0].mxu0
      %v1863 = vadd.f32 0.0, %v1862
      %v1864 = vpop.f32.mrb[0].mxu0
      %v1865 = vadd.f32 0.0, %v1864
      %1866 = vdwg.mxu0
      %1867 = vmatprep.subr.mxu0 %v1755
      %1868 = vmatpush1.msra.mxu0 %v1753
      %1869 = vmatprep.subr.mxu0 %v1759
      %1870 = vmatpush1.msra.mxu0 %v1758
      %1871 = vmatprep.subr.mxu0 %v1763
      %1872 = vmatpush1.msra.mxu0 %v1762
      %1873 = vmatprep.subr.mxu0 %v1767
      %1874 = vmatpush1.msra.mxu0 %v1766
      %1875 = vmatprep.subr.mxu0 %v1771
      %1876 = vmatpush1.msra.mxu0 %v1770
      %1877 = vmatprep.subr.mxu0 %v1775
      %1878 = vmatpush1.msra.mxu0 %v1774
      %1879 = vmatprep.subr.mxu0 %v1779
      %1880 = vmatpush1.msra.mxu0 %v1778
      %1881 = vmatprep.subr.mxu0 %v1783
      %1882 = vmatpush1.msra.mxu0 %v1782
      %1883 = vmatprep.subr.mxu0 0.0
      %1884 = vmatpush1.msra.mxu0 0.0
      %1885 = vmatprep.subr.mxu0 0.0
      %1886 = vmatpush1.msra.mxu0 0.0
      %1887 = vmatprep.subr.mxu0 0.0
      %1888 = vmatpush1.msra.mxu0 0.0
      %1889 = vmatprep.subr.mxu0 0.0
      %1890 = vmatpush1.msra.mxu0 0.0
      %1891 = vmatprep.subr.mxu0 0.0
      %1892 = vmatpush1.msra.mxu0 0.0
      %1893 = vmatprep.subr.mxu0 0.0
      %1894 = vmatpush1.msra.mxu0 0.0
      %1895 = vmatprep.subr.mxu0 0.0
      %1896 = vmatpush1.msra.mxu0 0.0
      %1897 = vmatprep.subr.mxu0 0.0
      %1898 = vmatpush1.msra.mxu0 0.0
      %1899 = vmatprep.subr.mxu0 0.0
      %1900 = vmatpush1.msra.mxu0 0.0
      %1901 = vmatprep.subr.mxu0 0.0
      %1902 = vmatpush1.msra.mxu0 0.0
      %1903 = vmatprep.subr.mxu0 0.0
      %1904 = vmatpush1.msra.mxu0 0.0
      %1905 = vmatprep.subr.mxu0 0.0
      %1906 = vmatpush1.msra.mxu0 0.0
      %1907 = vmatprep.subr.mxu0 0.0
      %1908 = vmatpush1.msra.mxu0 0.0
      %1909 = vmatprep.subr.mxu0 0.0
      %1910 = vmatpush1.msra.mxu0 0.0
      %1911 = vmatprep.subr.mxu0 0.0
      %1912 = vmatpush1.msra.mxu0 0.0
      %1913 = vmatprep.subr.mxu0 0.0
      %1914 = vmatpush1.msra.mxu0 0.0
      %1915 = vmatprep.subr.mxu0 0.0
      %1916 = vmatpush1.msra.mxu0 0.0
      %1917 = vmatprep.subr.mxu0 0.0
      %1918 = vmatpush1.msra.mxu0 0.0
      %1919 = vmatprep.subr.mxu0 0.0
      %1920 = vmatpush1.msra.mxu0 0.0
      %1921 = vmatprep.subr.mxu0 0.0
      %1922 = vmatpush1.msra.mxu0 0.0
      %1923 = vmatprep.subr.mxu0 0.0
      %1924 = vmatpush1.msra.mxu0 0.0
      %1925 = vmatprep.subr.mxu0 0.0
      %1926 = vmatpush1.msra.mxu0 0.0
      %1927 = vmatprep.subr.mxu0 0.0
      %1928 = vmatpush1.msra.mxu0 0.0
      %1929 = vmatprep.subr.mxu0 0.0
      %1930 = vmatpush1.msra.mxu0 0.0
      %1931 = vmatprep.mubr.f32.mxu0 0.0
      %1932 = vmatmul.mubr.f32.gmra.mrb[0].mxu0 %v1785
      %v1933 = vpop.f32.mrb[0].mxu0
      %v1934 = vadd.f32 0.0, %v1933
      %v1935 = vpop.f32.mrb[0].mxu0
      %v1936 = vadd.f32 0.0, %v1935
      %1937 = vmatprep.mubr.f32.mxu0 0.0
      %1938 = vmatmul.mubr.f32.gmra.mrb[0].mxu0 %v1788
      %v1939 = vpop.f32.mrb[0].mxu0
      %v1940 = vadd.f32 0.0, %v1939
      %v1941 = vpop.f32.mrb[0].mxu0
      %v1942 = vadd.f32 0.0, %v1941
      %1943 = vdwg.mxu0
      %v1944 = vmax.f32 %v1389, %v1391
      %v1945 = vmax.f32 %v1944, %v1502
      %v1946 = vmax.f32 %v1945, %v1504
      %1947 = vmax.xlane.f32.xlu0 %v1946
      %v1948 = vpop.xlane.xlu0 %1947
      %v1949 = vmax.f32 %v1395, %v1397
      %v1950 = vmax.f32 %v1949, %v1508
      %v1951 = vmax.f32 %v1950, %v1510
      %1952 = vmax.xlane.f32.xlu0 %v1951
      %v1953 = vpop.xlane.xlu0 %1952
      %v1954 = vmax.f32 %v1401, %v1403
      %v1955 = vmax.f32 %v1954, %v1514
      %v1956 = vmax.f32 %v1955, %v1516
      %1957 = vmax.xlane.f32.xlu0 %v1956
      %v1958 = vpop.xlane.xlu0 %1957
      %v1959 = vmax.f32 %v1407, %v1409
      %v1960 = vmax.f32 %v1959, %v1520
      %v1961 = vmax.f32 %v1960, %v1522
      %1962 = vmax.xlane.f32.xlu0 %v1961
      %v1963 = vpop.xlane.xlu0 %1962
      %v1964 = vmax.f32 %v1413, %v1415
      %v1965 = vmax.f32 %v1964, %v1526
      %v1966 = vmax.f32 %v1965, %v1528
      %1967 = vmax.xlane.f32.xlu0 %v1966
      %v1968 = vpop.xlane.xlu0 %1967
      %v1969 = vmax.f32 %v1419, %v1421
      %v1970 = vmax.f32 %v1969, %v1532
      %v1971 = vmax.f32 %v1970, %v1534
      %1972 = vmax.xlane.f32.xlu0 %v1971
      %v1973 = vpop.xlane.xlu0 %1972
      %v1974 = vmax.f32 %v1425, %v1427
      %v1975 = vmax.f32 %v1974, %v1538
      %v1976 = vmax.f32 %v1975, %v1540
      %1977 = vmax.xlane.f32.xlu0 %v1976
      %v1978 = vpop.xlane.xlu0 %1977
      %v1979 = vmax.f32 %v1431, %v1433
      %v1980 = vmax.f32 %v1979, %v1544
      %v1981 = vmax.f32 %v1980, %v1546
      %1982 = vmax.xlane.f32.xlu0 %v1981
      %v1983 = vpop.xlane.xlu0 %1982
      %v1984 = vsub.f32 %v1389, %v1948
      %v1985 = vsub.f32 %v1391, %v1948
      %v1986 = vsub.f32 %v1502, %v1948
      %v1987 = vsub.f32 %v1504, %v1948
      %v1988 = vsub.f32 %v1395, %v1953
      %v1989 = vsub.f32 %v1397, %v1953
      %v1990 = vsub.f32 %v1508, %v1953
      %v1991 = vsub.f32 %v1510, %v1953
      %v1992 = vsub.f32 %v1401, %v1958
      %v1993 = vsub.f32 %v1403, %v1958
      %v1994 = vsub.f32 %v1514, %v1958
      %v1995 = vsub.f32 %v1516, %v1958
      %v1996 = vsub.f32 %v1407, %v1963
      %v1997 = vsub.f32 %v1409, %v1963
      %v1998 = vsub.f32 %v1520, %v1963
      %v1999 = vsub.f32 %v1522, %v1963
      %v2000 = vsub.f32 %v1413, %v1968
      %v2001 = vsub.f32 %v1415, %v1968
      %v2002 = vsub.f32 %v1526, %v1968
      %v2003 = vsub.f32 %v1528, %v1968
      %v2004 = vsub.f32 %v1419, %v1973
      %v2005 = vsub.f32 %v1421, %v1973
      %v2006 = vsub.f32 %v1532, %v1973
      %v2007 = vsub.f32 %v1534, %v1973
      %v2008 = vsub.f32 %v1425, %v1978
      %v2009 = vsub.f32 %v1427, %v1978
      %v2010 = vsub.f32 %v1538, %v1978
      %v2011 = vsub.f32 %v1540, %v1978
      %v2012 = vsub.f32 %v1431, %v1983
      %v2013 = vsub.f32 %v1433, %v1983
      %v2014 = vsub.f32 %v1544, %v1983
      %v2015 = vsub.f32 %v1546, %v1983
      %v2016 = vmul.f32 %v1984, 1.442695
      %v2017 = vpow.pop %v2016
      %v2018 = vmul.f32 %v1985, 1.442695
      %v2019 = vpow.pop %v2018
      %v2020 = vmul.f32 %v1986, 1.442695
      %v2021 = vpow.pop %v2020
      %v2022 = vmul.f32 %v1987, 1.442695
      %v2023 = vpow.pop %v2022
      %v2024 = vmul.f32 %v1988, 1.442695
      %v2025 = vpow.pop %v2024
      %v2026 = vmul.f32 %v1989, 1.442695
      %v2027 = vpow.pop %v2026
      %v2028 = vmul.f32 %v1990, 1.442695
      %v2029 = vpow.pop %v2028
      %v2030 = vmul.f32 %v1991, 1.442695
      %v2031 = vpow.pop %v2030
      %v2032 = vmul.f32 %v1992, 1.442695
      %v2033 = vpow.pop %v2032
      %v2034 = vmul.f32 %v1993, 1.442695
      %v2035 = vpow.pop %v2034
      %v2036 = vmul.f32 %v1994, 1.442695
      %v2037 = vpow.pop %v2036
      %v2038 = vmul.f32 %v1995, 1.442695
      %v2039 = vpow.pop %v2038
      %v2040 = vmul.f32 %v1996, 1.442695
      %v2041 = vpow.pop %v2040
      %v2042 = vmul.f32 %v1997, 1.442695
      %v2043 = vpow.pop %v2042
      %v2044 = vmul.f32 %v1998, 1.442695
      %v2045 = vpow.pop %v2044
      %v2046 = vmul.f32 %v1999, 1.442695
      %v2047 = vpow.pop %v2046
      %v2048 = vmul.f32 %v2000, 1.442695
      %v2049 = vpow.pop %v2048
      %v2050 = vmul.f32 %v2001, 1.442695
      %v2051 = vpow.pop %v2050
      %v2052 = vmul.f32 %v2002, 1.442695
      %v2053 = vpow.pop %v2052
      %v2054 = vmul.f32 %v2003, 1.442695
      %v2055 = vpow.pop %v2054
      %v2056 = vmul.f32 %v2004, 1.442695
      %v2057 = vpow.pop %v2056
      %v2058 = vmul.f32 %v2005, 1.442695
      %v2059 = vpow.pop %v2058
      %v2060 = vmul.f32 %v2006, 1.442695
      %v2061 = vpow.pop %v2060
      %v2062 = vmul.f32 %v2007, 1.442695
      %v2063 = vpow.pop %v2062
      %v2064 = vmul.f32 %v2008, 1.442695
      %v2065 = vpow.pop %v2064
      %v2066 = vmul.f32 %v2009, 1.442695
      %v2067 = vpow.pop %v2066
      %v2068 = vmul.f32 %v2010, 1.442695
      %v2069 = vpow.pop %v2068
      %v2070 = vmul.f32 %v2011, 1.442695
      %v2071 = vpow.pop %v2070
      %v2072 = vmul.f32 %v2012, 1.442695
      %v2073 = vpow.pop %v2072
      %v2074 = vmul.f32 %v2013, 1.442695
      %v2075 = vpow.pop %v2074
      %v2076 = vmul.f32 %v2014, 1.442695
      %v2077 = vpow.pop %v2076
      %v2078 = vmul.f32 %v2015, 1.442695
      %v2079 = vpow.pop %v2078
      %v2080 = vadd.f32 %v2017, %v2019
      %v2081 = vadd.f32 %v2080, %v2021
      %v2082 = vadd.f32 %v2081, %v2023
      %2083 = vadd.xlane.f32.xlu0 %v2082
      %v2084 = vpop.xlane.xlu0 %2083
      %v2085 = vadd.f32 %v2025, %v2027
      %v2086 = vadd.f32 %v2085, %v2029
      %v2087 = vadd.f32 %v2086, %v2031
      %2088 = vadd.xlane.f32.xlu0 %v2087
      %v2089 = vpop.xlane.xlu0 %2088
      %v2090 = vadd.f32 %v2033, %v2035
      %v2091 = vadd.f32 %v2090, %v2037
      %v2092 = vadd.f32 %v2091, %v2039
      %2093 = vadd.xlane.f32.xlu0 %v2092
      %v2094 = vpop.xlane.xlu0 %2093
      %v2095 = vadd.f32 %v2041, %v2043
      %v2096 = vadd.f32 %v2095, %v2045
      %v2097 = vadd.f32 %v2096, %v2047
      %2098 = vadd.xlane.f32.xlu0 %v2097
      %v2099 = vpop.xlane.xlu0 %2098
      %v2100 = vadd.f32 %v2049, %v2051
      %v2101 = vadd.f32 %v2100, %v2053
      %v2102 = vadd.f32 %v2101, %v2055
      %2103 = vadd.xlane.f32.xlu0 %v2102
      %v2104 = vpop.xlane.xlu0 %2103
      %v2105 = vadd.f32 %v2057, %v2059
      %v2106 = vadd.f32 %v2105, %v2061
      %v2107 = vadd.f32 %v2106, %v2063
      %2108 = vadd.xlane.f32.xlu0 %v2107
      %v2109 = vpop.xlane.xlu0 %2108
      %v2110 = vadd.f32 %v2065, %v2067
      %v2111 = vadd.f32 %v2110, %v2069
      %v2112 = vadd.f32 %v2111, %v2071
      %2113 = vadd.xlane.f32.xlu0 %v2112
      %v2114 = vpop.xlane.xlu0 %2113
      %v2115 = vadd.f32 %v2073, %v2075
      %v2116 = vadd.f32 %v2115, %v2077
      %v2117 = vadd.f32 %v2116, %v2079
      %2118 = vadd.xlane.f32.xlu0 %v2117
      %v2119 = vpop.xlane.xlu0 %2118
      %v2120 = vrcp.pop %v2084
      %v2121 = vmul.f32 %v2017, %v2120
      %v2122 = vmul.f32 %v2019, %v2120
      %v2123 = vmul.f32 %v2021, %v2120
      %v2124 = vmul.f32 %v2023, %v2120
      %v2125 = vrcp.pop %v2089
      %v2126 = vmul.f32 %v2025, %v2125
      %v2127 = vmul.f32 %v2027, %v2125
      %v2128 = vmul.f32 %v2029, %v2125
      %v2129 = vmul.f32 %v2031, %v2125
      %v2130 = vrcp.pop %v2094
      %v2131 = vmul.f32 %v2033, %v2130
      %v2132 = vmul.f32 %v2035, %v2130
      %v2133 = vmul.f32 %v2037, %v2130
      %v2134 = vmul.f32 %v2039, %v2130
      %v2135 = vrcp.pop %v2099
      %v2136 = vmul.f32 %v2041, %v2135
      %v2137 = vmul.f32 %v2043, %v2135
      %v2138 = vmul.f32 %v2045, %v2135
      %v2139 = vmul.f32 %v2047, %v2135
      %v2140 = vrcp.pop %v2104
      %v2141 = vmul.f32 %v2049, %v2140
      %v2142 = vmul.f32 %v2051, %v2140
      %v2143 = vmul.f32 %v2053, %v2140
      %v2144 = vmul.f32 %v2055, %v2140
      %v2145 = vrcp.pop %v2109
      %v2146 = vmul.f32 %v2057, %v2145
      %v2147 = vmul.f32 %v2059, %v2145
      %v2148 = vmul.f32 %v2061, %v2145
      %v2149 = vmul.f32 %v2063, %v2145
      %v2150 = vrcp.pop %v2114
      %v2151 = vmul.f32 %v2065, %v2150
      %v2152 = vmul.f32 %v2067, %v2150
      %v2153 = vmul.f32 %v2069, %v2150
      %v2154 = vmul.f32 %v2071, %v2150
      %v2155 = vrcp.pop %v2119
      %v2156 = vmul.f32 %v2073, %v2155
      %v2157 = vmul.f32 %v2075, %v2155
      %v2158 = vmul.f32 %v2077, %v2155
      %v2159 = vmul.f32 %v2079, %v2155
      %2160 = vmatprep.subr.mxu0 %v2122
      %2161 = vmatpush1.xpose.msra.mxu0 %v2121
      %2162 = vmatprep.subr.mxu0 %v2127
      %2163 = vmatpush1.xpose.msra.mxu0 %v2126
      %2164 = vmatprep.subr.mxu0 %v2132
      %2165 = vmatpush1.xpose.msra.mxu0 %v2131
      %2166 = vmatprep.subr.mxu0 %v2137
      %2167 = vmatpush1.xpose.msra.mxu0 %v2136
      %2168 = vmatprep.subr.mxu0 %v2142
      %2169 = vmatpush1.xpose.msra.mxu0 %v2141
      %2170 = vmatprep.subr.mxu0 %v2147
      %2171 = vmatpush1.xpose.msra.mxu0 %v2146
      %2172 = vmatprep.subr.mxu0 %v2152
      %2173 = vmatpush1.xpose.msra.mxu0 %v2151
      %2174 = vmatprep.subr.mxu0 %v2157
      %2175 = vmatpush1.xpose.msra.mxu0 %v2156
      %2176 = vmatprep.subr.mxu0 0.0
      %2177 = vmatpush1.xpose.msra.mxu0 0.0
      %2178 = vmatprep.subr.mxu0 0.0
      %2179 = vmatpush1.xpose.msra.mxu0 0.0
      %2180 = vmatprep.subr.mxu0 0.0
      %2181 = vmatpush1.xpose.msra.mxu0 0.0
      %2182 = vmatprep.subr.mxu0 0.0
      %2183 = vmatpush1.xpose.msra.mxu0 0.0
      %2184 = vmatprep.subr.mxu0 0.0
      %2185 = vmatpush1.xpose.msra.mxu0 0.0
      %2186 = vmatprep.subr.mxu0 0.0
      %2187 = vmatpush1.xpose.msra.mxu0 0.0
      %2188 = vmatprep.subr.mxu0 0.0
      %2189 = vmatpush1.xpose.msra.mxu0 0.0
      %2190 = vmatprep.subr.mxu0 0.0
      %2191 = vmatpush1.xpose.msra.mxu0 0.0
      %2192 = vmatprep.subr.mxu0 0.0
      %2193 = vmatpush1.xpose.msra.mxu0 0.0
      %2194 = vmatprep.subr.mxu0 0.0
      %2195 = vmatpush1.xpose.msra.mxu0 0.0
      %2196 = vmatprep.subr.mxu0 0.0
      %2197 = vmatpush1.xpose.msra.mxu0 0.0
      %2198 = vmatprep.subr.mxu0 0.0
      %2199 = vmatpush1.xpose.msra.mxu0 0.0
      %2200 = vmatprep.subr.mxu0 0.0
      %2201 = vmatpush1.xpose.msra.mxu0 0.0
      %2202 = vmatprep.subr.mxu0 0.0
      %2203 = vmatpush1.xpose.msra.mxu0 0.0
      %2204 = vmatprep.subr.mxu0 0.0
      %2205 = vmatpush1.xpose.msra.mxu0 0.0
      %2206 = vmatprep.subr.mxu0 0.0
      %2207 = vmatpush1.xpose.msra.mxu0 0.0
      %2208 = vmatprep.subr.mxu0 0.0
      %2209 = vmatpush1.xpose.msra.mxu0 0.0
      %2210 = vmatprep.subr.mxu0 0.0
      %2211 = vmatpush1.xpose.msra.mxu0 0.0
      %2212 = vmatprep.subr.mxu0 0.0
      %2213 = vmatpush1.xpose.msra.mxu0 0.0
      %2214 = vmatprep.subr.mxu0 0.0
      %2215 = vmatpush1.xpose.msra.mxu0 0.0
      %2216 = vmatprep.subr.mxu0 0.0
      %2217 = vmatpush1.xpose.msra.mxu0 0.0
      %2218 = vmatprep.subr.mxu0 0.0
      %2219 = vmatpush1.xpose.msra.mxu0 0.0
      %2220 = vmatprep.subr.mxu0 0.0
      %2221 = vmatpush1.xpose.msra.mxu0 0.0
      %2222 = vmatprep.subr.mxu0 0.0
      %2223 = vmatpush1.xpose.msra.mxu0 0.0
      %2224 = vmatprep.mubr.f32.mxu0 %v1063
      %2225 = vmatmul.mubr.f32.gmra.mrb[0].mxu0 %v1062
      %v2226 = vpop.f32.mrb[0].mxu0
      %v2227 = vadd.f32 0.0, %v2226
      %v2228 = vpop.f32.mrb[0].mxu0
      %2229 = vmatprep.mubr.f32.mxu0 %v1067
      %2230 = vmatmul.mubr.f32.gmra.mrb[0].mxu0 %v1066
      %v2231 = vpop.f32.mrb[0].mxu0
      %v2232 = vadd.f32 0.0, %v2231
      %v2233 = vpop.f32.mrb[0].mxu0
      %2234 = vdwg.mxu0
      %2235 = vmatprep.subr.mxu0 %v2124
      %2236 = vmatpush1.xpose.msra.mxu0 %v2123
      %2237 = vmatprep.subr.mxu0 %v2129
      %2238 = vmatpush1.xpose.msra.mxu0 %v2128
      %2239 = vmatprep.subr.mxu0 %v2134
      %2240 = vmatpush1.xpose.msra.mxu0 %v2133
      %2241 = vmatprep.subr.mxu0 %v2139
      %2242 = vmatpush1.xpose.msra.mxu0 %v2138
      %2243 = vmatprep.subr.mxu0 %v2144
      %2244 = vmatpush1.xpose.msra.mxu0 %v2143
      %2245 = vmatprep.subr.mxu0 %v2149
      %2246 = vmatpush1.xpose.msra.mxu0 %v2148
      %2247 = vmatprep.subr.mxu0 %v2154
      %2248 = vmatpush1.xpose.msra.mxu0 %v2153
      %2249 = vmatprep.subr.mxu0 %v2159
      %2250 = vmatpush1.xpose.msra.mxu0 %v2158
      %2251 = vmatprep.subr.mxu0 0.0
      %2252 = vmatpush1.xpose.msra.mxu0 0.0
      %2253 = vmatprep.subr.mxu0 0.0
      %2254 = vmatpush1.xpose.msra.mxu0 0.0
      %2255 = vmatprep.subr.mxu0 0.0
      %2256 = vmatpush1.xpose.msra.mxu0 0.0
      %2257 = vmatprep.subr.mxu0 0.0
      %2258 = vmatpush1.xpose.msra.mxu0 0.0
      %2259 = vmatprep.subr.mxu0 0.0
      %2260 = vmatpush1.xpose.msra.mxu0 0.0
      %2261 = vmatprep.subr.mxu0 0.0
      %2262 = vmatpush1.xpose.msra.mxu0 0.0
      %2263 = vmatprep.subr.mxu0 0.0
      %2264 = vmatpush1.xpose.msra.mxu0 0.0
      %2265 = vmatprep.subr.mxu0 0.0
      %2266 = vmatpush1.xpose.msra.mxu0 0.0
      %2267 = vmatprep.subr.mxu0 0.0
      %2268 = vmatpush1.xpose.msra.mxu0 0.0
      %2269 = vmatprep.subr.mxu0 0.0
      %2270 = vmatpush1.xpose.msra.mxu0 0.0
      %2271 = vmatprep.subr.mxu0 0.0
      %2272 = vmatpush1.xpose.msra.mxu0 0.0
      %2273 = vmatprep.subr.mxu0 0.0
      %2274 = vmatpush1.xpose.msra.mxu0 0.0
      %2275 = vmatprep.subr.mxu0 0.0
      %2276 = vmatpush1.xpose.msra.mxu0 0.0
      %2277 = vmatprep.subr.mxu0 0.0
      %2278 = vmatpush1.xpose.msra.mxu0 0.0
      %2279 = vmatprep.subr.mxu0 0.0
      %2280 = vmatpush1.xpose.msra.mxu0 0.0
      %2281 = vmatprep.subr.mxu0 0.0
      %2282 = vmatpush1.xpose.msra.mxu0 0.0
      %2283 = vmatprep.subr.mxu0 0.0
      %2284 = vmatpush1.xpose.msra.mxu0 0.0
      %2285 = vmatprep.subr.mxu0 0.0
      %2286 = vmatpush1.xpose.msra.mxu0 0.0
      %2287 = vmatprep.subr.mxu0 0.0
      %2288 = vmatpush1.xpose.msra.mxu0 0.0
      %2289 = vmatprep.subr.mxu0 0.0
      %2290 = vmatpush1.xpose.msra.mxu0 0.0
      %2291 = vmatprep.subr.mxu0 0.0
      %2292 = vmatpush1.xpose.msra.mxu0 0.0
      %2293 = vmatprep.subr.mxu0 0.0
      %2294 = vmatpush1.xpose.msra.mxu0 0.0
      %2295 = vmatprep.subr.mxu0 0.0
      %2296 = vmatpush1.xpose.msra.mxu0 0.0
      %2297 = vmatprep.subr.mxu0 0.0
      %2298 = vmatpush1.xpose.msra.mxu0 0.0
      %2299 = vmatprep.mubr.f32.mxu0 %v1065
      %2300 = vmatmul.mubr.f32.gmra.mrb[0].mxu0 %v1064
      %v2301 = vpop.f32.mrb[0].mxu0
      %v2302 = vadd.f32 %v2227, %v2301
      %v2303 = vpop.f32.mrb[0].mxu0
      %2304 = vmatprep.mubr.f32.mxu0 %v1069
      %2305 = vmatmul.mubr.f32.gmra.mrb[0].mxu0 %v1068
      %v2306 = vpop.f32.mrb[0].mxu0
      %v2307 = vadd.f32 %v2232, %v2306
      %v2308 = vpop.f32.mrb[0].mxu0
      %2309 = vdwg.mxu0
      %2310 = vxpose.xlu0.b32.start [1/16] %v1235, 128
      %2311 = vxpose.xlu0.b32.cont [2/16] %v1240, 128
      %2312 = vxpose.xlu0.b32.cont [3/16] 0.0, 128
      %2313 = vxpose.xlu0.b32.cont [4/16] 0.0, 128
      %2314 = vxpose.xlu0.b32.cont [5/16] 0.0, 128
      %2315 = vxpose.xlu0.b32.cont [6/16] 0.0, 128
      %2316 = vxpose.xlu0.b32.cont [7/16] 0.0, 128
      %2317 = vxpose.xlu0.b32.cont [8/16] 0.0, 128
      %2318 = vxpose.xlu0.b32.cont [9/16] 0.0, 128
      %2319 = vxpose.xlu0.b32.cont [10/16] 0.0, 128
      %2320 = vxpose.xlu0.b32.cont [11/16] 0.0, 128
      %2321 = vxpose.xlu0.b32.cont [12/16] 0.0, 128
      %2322 = vxpose.xlu0.b32.cont [13/16] 0.0, 128
      %2323 = vxpose.xlu0.b32.cont [14/16] 0.0, 128
      %2324 = vxpose.xlu0.b32.cont [15/16] 0.0, 128
      %2325 = vxpose.xlu0.b32.end [16/16] 0.0, 128
      %v2326 = vpop.trf.xlu0
      %v2327 = vpop.trf.xlu0
      %v2328 = vpop.trf.xlu0
      %v2329 = vpop.trf.xlu0
      %v2330 = vpop.trf.xlu0
      %v2331 = vpop.trf.xlu0
      %v2332 = vpop.trf.xlu0
      %v2333 = vpop.trf.xlu0
      %v2334 = vpop.trf.xlu0
      %v2335 = vpop.trf.xlu0
      %v2336 = vpop.trf.xlu0
      %v2337 = vpop.trf.xlu0
      %v2338 = vpop.trf.xlu0
      %v2339 = vpop.trf.xlu0
      %v2340 = vpop.trf.xlu0
      %v2341 = vpop.trf.xlu0
      %v2343 = vsel %vm1297, %v2326, 0
      %v2346 = vsel %vm1297, %v2327, 0
      %v2349 = vsel %vm1297, %v2328, 0
      %v2352 = vsel %vm1297, %v2329, 0
      %v2355 = vsel %vm1297, %v2330, 0
      %v2358 = vsel %vm1297, %v2331, 0
      %v2361 = vsel %vm1297, %v2332, 0
      %v2364 = vsel %vm1297, %v2333, 0
      %2366 = vmatprep.subr.mxu0 %v1055
      %2367 = vmatpush1.msra.mxu0 %v1054
      %2368 = vmatprep.subr.mxu0 %v1059
      %2369 = vmatpush1.msra.mxu0 %v1058
      %2370 = vmatprep.subr.mxu0 0.0
      %2371 = vmatpush1.msra.mxu0 0.0
      %2372 = vmatprep.subr.mxu0 0.0
      %2373 = vmatpush1.msra.mxu0 0.0
      %2374 = vmatprep.subr.mxu0 0.0
      %2375 = vmatpush1.msra.mxu0 0.0
      %2376 = vmatprep.subr.mxu0 0.0
      %2377 = vmatpush1.msra.mxu0 0.0
      %2378 = vmatprep.subr.mxu0 0.0
      %2379 = vmatpush1.msra.mxu0 0.0
      %2380 = vmatprep.subr.mxu0 0.0
      %2381 = vmatpush1.msra.mxu0 0.0
      %2382 = vmatprep.subr.mxu0 0.0
      %2383 = vmatpush1.msra.mxu0 0.0
      %2384 = vmatprep.subr.mxu0 0.0
      %2385 = vmatpush1.msra.mxu0 0.0
      %2386 = vmatprep.subr.mxu0 0.0
      %2387 = vmatpush1.msra.mxu0 0.0
      %2388 = vmatprep.subr.mxu0 0.0
      %2389 = vmatpush1.msra.mxu0 0.0
      %2390 = vmatprep.subr.mxu0 0.0
      %2391 = vmatpush1.msra.mxu0 0.0
      %2392 = vmatprep.subr.mxu0 0.0
      %2393 = vmatpush1.msra.mxu0 0.0
      %2394 = vmatprep.subr.mxu0 0.0
      %2395 = vmatpush1.msra.mxu0 0.0
      %2396 = vmatprep.subr.mxu0 0.0
      %2397 = vmatpush1.msra.mxu0 0.0
      %2398 = vmatprep.subr.mxu0 0.0
      %2399 = vmatpush1.msra.mxu0 0.0
      %2400 = vmatprep.subr.mxu0 0.0
      %2401 = vmatpush1.msra.mxu0 0.0
      %2402 = vmatprep.subr.mxu0 0.0
      %2403 = vmatpush1.msra.mxu0 0.0
      %2404 = vmatprep.subr.mxu0 0.0
      %2405 = vmatpush1.msra.mxu0 0.0
      %2406 = vmatprep.subr.mxu0 0.0
      %2407 = vmatpush1.msra.mxu0 0.0
      %2408 = vmatprep.subr.mxu0 0.0
      %2409 = vmatpush1.msra.mxu0 0.0
      %2410 = vmatprep.subr.mxu0 0.0
      %2411 = vmatpush1.msra.mxu0 0.0
      %2412 = vmatprep.subr.mxu0 0.0
      %2413 = vmatpush1.msra.mxu0 0.0
      %2414 = vmatprep.subr.mxu0 0.0
      %2415 = vmatpush1.msra.mxu0 0.0
      %2416 = vmatprep.subr.mxu0 0.0
      %2417 = vmatpush1.msra.mxu0 0.0
      %2418 = vmatprep.subr.mxu0 0.0
      %2419 = vmatpush1.msra.mxu0 0.0
      %2420 = vmatprep.subr.mxu0 0.0
      %2421 = vmatpush1.msra.mxu0 0.0
      %2422 = vmatprep.subr.mxu0 0.0
      %2423 = vmatpush1.msra.mxu0 0.0
      %2424 = vmatprep.subr.mxu0 0.0
      %2425 = vmatpush1.msra.mxu0 0.0
      %2426 = vmatprep.subr.mxu0 0.0
      %2427 = vmatpush1.msra.mxu0 0.0
      %2428 = vmatprep.subr.mxu0 0.0
      %2429 = vmatpush1.msra.mxu0 0.0
      %2430 = vmatprep.mubr.f32.mxu0 0.0
      %2431 = vmatmul.mubr.f32.gmra.mrb[0].mxu0 %v2343
      %v2432 = vpop.f32.mrb[0].mxu0
      %v2433 = vadd.f32 0.0, %v2432
      %v2434 = vpop.f32.mrb[0].mxu0
      %v2435 = vadd.f32 0.0, %v2434
      %2436 = vmatprep.mubr.f32.mxu0 0.0
      %2437 = vmatmul.mubr.f32.gmra.mrb[0].mxu0 %v2346
      %v2438 = vpop.f32.mrb[0].mxu0
      %v2439 = vadd.f32 0.0, %v2438
      %v2440 = vpop.f32.mrb[0].mxu0
      %v2441 = vadd.f32 0.0, %v2440
      %2442 = vmatprep.mubr.f32.mxu0 0.0
      %2443 = vmatmul.mubr.f32.gmra.mrb[0].mxu0 %v2349
      %v2444 = vpop.f32.mrb[0].mxu0
      %v2445 = vadd.f32 0.0, %v2444
      %v2446 = vpop.f32.mrb[0].mxu0
      %v2447 = vadd.f32 0.0, %v2446
      %2448 = vmatprep.mubr.f32.mxu0 0.0
      %2449 = vmatmul.mubr.f32.gmra.mrb[0].mxu0 %v2352
      %v2450 = vpop.f32.mrb[0].mxu0
      %v2451 = vadd.f32 0.0, %v2450
      %v2452 = vpop.f32.mrb[0].mxu0
      %v2453 = vadd.f32 0.0, %v2452
      %2454 = vmatprep.mubr.f32.mxu0 0.0
      %2455 = vmatmul.mubr.f32.gmra.mrb[0].mxu0 %v2355
      %v2456 = vpop.f32.mrb[0].mxu0
      %v2457 = vadd.f32 0.0, %v2456
      %v2458 = vpop.f32.mrb[0].mxu0
      %v2459 = vadd.f32 0.0, %v2458
      %2460 = vmatprep.mubr.f32.mxu0 0.0
      %2461 = vmatmul.mubr.f32.gmra.mrb[0].mxu0 %v2358
      %v2462 = vpop.f32.mrb[0].mxu0
      %v2463 = vadd.f32 0.0, %v2462
      %v2464 = vpop.f32.mrb[0].mxu0
      %v2465 = vadd.f32 0.0, %v2464
      %2466 = vmatprep.mubr.f32.mxu0 0.0
      %2467 = vmatmul.mubr.f32.gmra.mrb[0].mxu0 %v2361
      %v2468 = vpop.f32.mrb[0].mxu0
      %v2469 = vadd.f32 0.0, %v2468
      %v2470 = vpop.f32.mrb[0].mxu0
      %v2471 = vadd.f32 0.0, %v2470
      %2472 = vmatprep.mubr.f32.mxu0 0.0
      %2473 = vmatmul.mubr.f32.gmra.mrb[0].mxu0 %v2364
      %v2474 = vpop.f32.mrb[0].mxu0
      %v2475 = vadd.f32 0.0, %v2474
      %v2476 = vpop.f32.mrb[0].mxu0
      %v2477 = vadd.f32 0.0, %v2476
      %2478 = vdwg.mxu0
      %2479 = vmatprep.subr.mxu0 %v1057
      %2480 = vmatpush1.msra.mxu0 %v1056
      %2481 = vmatprep.subr.mxu0 %v1061
      %2482 = vmatpush1.msra.mxu0 %v1060
      %2483 = vmatprep.subr.mxu0 0.0
      %2484 = vmatpush1.msra.mxu0 0.0
      %2485 = vmatprep.subr.mxu0 0.0
      %2486 = vmatpush1.msra.mxu0 0.0
      %2487 = vmatprep.subr.mxu0 0.0
      %2488 = vmatpush1.msra.mxu0 0.0
      %2489 = vmatprep.subr.mxu0 0.0
      %2490 = vmatpush1.msra.mxu0 0.0
      %2491 = vmatprep.subr.mxu0 0.0
      %2492 = vmatpush1.msra.mxu0 0.0
      %2493 = vmatprep.subr.mxu0 0.0
      %2494 = vmatpush1.msra.mxu0 0.0
      %2495 = vmatprep.subr.mxu0 0.0
      %2496 = vmatpush1.msra.mxu0 0.0
      %2497 = vmatprep.subr.mxu0 0.0
      %2498 = vmatpush1.msra.mxu0 0.0
      %2499 = vmatprep.subr.mxu0 0.0
      %2500 = vmatpush1.msra.mxu0 0.0
      %2501 = vmatprep.subr.mxu0 0.0
      %2502 = vmatpush1.msra.mxu0 0.0
      %2503 = vmatprep.subr.mxu0 0.0
      %2504 = vmatpush1.msra.mxu0 0.0
      %2505 = vmatprep.subr.mxu0 0.0
      %2506 = vmatpush1.msra.mxu0 0.0
      %2507 = vmatprep.subr.mxu0 0.0
      %2508 = vmatpush1.msra.mxu0 0.0
      %2509 = vmatprep.subr.mxu0 0.0
      %2510 = vmatpush1.msra.mxu0 0.0
      %2511 = vmatprep.subr.mxu0 0.0
      %2512 = vmatpush1.msra.mxu0 0.0
      %2513 = vmatprep.subr.mxu0 0.0
      %2514 = vmatpush1.msra.mxu0 0.0
      %2515 = vmatprep.subr.mxu0 0.0
      %2516 = vmatpush1.msra.mxu0 0.0
      %2517 = vmatprep.subr.mxu0 0.0
      %2518 = vmatpush1.msra.mxu0 0.0
      %2519 = vmatprep.subr.mxu0 0.0
      %2520 = vmatpush1.msra.mxu0 0.0
      %2521 = vmatprep.subr.mxu0 0.0
      %2522 = vmatpush1.msra.mxu0 0.0
      %2523 = vmatprep.subr.mxu0 0.0
      %2524 = vmatpush1.msra.mxu0 0.0
      %2525 = vmatprep.subr.mxu0 0.0
      %2526 = vmatpush1.msra.mxu0 0.0
      %2527 = vmatprep.subr.mxu0 0.0
      %2528 = vmatpush1.msra.mxu0 0.0
      %2529 = vmatprep.subr.mxu0 0.0
      %2530 = vmatpush1.msra.mxu0 0.0
      %2531 = vmatprep.subr.mxu0 0.0
      %2532 = vmatpush1.msra.mxu0 0.0
      %2533 = vmatprep.subr.mxu0 0.0
      %2534 = vmatpush1.msra.mxu0 0.0
      %2535 = vmatprep.subr.mxu0 0.0
      %2536 = vmatpush1.msra.mxu0 0.0
      %2537 = vmatprep.subr.mxu0 0.0
      %2538 = vmatpush1.msra.mxu0 0.0
      %2539 = vmatprep.subr.mxu0 0.0
      %2540 = vmatpush1.msra.mxu0 0.0
      %2541 = vmatprep.subr.mxu0 0.0
      %2542 = vmatpush1.msra.mxu0 0.0
      %2543 = vmatprep.mubr.f32.mxu0 0.0
      %2544 = vmatmul.mubr.f32.gmra.mrb[0].mxu0 %v2343
      %v2545 = vpop.f32.mrb[0].mxu0
      %v2546 = vadd.f32 0.0, %v2545
      %v2547 = vpop.f32.mrb[0].mxu0
      %v2548 = vadd.f32 0.0, %v2547
      %2549 = vmatprep.mubr.f32.mxu0 0.0
      %2550 = vmatmul.mubr.f32.gmra.mrb[0].mxu0 %v2346
      %v2551 = vpop.f32.mrb[0].mxu0
      %v2552 = vadd.f32 0.0, %v2551
      %v2553 = vpop.f32.mrb[0].mxu0
      %v2554 = vadd.f32 0.0, %v2553
      %2555 = vmatprep.mubr.f32.mxu0 0.0
      %2556 = vmatmul.mubr.f32.gmra.mrb[0].mxu0 %v2349
      %v2557 = vpop.f32.mrb[0].mxu0
      %v2558 = vadd.f32 0.0, %v2557
      %v2559 = vpop.f32.mrb[0].mxu0
      %v2560 = vadd.f32 0.0, %v2559
      %2561 = vmatprep.mubr.f32.mxu0 0.0
      %2562 = vmatmul.mubr.f32.gmra.mrb[0].mxu0 %v2352
      %v2563 = vpop.f32.mrb[0].mxu0
      %v2564 = vadd.f32 0.0, %v2563
      %v2565 = vpop.f32.mrb[0].mxu0
      %v2566 = vadd.f32 0.0, %v2565
      %2567 = vmatprep.mubr.f32.mxu0 0.0
      %2568 = vmatmul.mubr.f32.gmra.mrb[0].mxu0 %v2355
      %v2569 = vpop.f32.mrb[0].mxu0
      %v2570 = vadd.f32 0.0, %v2569
      %v2571 = vpop.f32.mrb[0].mxu0
      %v2572 = vadd.f32 0.0, %v2571
      %2573 = vmatprep.mubr.f32.mxu0 0.0
      %2574 = vmatmul.mubr.f32.gmra.mrb[0].mxu0 %v2358
      %v2575 = vpop.f32.mrb[0].mxu0
      %v2576 = vadd.f32 0.0, %v2575
      %v2577 = vpop.f32.mrb[0].mxu0
      %v2578 = vadd.f32 0.0, %v2577
      %2579 = vmatprep.mubr.f32.mxu0 0.0
      %2580 = vmatmul.mubr.f32.gmra.mrb[0].mxu0 %v2361
      %v2581 = vpop.f32.mrb[0].mxu0
      %v2582 = vadd.f32 0.0, %v2581
      %v2583 = vpop.f32.mrb[0].mxu0
      %v2584 = vadd.f32 0.0, %v2583
      %2585 = vmatprep.mubr.f32.mxu0 0.0
      %2586 = vmatmul.mubr.f32.gmra.mrb[0].mxu0 %v2364
      %v2587 = vpop.f32.mrb[0].mxu0
      %v2588 = vadd.f32 0.0, %v2587
      %v2589 = vpop.f32.mrb[0].mxu0
      %v2590 = vadd.f32 0.0, %v2589
      %2591 = vdwg.mxu0
      %v2592 = vmax.f32 %v2433, %v2439
      %v2593 = vmax.f32 %v2592, %v2445
      %v2594 = vmax.f32 %v2593, %v2451
      %v2595 = vmax.f32 %v2594, %v2457
      %v2596 = vmax.f32 %v2595, %v2463
      %v2597 = vmax.f32 %v2596, %v2469
      %v2598 = vmax.f32 %v2597, %v2475
      %v2599 = vrot.slane %v2598, 4
      %v2600 = vmax.f32 %v2598, %v2599
      %v2601 = vrot.slane %v2600, 2
      %v2602 = vmax.f32 %v2600, %v2601
      %v2603 = vrot.slane %v2602, 1
      %v2604 = vmax.f32 %v2602, %v2603
      %v2605 = vmax.f32 %v2435, %v2441
      %v2606 = vmax.f32 %v2605, %v2447
      %v2607 = vmax.f32 %v2606, %v2453
      %v2608 = vmax.f32 %v2607, %v2459
      %v2609 = vmax.f32 %v2608, %v2465
      %v2610 = vmax.f32 %v2609, %v2471
      %v2611 = vmax.f32 %v2610, %v2477
      %v2612 = vrot.slane %v2611, 4
      %v2613 = vmax.f32 %v2611, %v2612
      %v2614 = vrot.slane %v2613, 2
      %v2615 = vmax.f32 %v2613, %v2614
      %v2616 = vrot.slane %v2615, 1
      %v2617 = vmax.f32 %v2615, %v2616
      %v2618 = vmax.f32 %v2546, %v2552
      %v2619 = vmax.f32 %v2618, %v2558
      %v2620 = vmax.f32 %v2619, %v2564
      %v2621 = vmax.f32 %v2620, %v2570
      %v2622 = vmax.f32 %v2621, %v2576
      %v2623 = vmax.f32 %v2622, %v2582
      %v2624 = vmax.f32 %v2623, %v2588
      %v2625 = vrot.slane %v2624, 4
      %v2626 = vmax.f32 %v2624, %v2625
      %v2627 = vrot.slane %v2626, 2
      %v2628 = vmax.f32 %v2626, %v2627
      %v2629 = vrot.slane %v2628, 1
      %v2630 = vmax.f32 %v2628, %v2629
      %v2631 = vmax.f32 %v2548, %v2554
      %v2632 = vmax.f32 %v2631, %v2560
      %v2633 = vmax.f32 %v2632, %v2566
      %v2634 = vmax.f32 %v2633, %v2572
      %v2635 = vmax.f32 %v2634, %v2578
      %v2636 = vmax.f32 %v2635, %v2584
      %v2637 = vmax.f32 %v2636, %v2590
      %v2638 = vrot.slane %v2637, 4
      %v2639 = vmax.f32 %v2637, %v2638
      %v2640 = vrot.slane %v2639, 2
      %v2641 = vmax.f32 %v2639, %v2640
      %v2642 = vrot.slane %v2641, 1
      %v2643 = vmax.f32 %v2641, %v2642
      %v2644 = vsub.f32 %v2433, %v2604
      %v2645 = vsub.f32 %v2435, %v2617
      %v2646 = vsub.f32 %v2546, %v2630
      %v2647 = vsub.f32 %v2548, %v2643
      %v2648 = vsub.f32 %v2439, %v2604
      %v2649 = vsub.f32 %v2441, %v2617
      %v2650 = vsub.f32 %v2552, %v2630
      %v2651 = vsub.f32 %v2554, %v2643
      %v2652 = vsub.f32 %v2445, %v2604
      %v2653 = vsub.f32 %v2447, %v2617
      %v2654 = vsub.f32 %v2558, %v2630
      %v2655 = vsub.f32 %v2560, %v2643
      %v2656 = vsub.f32 %v2451, %v2604
      %v2657 = vsub.f32 %v2453, %v2617
      %v2658 = vsub.f32 %v2564, %v2630
      %v2659 = vsub.f32 %v2566, %v2643
      %v2660 = vsub.f32 %v2457, %v2604
      %v2661 = vsub.f32 %v2459, %v2617
      %v2662 = vsub.f32 %v2570, %v2630
      %v2663 = vsub.f32 %v2572, %v2643
      %v2664 = vsub.f32 %v2463, %v2604
      %v2665 = vsub.f32 %v2465, %v2617
      %v2666 = vsub.f32 %v2576, %v2630
      %v2667 = vsub.f32 %v2578, %v2643
      %v2668 = vsub.f32 %v2469, %v2604
      %v2669 = vsub.f32 %v2471, %v2617
      %v2670 = vsub.f32 %v2582, %v2630
      %v2671 = vsub.f32 %v2584, %v2643
      %v2672 = vsub.f32 %v2475, %v2604
      %v2673 = vsub.f32 %v2477, %v2617
      %v2674 = vsub.f32 %v2588, %v2630
      %v2675 = vsub.f32 %v2590, %v2643
      %v2676 = vmul.f32 %v2644, 1.442695
      %v2677 = vpow.pop %v2676
      %v2678 = vmul.f32 %v2645, 1.442695
      %v2679 = vpow.pop %v2678
      %v2680 = vmul.f32 %v2646, 1.442695
      %v2681 = vpow.pop %v2680
      %v2682 = vmul.f32 %v2647, 1.442695
      %v2683 = vpow.pop %v2682
      %v2684 = vmul.f32 %v2648, 1.442695
      %v2685 = vpow.pop %v2684
      %v2686 = vmul.f32 %v2649, 1.442695
      %v2687 = vpow.pop %v2686
      %v2688 = vmul.f32 %v2650, 1.442695
      %v2689 = vpow.pop %v2688
      %v2690 = vmul.f32 %v2651, 1.442695
      %v2691 = vpow.pop %v2690
      %v2692 = vmul.f32 %v2652, 1.442695
      %v2693 = vpow.pop %v2692
      %v2694 = vmul.f32 %v2653, 1.442695
      %v2695 = vpow.pop %v2694
      %v2696 = vmul.f32 %v2654, 1.442695
      %v2697 = vpow.pop %v2696
      %v2698 = vmul.f32 %v2655, 1.442695
      %v2699 = vpow.pop %v2698
      %v2700 = vmul.f32 %v2656, 1.442695
      %v2701 = vpow.pop %v2700
      %v2702 = vmul.f32 %v2657, 1.442695
      %v2703 = vpow.pop %v2702
      %v2704 = vmul.f32 %v2658, 1.442695
      %v2705 = vpow.pop %v2704
      %v2706 = vmul.f32 %v2659, 1.442695
      %v2707 = vpow.pop %v2706
      %v2708 = vmul.f32 %v2660, 1.442695
      %v2709 = vpow.pop %v2708
      %v2710 = vmul.f32 %v2661, 1.442695
      %v2711 = vpow.pop %v2710
      %v2712 = vmul.f32 %v2662, 1.442695
      %v2713 = vpow.pop %v2712
      %v2714 = vmul.f32 %v2663, 1.442695
      %v2715 = vpow.pop %v2714
      %v2716 = vmul.f32 %v2664, 1.442695
      %v2717 = vpow.pop %v2716
      %v2718 = vmul.f32 %v2665, 1.442695
      %v2719 = vpow.pop %v2718
      %v2720 = vmul.f32 %v2666, 1.442695
      %v2721 = vpow.pop %v2720
      %v2722 = vmul.f32 %v2667, 1.442695
      %v2723 = vpow.pop %v2722
      %v2724 = vmul.f32 %v2668, 1.442695
      %v2725 = vpow.pop %v2724
      %v2726 = vmul.f32 %v2669, 1.442695
      %v2727 = vpow.pop %v2726
      %v2728 = vmul.f32 %v2670, 1.442695
      %v2729 = vpow.pop %v2728
      %v2730 = vmul.f32 %v2671, 1.442695
      %v2731 = vpow.pop %v2730
      %v2732 = vmul.f32 %v2672, 1.442695
      %v2733 = vpow.pop %v2732
      %v2734 = vmul.f32 %v2673, 1.442695
      %v2735 = vpow.pop %v2734
      %v2736 = vmul.f32 %v2674, 1.442695
      %v2737 = vpow.pop %v2736
      %v2738 = vmul.f32 %v2675, 1.442695
      %v2739 = vpow.pop %v2738
      %v2740 = vadd.f32 %v2677, %v2685
      %v2741 = vadd.f32 %v2740, %v2693
      %v2742 = vadd.f32 %v2741, %v2701
      %v2743 = vadd.f32 %v2742, %v2709
      %v2744 = vadd.f32 %v2743, %v2717
      %v2745 = vadd.f32 %v2744, %v2725
      %v2746 = vadd.f32 %v2745, %v2733
      %v2747 = vrot.slane %v2746, 4
      %v2748 = vadd.f32 %v2746, %v2747
      %v2749 = vrot.slane %v2748, 2
      %v2750 = vadd.f32 %v2748, %v2749
      %v2751 = vrot.slane %v2750, 1
      %v2752 = vadd.f32 %v2750, %v2751
      %v2753 = vadd.f32 %v2679, %v2687
      %v2754 = vadd.f32 %v2753, %v2695
      %v2755 = vadd.f32 %v2754, %v2703
      %v2756 = vadd.f32 %v2755, %v2711
      %v2757 = vadd.f32 %v2756, %v2719
      %v2758 = vadd.f32 %v2757, %v2727
      %v2759 = vadd.f32 %v2758, %v2735
      %v2760 = vrot.slane %v2759, 4
      %v2761 = vadd.f32 %v2759, %v2760
      %v2762 = vrot.slane %v2761, 2
      %v2763 = vadd.f32 %v2761, %v2762
      %v2764 = vrot.slane %v2763, 1
      %v2765 = vadd.f32 %v2763, %v2764
      %v2766 = vadd.f32 %v2681, %v2689
      %v2767 = vadd.f32 %v2766, %v2697
      %v2768 = vadd.f32 %v2767, %v2705
      %v2769 = vadd.f32 %v2768, %v2713
      %v2770 = vadd.f32 %v2769, %v2721
      %v2771 = vadd.f32 %v2770, %v2729
      %v2772 = vadd.f32 %v2771, %v2737
      %v2773 = vrot.slane %v2772, 4
      %v2774 = vadd.f32 %v2772, %v2773
      %v2775 = vrot.slane %v2774, 2
      %v2776 = vadd.f32 %v2774, %v2775
      %v2777 = vrot.slane %v2776, 1
      %v2778 = vadd.f32 %v2776, %v2777
      %v2779 = vadd.f32 %v2683, %v2691
      %v2780 = vadd.f32 %v2779, %v2699
      %v2781 = vadd.f32 %v2780, %v2707
      %v2782 = vadd.f32 %v2781, %v2715
      %v2783 = vadd.f32 %v2782, %v2723
      %v2784 = vadd.f32 %v2783, %v2731
      %v2785 = vadd.f32 %v2784, %v2739
      %v2786 = vrot.slane %v2785, 4
      %v2787 = vadd.f32 %v2785, %v2786
      %v2788 = vrot.slane %v2787, 2
      %v2789 = vadd.f32 %v2787, %v2788
      %v2790 = vrot.slane %v2789, 1
      %v2791 = vadd.f32 %v2789, %v2790
      %v2792 = vrcp.pop %v2752
      %v2793 = vmul.f32 %v2677, %v2792
      %v2794 = vrcp.pop %v2765
      %v2795 = vmul.f32 %v2679, %v2794
      %v2796 = vrcp.pop %v2778
      %v2797 = vmul.f32 %v2681, %v2796
      %v2798 = vrcp.pop %v2791
      %v2799 = vmul.f32 %v2683, %v2798
      %v2800 = vmul.f32 %v2685, %v2792
      %v2801 = vmul.f32 %v2687, %v2794
      %v2802 = vmul.f32 %v2689, %v2796
      %v2803 = vmul.f32 %v2691, %v2798
      %v2804 = vmul.f32 %v2693, %v2792
      %v2805 = vmul.f32 %v2695, %v2794
      %v2806 = vmul.f32 %v2697, %v2796
      %v2807 = vmul.f32 %v2699, %v2798
      %v2808 = vmul.f32 %v2701, %v2792
      %v2809 = vmul.f32 %v2703, %v2794
      %v2810 = vmul.f32 %v2705, %v2796
      %v2811 = vmul.f32 %v2707, %v2798
      %v2812 = vmul.f32 %v2709, %v2792
      %v2813 = vmul.f32 %v2711, %v2794
      %v2814 = vmul.f32 %v2713, %v2796
      %v2815 = vmul.f32 %v2715, %v2798
      %v2816 = vmul.f32 %v2717, %v2792
      %v2817 = vmul.f32 %v2719, %v2794
      %v2818 = vmul.f32 %v2721, %v2796
      %v2819 = vmul.f32 %v2723, %v2798
      %v2820 = vmul.f32 %v2725, %v2792
      %v2821 = vmul.f32 %v2727, %v2794
      %v2822 = vmul.f32 %v2729, %v2796
      %v2823 = vmul.f32 %v2731, %v2798
      %v2824 = vmul.f32 %v2733, %v2792
      %v2825 = vmul.f32 %v2735, %v2794
      %v2826 = vmul.f32 %v2737, %v2796
      %v2827 = vmul.f32 %v2739, %v2798
      %v2829 = vsel %vm335, %v1255, 0
      %v2832 = vsel %vm335, %v1260, 0
      %2834 = vmatprep.subr.mxu0 %v2795
      %2835 = vmatpush1.msra.mxu0 %v2793
      %2836 = vmatprep.subr.mxu0 %v2801
      %2837 = vmatpush1.msra.mxu0 %v2800
      %2838 = vmatprep.subr.mxu0 %v2805
      %2839 = vmatpush1.msra.mxu0 %v2804
      %2840 = vmatprep.subr.mxu0 %v2809
      %2841 = vmatpush1.msra.mxu0 %v2808
      %2842 = vmatprep.subr.mxu0 %v2813
      %2843 = vmatpush1.msra.mxu0 %v2812
      %2844 = vmatprep.subr.mxu0 %v2817
      %2845 = vmatpush1.msra.mxu0 %v2816
      %2846 = vmatprep.subr.mxu0 %v2821
      %2847 = vmatpush1.msra.mxu0 %v2820
      %2848 = vmatprep.subr.mxu0 %v2825
      %2849 = vmatpush1.msra.mxu0 %v2824
      %2850 = vmatprep.subr.mxu0 0.0
      %2851 = vmatpush1.msra.mxu0 0.0
      %2852 = vmatprep.subr.mxu0 0.0
      %2853 = vmatpush1.msra.mxu0 0.0
      %2854 = vmatprep.subr.mxu0 0.0
      %2855 = vmatpush1.msra.mxu0 0.0
      %2856 = vmatprep.subr.mxu0 0.0
      %2857 = vmatpush1.msra.mxu0 0.0
      %2858 = vmatprep.subr.mxu0 0.0
      %2859 = vmatpush1.msra.mxu0 0.0
      %2860 = vmatprep.subr.mxu0 0.0
      %2861 = vmatpush1.msra.mxu0 0.0
      %2862 = vmatprep.subr.mxu0 0.0
      %2863 = vmatpush1.msra.mxu0 0.0
      %2864 = vmatprep.subr.mxu0 0.0
      %2865 = vmatpush1.msra.mxu0 0.0
      %2866 = vmatprep.subr.mxu0 0.0
      %2867 = vmatpush1.msra.mxu0 0.0
      %2868 = vmatprep.subr.mxu0 0.0
      %2869 = vmatpush1.msra.mxu0 0.0
      %2870 = vmatprep.subr.mxu0 0.0
      %2871 = vmatpush1.msra.mxu0 0.0
      %2872 = vmatprep.subr.mxu0 0.0
      %2873 = vmatpush1.msra.mxu0 0.0
      %2874 = vmatprep.subr.mxu0 0.0
      %2875 = vmatpush1.msra.mxu0 0.0
      %2876 = vmatprep.subr.mxu0 0.0
      %2877 = vmatpush1.msra.mxu0 0.0
      %2878 = vmatprep.subr.mxu0 0.0
      %2879 = vmatpush1.msra.mxu0 0.0
      %2880 = vmatprep.subr.mxu0 0.0
      %2881 = vmatpush1.msra.mxu0 0.0
      %2882 = vmatprep.subr.mxu0 0.0
      %2883 = vmatpush1.msra.mxu0 0.0
      %2884 = vmatprep.subr.mxu0 0.0
      %2885 = vmatpush1.msra.mxu0 0.0
      %2886 = vmatprep.subr.mxu0 0.0
      %2887 = vmatpush1.msra.mxu0 0.0
      %2888 = vmatprep.subr.mxu0 0.0
      %2889 = vmatpush1.msra.mxu0 0.0
      %2890 = vmatprep.subr.mxu0 0.0
      %2891 = vmatpush1.msra.mxu0 0.0
      %2892 = vmatprep.subr.mxu0 0.0
      %2893 = vmatpush1.msra.mxu0 0.0
      %2894 = vmatprep.subr.mxu0 0.0
      %2895 = vmatpush1.msra.mxu0 0.0
      %2896 = vmatprep.subr.mxu0 0.0
      %2897 = vmatpush1.msra.mxu0 0.0
      %2898 = vmatprep.mubr.f32.mxu0 0.0
      %2899 = vmatmul.mubr.f32.gmra.mrb[0].mxu0 %v2829
      %v2900 = vpop.f32.mrb[0].mxu0
      %v2901 = vadd.f32 0.0, %v2900
      %v2902 = vpop.f32.mrb[0].mxu0
      %v2903 = vadd.f32 0.0, %v2902
      %2904 = vmatprep.mubr.f32.mxu0 0.0
      %2905 = vmatmul.mubr.f32.gmra.mrb[0].mxu0 %v2832
      %v2906 = vpop.f32.mrb[0].mxu0
      %v2907 = vadd.f32 0.0, %v2906
      %v2908 = vpop.f32.mrb[0].mxu0
      %v2909 = vadd.f32 0.0, %v2908
      %2910 = vdwg.mxu0
      %2911 = vmatprep.subr.mxu0 %v2799
      %2912 = vmatpush1.msra.mxu0 %v2797
      %2913 = vmatprep.subr.mxu0 %v2803
      %2914 = vmatpush1.msra.mxu0 %v2802
      %2915 = vmatprep.subr.mxu0 %v2807
      %2916 = vmatpush1.msra.mxu0 %v2806
      %2917 = vmatprep.subr.mxu0 %v2811
      %2918 = vmatpush1.msra.mxu0 %v2810
      %2919 = vmatprep.subr.mxu0 %v2815
      %2920 = vmatpush1.msra.mxu0 %v2814
      %2921 = vmatprep.subr.mxu0 %v2819
      %2922 = vmatpush1.msra.mxu0 %v2818
      %2923 = vmatprep.subr.mxu0 %v2823
      %2924 = vmatpush1.msra.mxu0 %v2822
      %2925 = vmatprep.subr.mxu0 %v2827
      %2926 = vmatpush1.msra.mxu0 %v2826
      %2927 = vmatprep.subr.mxu0 0.0
      %2928 = vmatpush1.msra.mxu0 0.0
      %2929 = vmatprep.subr.mxu0 0.0
      %2930 = vmatpush1.msra.mxu0 0.0
      %2931 = vmatprep.subr.mxu0 0.0
      %2932 = vmatpush1.msra.mxu0 0.0
      %2933 = vmatprep.subr.mxu0 0.0
      %2934 = vmatpush1.msra.mxu0 0.0
      %2935 = vmatprep.subr.mxu0 0.0
      %2936 = vmatpush1.msra.mxu0 0.0
      %2937 = vmatprep.subr.mxu0 0.0
      %2938 = vmatpush1.msra.mxu0 0.0
      %2939 = vmatprep.subr.mxu0 0.0
      %2940 = vmatpush1.msra.mxu0 0.0
      %2941 = vmatprep.subr.mxu0 0.0
      %2942 = vmatpush1.msra.mxu0 0.0
      %2943 = vmatprep.subr.mxu0 0.0
      %2944 = vmatpush1.msra.mxu0 0.0
      %2945 = vmatprep.subr.mxu0 0.0
      %2946 = vmatpush1.msra.mxu0 0.0
      %2947 = vmatprep.subr.mxu0 0.0
      %2948 = vmatpush1.msra.mxu0 0.0
      %2949 = vmatprep.subr.mxu0 0.0
      %2950 = vmatpush1.msra.mxu0 0.0
      %2951 = vmatprep.subr.mxu0 0.0
      %2952 = vmatpush1.msra.mxu0 0.0
      %2953 = vmatprep.subr.mxu0 0.0
      %2954 = vmatpush1.msra.mxu0 0.0
      %2955 = vmatprep.subr.mxu0 0.0
      %2956 = vmatpush1.msra.mxu0 0.0
      %2957 = vmatprep.subr.mxu0 0.0
      %2958 = vmatpush1.msra.mxu0 0.0
      %2959 = vmatprep.subr.mxu0 0.0
      %2960 = vmatpush1.msra.mxu0 0.0
      %2961 = vmatprep.subr.mxu0 0.0
      %2962 = vmatpush1.msra.mxu0 0.0
      %2963 = vmatprep.subr.mxu0 0.0
      %2964 = vmatpush1.msra.mxu0 0.0
      %2965 = vmatprep.subr.mxu0 0.0
      %2966 = vmatpush1.msra.mxu0 0.0
      %2967 = vmatprep.subr.mxu0 0.0
      %2968 = vmatpush1.msra.mxu0 0.0
      %2969 = vmatprep.subr.mxu0 0.0
      %2970 = vmatpush1.msra.mxu0 0.0
      %2971 = vmatprep.subr.mxu0 0.0
      %2972 = vmatpush1.msra.mxu0 0.0
      %2973 = vmatprep.subr.mxu0 0.0
      %2974 = vmatpush1.msra.mxu0 0.0
      %2975 = vmatprep.mubr.f32.mxu0 0.0
      %2976 = vmatmul.mubr.f32.gmra.mrb[0].mxu0 %v2829
      %v2977 = vpop.f32.mrb[0].mxu0
      %v2978 = vadd.f32 0.0, %v2977
      %v2979 = vpop.f32.mrb[0].mxu0
      %v2980 = vadd.f32 0.0, %v2979
      %2981 = vmatprep.mubr.f32.mxu0 0.0
      %2982 = vmatmul.mubr.f32.gmra.mrb[0].mxu0 %v2832
      %v2983 = vpop.f32.mrb[0].mxu0
      %v2984 = vadd.f32 0.0, %v2983
      %v2985 = vpop.f32.mrb[0].mxu0
      %v2986 = vadd.f32 0.0, %v2985
      %2987 = vdwg.mxu0
      %2989 = vrot.lane.b32.xlu0 %v1263, 112
      %v2990 = vpop.permute.xlu0 %2989
      %v2991 = vsel %vm1297, %v2990, 0
      %2993 = vmatprep.subr.mxu0 %v2903
      %2994 = vmatpush1.msra.mxu0 %v2901
      %2995 = vmatprep.subr.mxu0 %v2909
      %2996 = vmatpush1.msra.mxu0 %v2907
      %2997 = vmatprep.subr.mxu0 0.0
      %2998 = vmatpush1.msra.mxu0 0.0
      %2999 = vmatprep.subr.mxu0 0.0
      %3000 = vmatpush1.msra.mxu0 0.0
      %3001 = vmatprep.subr.mxu0 0.0
      %3002 = vmatpush1.msra.mxu0 0.0
      %3003 = vmatprep.subr.mxu0 0.0
      %3004 = vmatpush1.msra.mxu0 0.0
      %3005 = vmatprep.subr.mxu0 0.0
      %3006 = vmatpush1.msra.mxu0 0.0
      %3007 = vmatprep.subr.mxu0 0.0
      %3008 = vmatpush1.msra.mxu0 0.0
      %3009 = vmatprep.subr.mxu0 0.0
      %3010 = vmatpush1.msra.mxu0 0.0
      %3011 = vmatprep.subr.mxu0 0.0
      %3012 = vmatpush1.msra.mxu0 0.0
      %3013 = vmatprep.subr.mxu0 0.0
      %3014 = vmatpush1.msra.mxu0 0.0
      %3015 = vmatprep.subr.mxu0 0.0
      %3016 = vmatpush1.msra.mxu0 0.0
      %3017 = vmatprep.subr.mxu0 0.0
      %3018 = vmatpush1.msra.mxu0 0.0
      %3019 = vmatprep.subr.mxu0 0.0
      %3020 = vmatpush1.msra.mxu0 0.0
      %3021 = vmatprep.subr.mxu0 0.0
      %3022 = vmatpush1.msra.mxu0 0.0
      %3023 = vmatprep.subr.mxu0 0.0
      %3024 = vmatpush1.msra.mxu0 0.0
      %3025 = vmatprep.subr.mxu0 0.0
      %3026 = vmatpush1.msra.mxu0 0.0
      %3027 = vmatprep.subr.mxu0 0.0
      %3028 = vmatpush1.msra.mxu0 0.0
      %3029 = vmatprep.subr.mxu0 0.0
      %3030 = vmatpush1.msra.mxu0 0.0
      %3031 = vmatprep.subr.mxu0 0.0
      %3032 = vmatpush1.msra.mxu0 0.0
      %3033 = vmatprep.subr.mxu0 0.0
      %3034 = vmatpush1.msra.mxu0 0.0
      %3035 = vmatprep.subr.mxu0 0.0
      %3036 = vmatpush1.msra.mxu0 0.0
      %3037 = vmatprep.subr.mxu0 0.0
      %3038 = vmatpush1.msra.mxu0 0.0
      %3039 = vmatprep.subr.mxu0 0.0
      %3040 = vmatpush1.msra.mxu0 0.0
      %3041 = vmatprep.subr.mxu0 0.0
      %3042 = vmatpush1.msra.mxu0 0.0
      %3043 = vmatprep.subr.mxu0 0.0
      %3044 = vmatpush1.msra.mxu0 0.0
      %3045 = vmatprep.subr.mxu0 0.0
      %3046 = vmatpush1.msra.mxu0 0.0
      %3047 = vmatprep.subr.mxu0 0.0
      %3048 = vmatpush1.msra.mxu0 0.0
      %3049 = vmatprep.subr.mxu0 0.0
      %3050 = vmatpush1.msra.mxu0 0.0
      %3051 = vmatprep.subr.mxu0 0.0
      %3052 = vmatpush1.msra.mxu0 0.0
      %3053 = vmatprep.subr.mxu0 0.0
      %3054 = vmatpush1.msra.mxu0 0.0
      %3055 = vmatprep.subr.mxu0 0.0
      %3056 = vmatpush1.msra.mxu0 0.0
      %3057 = vmatprep.mubr.f32.mxu0 0.0
      %3058 = vmatmul.mubr.f32.gmra.mrb[0].mxu0 %v2991
      %v3059 = vpop.f32.mrb[0].mxu0
      %v3060 = vadd.f32 0.0, %v3059
      %v3061 = vpop.f32.mrb[0].mxu0
      %v3062 = vadd.f32 0.0, %v3061
      %3063 = vdwg.mxu0
      %3064 = vmatprep.subr.mxu0 %v2980
      %3065 = vmatpush1.msra.mxu0 %v2978
      %3066 = vmatprep.subr.mxu0 %v2986
      %3067 = vmatpush1.msra.mxu0 %v2984
      %3068 = vmatprep.subr.mxu0 0.0
      %3069 = vmatpush1.msra.mxu0 0.0
      %3070 = vmatprep.subr.mxu0 0.0
      %3071 = vmatpush1.msra.mxu0 0.0
      %3072 = vmatprep.subr.mxu0 0.0
      %3073 = vmatpush1.msra.mxu0 0.0
      %3074 = vmatprep.subr.mxu0 0.0
      %3075 = vmatpush1.msra.mxu0 0.0
      %3076 = vmatprep.subr.mxu0 0.0
      %3077 = vmatpush1.msra.mxu0 0.0
      %3078 = vmatprep.subr.mxu0 0.0
      %3079 = vmatpush1.msra.mxu0 0.0
      %3080 = vmatprep.subr.mxu0 0.0
      %3081 = vmatpush1.msra.mxu0 0.0
      %3082 = vmatprep.subr.mxu0 0.0
      %3083 = vmatpush1.msra.mxu0 0.0
      %3084 = vmatprep.subr.mxu0 0.0
      %3085 = vmatpush1.msra.mxu0 0.0
      %3086 = vmatprep.subr.mxu0 0.0
      %3087 = vmatpush1.msra.mxu0 0.0
      %3088 = vmatprep.subr.mxu0 0.0
      %3089 = vmatpush1.msra.mxu0 0.0
      %3090 = vmatprep.subr.mxu0 0.0
      %3091 = vmatpush1.msra.mxu0 0.0
      %3092 = vmatprep.subr.mxu0 0.0
      %3093 = vmatpush1.msra.mxu0 0.0
      %3094 = vmatprep.subr.mxu0 0.0
      %3095 = vmatpush1.msra.mxu0 0.0
      %3096 = vmatprep.subr.mxu0 0.0
      %3097 = vmatpush1.msra.mxu0 0.0
      %3098 = vmatprep.subr.mxu0 0.0
      %3099 = vmatpush1.msra.mxu0 0.0
      %3100 = vmatprep.subr.mxu0 0.0
      %3101 = vmatpush1.msra.mxu0 0.0
      %3102 = vmatprep.subr.mxu0 0.0
      %3103 = vmatpush1.msra.mxu0 0.0
      %3104 = vmatprep.subr.mxu0 0.0
      %3105 = vmatpush1.msra.mxu0 0.0
      %3106 = vmatprep.subr.mxu0 0.0
      %3107 = vmatpush1.msra.mxu0 0.0
      %3108 = vmatprep.subr.mxu0 0.0
      %3109 = vmatpush1.msra.mxu0 0.0
      %3110 = vmatprep.subr.mxu0 0.0
      %3111 = vmatpush1.msra.mxu0 0.0
      %3112 = vmatprep.subr.mxu0 0.0
      %3113 = vmatpush1.msra.mxu0 0.0
      %3114 = vmatprep.subr.mxu0 0.0
      %3115 = vmatpush1.msra.mxu0 0.0
      %3116 = vmatprep.subr.mxu0 0.0
      %3117 = vmatpush1.msra.mxu0 0.0
      %3118 = vmatprep.subr.mxu0 0.0
      %3119 = vmatpush1.msra.mxu0 0.0
      %3120 = vmatprep.subr.mxu0 0.0
      %3121 = vmatpush1.msra.mxu0 0.0
      %3122 = vmatprep.subr.mxu0 0.0
      %3123 = vmatpush1.msra.mxu0 0.0
      %3124 = vmatprep.subr.mxu0 0.0
      %3125 = vmatpush1.msra.mxu0 0.0
      %3126 = vmatprep.subr.mxu0 0.0
      %3127 = vmatpush1.msra.mxu0 0.0
      %3128 = vmatprep.mubr.f32.mxu0 0.0
      %3129 = vmatmul.mubr.f32.gmra.mrb[0].mxu0 %v2991
      %v3130 = vpop.f32.mrb[0].mxu0
      %v3131 = vadd.f32 0.0, %v3130
      %v3132 = vpop.f32.mrb[0].mxu0
      %v3133 = vadd.f32 0.0, %v3132
      %3134 = vdwg.mxu0
      %v3135 = vsel %vm1297, %v1263, 0
      %3137 = vmatprep.subr.mxu0 %v1859
      %3138 = vmatpush1.msra.mxu0 %v1857
      %3139 = vmatprep.subr.mxu0 %v1865
      %3140 = vmatpush1.msra.mxu0 %v1863
      %3141 = vmatprep.subr.mxu0 0.0
      %3142 = vmatpush1.msra.mxu0 0.0
      %3143 = vmatprep.subr.mxu0 0.0
      %3144 = vmatpush1.msra.mxu0 0.0
      %3145 = vmatprep.subr.mxu0 0.0
      %3146 = vmatpush1.msra.mxu0 0.0
      %3147 = vmatprep.subr.mxu0 0.0
      %3148 = vmatpush1.msra.mxu0 0.0
      %3149 = vmatprep.subr.mxu0 0.0
      %3150 = vmatpush1.msra.mxu0 0.0
      %3151 = vmatprep.subr.mxu0 0.0
      %3152 = vmatpush1.msra.mxu0 0.0
      %3153 = vmatprep.subr.mxu0 0.0
      %3154 = vmatpush1.msra.mxu0 0.0
      %3155 = vmatprep.subr.mxu0 0.0
      %3156 = vmatpush1.msra.mxu0 0.0
      %3157 = vmatprep.subr.mxu0 0.0
      %3158 = vmatpush1.msra.mxu0 0.0
      %3159 = vmatprep.subr.mxu0 0.0
      %3160 = vmatpush1.msra.mxu0 0.0
      %3161 = vmatprep.subr.mxu0 0.0
      %3162 = vmatpush1.msra.mxu0 0.0
      %3163 = vmatprep.subr.mxu0 0.0
      %3164 = vmatpush1.msra.mxu0 0.0
      %3165 = vmatprep.subr.mxu0 0.0
      %3166 = vmatpush1.msra.mxu0 0.0
      %3167 = vmatprep.subr.mxu0 0.0
      %3168 = vmatpush1.msra.mxu0 0.0
      %3169 = vmatprep.subr.mxu0 0.0
      %3170 = vmatpush1.msra.mxu0 0.0
      %3171 = vmatprep.subr.mxu0 0.0
      %3172 = vmatpush1.msra.mxu0 0.0
      %3173 = vmatprep.subr.mxu0 0.0
      %3174 = vmatpush1.msra.mxu0 0.0
      %3175 = vmatprep.subr.mxu0 0.0
      %3176 = vmatpush1.msra.mxu0 0.0
      %3177 = vmatprep.subr.mxu0 0.0
      %3178 = vmatpush1.msra.mxu0 0.0
      %3179 = vmatprep.subr.mxu0 0.0
      %3180 = vmatpush1.msra.mxu0 0.0
      %3181 = vmatprep.subr.mxu0 0.0
      %3182 = vmatpush1.msra.mxu0 0.0
      %3183 = vmatprep.subr.mxu0 0.0
      %3184 = vmatpush1.msra.mxu0 0.0
      %3185 = vmatprep.subr.mxu0 0.0
      %3186 = vmatpush1.msra.mxu0 0.0
      %3187 = vmatprep.subr.mxu0 0.0
      %3188 = vmatpush1.msra.mxu0 0.0
      %3189 = vmatprep.subr.mxu0 0.0
      %3190 = vmatpush1.msra.mxu0 0.0
      %3191 = vmatprep.subr.mxu0 0.0
      %3192 = vmatpush1.msra.mxu0 0.0
      %3193 = vmatprep.subr.mxu0 0.0
      %3194 = vmatpush1.msra.mxu0 0.0
      %3195 = vmatprep.subr.mxu0 0.0
      %3196 = vmatpush1.msra.mxu0 0.0
      %3197 = vmatprep.subr.mxu0 0.0
      %3198 = vmatpush1.msra.mxu0 0.0
      %3199 = vmatprep.subr.mxu0 0.0
      %3200 = vmatpush1.msra.mxu0 0.0
      %3201 = vmatprep.mubr.f32.mxu0 0.0
      %3202 = vmatmul.mubr.f32.gmra.mrb[0].mxu0 %v3135
      %v3203 = vpop.f32.mrb[0].mxu0
      %v3204 = vadd.f32 %v3060, %v3203
      %v3205 = vpop.f32.mrb[0].mxu0
      %v3206 = vadd.f32 %v3062, %v3205
      %3207 = vdwg.mxu0
      %3208 = vmatprep.subr.mxu0 %v1936
      %3209 = vmatpush1.msra.mxu0 %v1934
      %3210 = vmatprep.subr.mxu0 %v1942
      %3211 = vmatpush1.msra.mxu0 %v1940
      %3212 = vmatprep.subr.mxu0 0.0
      %3213 = vmatpush1.msra.mxu0 0.0
      %3214 = vmatprep.subr.mxu0 0.0
      %3215 = vmatpush1.msra.mxu0 0.0
      %3216 = vmatprep.subr.mxu0 0.0
      %3217 = vmatpush1.msra.mxu0 0.0
      %3218 = vmatprep.subr.mxu0 0.0
      %3219 = vmatpush1.msra.mxu0 0.0
      %3220 = vmatprep.subr.mxu0 0.0
      %3221 = vmatpush1.msra.mxu0 0.0
      %3222 = vmatprep.subr.mxu0 0.0
      %3223 = vmatpush1.msra.mxu0 0.0
      %3224 = vmatprep.subr.mxu0 0.0
      %3225 = vmatpush1.msra.mxu0 0.0
      %3226 = vmatprep.subr.mxu0 0.0
      %3227 = vmatpush1.msra.mxu0 0.0
      %3228 = vmatprep.subr.mxu0 0.0
      %3229 = vmatpush1.msra.mxu0 0.0
      %3230 = vmatprep.subr.mxu0 0.0
      %3231 = vmatpush1.msra.mxu0 0.0
      %3232 = vmatprep.subr.mxu0 0.0
      %3233 = vmatpush1.msra.mxu0 0.0
      %3234 = vmatprep.subr.mxu0 0.0
      %3235 = vmatpush1.msra.mxu0 0.0
      %3236 = vmatprep.subr.mxu0 0.0
      %3237 = vmatpush1.msra.mxu0 0.0
      %3238 = vmatprep.subr.mxu0 0.0
      %3239 = vmatpush1.msra.mxu0 0.0
      %3240 = vmatprep.subr.mxu0 0.0
      %3241 = vmatpush1.msra.mxu0 0.0
      %3242 = vmatprep.subr.mxu0 0.0
      %3243 = vmatpush1.msra.mxu0 0.0
      %3244 = vmatprep.subr.mxu0 0.0
      %3245 = vmatpush1.msra.mxu0 0.0
      %3246 = vmatprep.subr.mxu0 0.0
      %3247 = vmatpush1.msra.mxu0 0.0
      %3248 = vmatprep.subr.mxu0 0.0
      %3249 = vmatpush1.msra.mxu0 0.0
      %3250 = vmatprep.subr.mxu0 0.0
      %3251 = vmatpush1.msra.mxu0 0.0
      %3252 = vmatprep.subr.mxu0 0.0
      %3253 = vmatpush1.msra.mxu0 0.0
      %3254 = vmatprep.subr.mxu0 0.0
      %3255 = vmatpush1.msra.mxu0 0.0
      %3256 = vmatprep.subr.mxu0 0.0
      %3257 = vmatpush1.msra.mxu0 0.0
      %3258 = vmatprep.subr.mxu0 0.0
      %3259 = vmatpush1.msra.mxu0 0.0
      %3260 = vmatprep.subr.mxu0 0.0
      %3261 = vmatpush1.msra.mxu0 0.0
      %3262 = vmatprep.subr.mxu0 0.0
      %3263 = vmatpush1.msra.mxu0 0.0
      %3264 = vmatprep.subr.mxu0 0.0
      %3265 = vmatpush1.msra.mxu0 0.0
      %3266 = vmatprep.subr.mxu0 0.0
      %3267 = vmatpush1.msra.mxu0 0.0
      %3268 = vmatprep.subr.mxu0 0.0
      %3269 = vmatpush1.msra.mxu0 0.0
      %3270 = vmatprep.subr.mxu0 0.0
      %3271 = vmatpush1.msra.mxu0 0.0
      %3272 = vmatprep.mubr.f32.mxu0 0.0
      %3273 = vmatmul.mubr.f32.gmra.mrb[0].mxu0 %v3135
      %v3274 = vpop.f32.mrb[0].mxu0
      %v3275 = vadd.f32 %v3131, %v3274
      %v3276 = vpop.f32.mrb[0].mxu0
      %v3277 = vadd.f32 %v3133, %v3276
      %3278 = vdwg.mxu0
      %v3279 = vmax.f32 %v2433, %v2435
      %v3280 = vmax.f32 %v3279, %v2546
      %v3281 = vmax.f32 %v3280, %v2548
      %3282 = vmax.xlane.f32.xlu0 %v3281
      %v3283 = vpop.xlane.xlu0 %3282
      %v3284 = vmax.f32 %v2439, %v2441
      %v3285 = vmax.f32 %v3284, %v2552
      %v3286 = vmax.f32 %v3285, %v2554
      %3287 = vmax.xlane.f32.xlu0 %v3286
      %v3288 = vpop.xlane.xlu0 %3287
      %v3289 = vmax.f32 %v2445, %v2447
      %v3290 = vmax.f32 %v3289, %v2558
      %v3291 = vmax.f32 %v3290, %v2560
      %3292 = vmax.xlane.f32.xlu0 %v3291
      %v3293 = vpop.xlane.xlu0 %3292
      %v3294 = vmax.f32 %v2451, %v2453
      %v3295 = vmax.f32 %v3294, %v2564
      %v3296 = vmax.f32 %v3295, %v2566
      %3297 = vmax.xlane.f32.xlu0 %v3296
      %v3298 = vpop.xlane.xlu0 %3297
      %v3299 = vmax.f32 %v2457, %v2459
      %v3300 = vmax.f32 %v3299, %v2570
      %v3301 = vmax.f32 %v3300, %v2572
      %3302 = vmax.xlane.f32.xlu0 %v3301
      %v3303 = vpop.xlane.xlu0 %3302
      %v3304 = vmax.f32 %v2463, %v2465
      %v3305 = vmax.f32 %v3304, %v2576
      %v3306 = vmax.f32 %v3305, %v2578
      %3307 = vmax.xlane.f32.xlu0 %v3306
      %v3308 = vpop.xlane.xlu0 %3307
      %v3309 = vmax.f32 %v2469, %v2471
      %v3310 = vmax.f32 %v3309, %v2582
      %v3311 = vmax.f32 %v3310, %v2584
      %3312 = vmax.xlane.f32.xlu0 %v3311
      %v3313 = vpop.xlane.xlu0 %3312
      %v3314 = vmax.f32 %v2475, %v2477
      %v3315 = vmax.f32 %v3314, %v2588
      %v3316 = vmax.f32 %v3315, %v2590
      %3317 = vmax.xlane.f32.xlu0 %v3316
      %v3318 = vpop.xlane.xlu0 %3317
      %v3319 = vsub.f32 %v2433, %v3283
      %v3320 = vsub.f32 %v2435, %v3283
      %v3321 = vsub.f32 %v2546, %v3283
      %v3322 = vsub.f32 %v2548, %v3283
      %v3323 = vsub.f32 %v2439, %v3288
      %v3324 = vsub.f32 %v2441, %v3288
      %v3325 = vsub.f32 %v2552, %v3288
      %v3326 = vsub.f32 %v2554, %v3288
      %v3327 = vsub.f32 %v2445, %v3293
      %v3328 = vsub.f32 %v2447, %v3293
      %v3329 = vsub.f32 %v2558, %v3293
      %v3330 = vsub.f32 %v2560, %v3293
      %v3331 = vsub.f32 %v2451, %v3298
      %v3332 = vsub.f32 %v2453, %v3298
      %v3333 = vsub.f32 %v2564, %v3298
      %v3334 = vsub.f32 %v2566, %v3298
      %v3335 = vsub.f32 %v2457, %v3303
      %v3336 = vsub.f32 %v2459, %v3303
      %v3337 = vsub.f32 %v2570, %v3303
      %v3338 = vsub.f32 %v2572, %v3303
      %v3339 = vsub.f32 %v2463, %v3308
      %v3340 = vsub.f32 %v2465, %v3308
      %v3341 = vsub.f32 %v2576, %v3308
      %v3342 = vsub.f32 %v2578, %v3308
      %v3343 = vsub.f32 %v2469, %v3313
      %v3344 = vsub.f32 %v2471, %v3313
      %v3345 = vsub.f32 %v2582, %v3313
      %v3346 = vsub.f32 %v2584, %v3313
      %v3347 = vsub.f32 %v2475, %v3318
      %v3348 = vsub.f32 %v2477, %v3318
      %v3349 = vsub.f32 %v2588, %v3318
      %v3350 = vsub.f32 %v2590, %v3318
      %v3351 = vmul.f32 %v3319, 1.442695
      %v3352 = vpow.pop %v3351
      %v3353 = vmul.f32 %v3320, 1.442695
      %v3354 = vpow.pop %v3353
      %v3355 = vmul.f32 %v3321, 1.442695
      %v3356 = vpow.pop %v3355
      %v3357 = vmul.f32 %v3322, 1.442695
      %v3358 = vpow.pop %v3357
      %v3359 = vmul.f32 %v3323, 1.442695
      %v3360 = vpow.pop %v3359
      %v3361 = vmul.f32 %v3324, 1.442695
      %v3362 = vpow.pop %v3361
      %v3363 = vmul.f32 %v3325, 1.442695
      %v3364 = vpow.pop %v3363
      %v3365 = vmul.f32 %v3326, 1.442695
      %v3366 = vpow.pop %v3365
      %v3367 = vmul.f32 %v3327, 1.442695
      %v3368 = vpow.pop %v3367
      %v3369 = vmul.f32 %v3328, 1.442695
      %v3370 = vpow.pop %v3369
      %v3371 = vmul.f32 %v3329, 1.442695
      %v3372 = vpow.pop %v3371
      %v3373 = vmul.f32 %v3330, 1.442695
      %v3374 = vpow.pop %v3373
      %v3375 = vmul.f32 %v3331, 1.442695
      %v3376 = vpow.pop %v3375
      %v3377 = vmul.f32 %v3332, 1.442695
      %v3378 = vpow.pop %v3377
      %v3379 = vmul.f32 %v3333, 1.442695
      %v3380 = vpow.pop %v3379
      %v3381 = vmul.f32 %v3334, 1.442695
      %v3382 = vpow.pop %v3381
      %v3383 = vmul.f32 %v3335, 1.442695
      %v3384 = vpow.pop %v3383
      %v3385 = vmul.f32 %v3336, 1.442695
      %v3386 = vpow.pop %v3385
      %v3387 = vmul.f32 %v3337, 1.442695
      %v3388 = vpow.pop %v3387
      %v3389 = vmul.f32 %v3338, 1.442695
      %v3390 = vpow.pop %v3389
      %v3391 = vmul.f32 %v3339, 1.442695
      %v3392 = vpow.pop %v3391
      %v3393 = vmul.f32 %v3340, 1.442695
      %v3394 = vpow.pop %v3393
      %v3395 = vmul.f32 %v3341, 1.442695
      %v3396 = vpow.pop %v3395
      %v3397 = vmul.f32 %v3342, 1.442695
      %v3398 = vpow.pop %v3397
      %v3399 = vmul.f32 %v3343, 1.442695
      %v3400 = vpow.pop %v3399
      %v3401 = vmul.f32 %v3344, 1.442695
      %v3402 = vpow.pop %v3401
      %v3403 = vmul.f32 %v3345, 1.442695
      %v3404 = vpow.pop %v3403
      %v3405 = vmul.f32 %v3346, 1.442695
      %v3406 = vpow.pop %v3405
      %v3407 = vmul.f32 %v3347, 1.442695
      %v3408 = vpow.pop %v3407
      %v3409 = vmul.f32 %v3348, 1.442695
      %v3410 = vpow.pop %v3409
      %v3411 = vmul.f32 %v3349, 1.442695
      %v3412 = vpow.pop %v3411
      %v3413 = vmul.f32 %v3350, 1.442695
      %v3414 = vpow.pop %v3413
      %v3415 = vadd.f32 %v3352, %v3354
      %v3416 = vadd.f32 %v3415, %v3356
      %v3417 = vadd.f32 %v3416, %v3358
      %3418 = vadd.xlane.f32.xlu0 %v3417
      %v3419 = vpop.xlane.xlu0 %3418
      %v3420 = vadd.f32 %v3360, %v3362
      %v3421 = vadd.f32 %v3420, %v3364
      %v3422 = vadd.f32 %v3421, %v3366
      %3423 = vadd.xlane.f32.xlu0 %v3422
      %v3424 = vpop.xlane.xlu0 %3423
      %v3425 = vadd.f32 %v3368, %v3370
      %v3426 = vadd.f32 %v3425, %v3372
      %v3427 = vadd.f32 %v3426, %v3374
      %3428 = vadd.xlane.f32.xlu0 %v3427
      %v3429 = vpop.xlane.xlu0 %3428
      %v3430 = vadd.f32 %v3376, %v3378
      %v3431 = vadd.f32 %v3430, %v3380
      %v3432 = vadd.f32 %v3431, %v3382
      %3433 = vadd.xlane.f32.xlu0 %v3432
      %v3434 = vpop.xlane.xlu0 %3433
      %v3435 = vadd.f32 %v3384, %v3386
      %v3436 = vadd.f32 %v3435, %v3388
      %v3437 = vadd.f32 %v3436, %v3390
      %3438 = vadd.xlane.f32.xlu0 %v3437
      %v3439 = vpop.xlane.xlu0 %3438
      %v3440 = vadd.f32 %v3392, %v3394
      %v3441 = vadd.f32 %v3440, %v3396
      %v3442 = vadd.f32 %v3441, %v3398
      %3443 = vadd.xlane.f32.xlu0 %v3442
      %v3444 = vpop.xlane.xlu0 %3443
      %v3445 = vadd.f32 %v3400, %v3402
      %v3446 = vadd.f32 %v3445, %v3404
      %v3447 = vadd.f32 %v3446, %v3406
      %3448 = vadd.xlane.f32.xlu0 %v3447
      %v3449 = vpop.xlane.xlu0 %3448
      %v3450 = vadd.f32 %v3408, %v3410
      %v3451 = vadd.f32 %v3450, %v3412
      %v3452 = vadd.f32 %v3451, %v3414
      %3453 = vadd.xlane.f32.xlu0 %v3452
      %v3454 = vpop.xlane.xlu0 %3453
      %v3455 = vrcp.pop %v3419
      %v3456 = vmul.f32 %v3352, %v3455
      %v3457 = vmul.f32 %v3354, %v3455
      %v3458 = vmul.f32 %v3356, %v3455
      %v3459 = vmul.f32 %v3358, %v3455
      %v3460 = vrcp.pop %v3424
      %v3461 = vmul.f32 %v3360, %v3460
      %v3462 = vmul.f32 %v3362, %v3460
      %v3463 = vmul.f32 %v3364, %v3460
      %v3464 = vmul.f32 %v3366, %v3460
      %v3465 = vrcp.pop %v3429
      %v3466 = vmul.f32 %v3368, %v3465
      %v3467 = vmul.f32 %v3370, %v3465
      %v3468 = vmul.f32 %v3372, %v3465
      %v3469 = vmul.f32 %v3374, %v3465
      %v3470 = vrcp.pop %v3434
      %v3471 = vmul.f32 %v3376, %v3470
      %v3472 = vmul.f32 %v3378, %v3470
      %v3473 = vmul.f32 %v3380, %v3470
      %v3474 = vmul.f32 %v3382, %v3470
      %v3475 = vrcp.pop %v3439
      %v3476 = vmul.f32 %v3384, %v3475
      %v3477 = vmul.f32 %v3386, %v3475
      %v3478 = vmul.f32 %v3388, %v3475
      %v3479 = vmul.f32 %v3390, %v3475
      %v3480 = vrcp.pop %v3444
      %v3481 = vmul.f32 %v3392, %v3480
      %v3482 = vmul.f32 %v3394, %v3480
      %v3483 = vmul.f32 %v3396, %v3480
      %v3484 = vmul.f32 %v3398, %v3480
      %v3485 = vrcp.pop %v3449
      %v3486 = vmul.f32 %v3400, %v3485
      %v3487 = vmul.f32 %v3402, %v3485
      %v3488 = vmul.f32 %v3404, %v3485
      %v3489 = vmul.f32 %v3406, %v3485
      %v3490 = vrcp.pop %v3454
      %v3491 = vmul.f32 %v3408, %v3490
      %v3492 = vmul.f32 %v3410, %v3490
      %v3493 = vmul.f32 %v3412, %v3490
      %v3494 = vmul.f32 %v3414, %v3490
      %3495 = vmatprep.subr.mxu0 %v3457
      %3496 = vmatpush1.xpose.msra.mxu0 %v3456
      %3497 = vmatprep.subr.mxu0 %v3462
      %3498 = vmatpush1.xpose.msra.mxu0 %v3461
      %3499 = vmatprep.subr.mxu0 %v3467
      %3500 = vmatpush1.xpose.msra.mxu0 %v3466
      %3501 = vmatprep.subr.mxu0 %v3472
      %3502 = vmatpush1.xpose.msra.mxu0 %v3471
      %3503 = vmatprep.subr.mxu0 %v3477
      %3504 = vmatpush1.xpose.msra.mxu0 %v3476
      %3505 = vmatprep.subr.mxu0 %v3482
      %3506 = vmatpush1.xpose.msra.mxu0 %v3481
      %3507 = vmatprep.subr.mxu0 %v3487
      %3508 = vmatpush1.xpose.msra.mxu0 %v3486
      %3509 = vmatprep.subr.mxu0 %v3492
      %3510 = vmatpush1.xpose.msra.mxu0 %v3491
      %3511 = vmatprep.subr.mxu0 0.0
      %3512 = vmatpush1.xpose.msra.mxu0 0.0
      %3513 = vmatprep.subr.mxu0 0.0
      %3514 = vmatpush1.xpose.msra.mxu0 0.0
      %3515 = vmatprep.subr.mxu0 0.0
      %3516 = vmatpush1.xpose.msra.mxu0 0.0
      %3517 = vmatprep.subr.mxu0 0.0
      %3518 = vmatpush1.xpose.msra.mxu0 0.0
      %3519 = vmatprep.subr.mxu0 0.0
      %3520 = vmatpush1.xpose.msra.mxu0 0.0
      %3521 = vmatprep.subr.mxu0 0.0
      %3522 = vmatpush1.xpose.msra.mxu0 0.0
      %3523 = vmatprep.subr.mxu0 0.0
      %3524 = vmatpush1.xpose.msra.mxu0 0.0
      %3525 = vmatprep.subr.mxu0 0.0
      %3526 = vmatpush1.xpose.msra.mxu0 0.0
      %3527 = vmatprep.subr.mxu0 0.0
      %3528 = vmatpush1.xpose.msra.mxu0 0.0
      %3529 = vmatprep.subr.mxu0 0.0
      %3530 = vmatpush1.xpose.msra.mxu0 0.0
      %3531 = vmatprep.subr.mxu0 0.0
      %3532 = vmatpush1.xpose.msra.mxu0 0.0
      %3533 = vmatprep.subr.mxu0 0.0
      %3534 = vmatpush1.xpose.msra.mxu0 0.0
      %3535 = vmatprep.subr.mxu0 0.0
      %3536 = vmatpush1.xpose.msra.mxu0 0.0
      %3537 = vmatprep.subr.mxu0 0.0
      %3538 = vmatpush1.xpose.msra.mxu0 0.0
      %3539 = vmatprep.subr.mxu0 0.0
      %3540 = vmatpush1.xpose.msra.mxu0 0.0
      %3541 = vmatprep.subr.mxu0 0.0
      %3542 = vmatpush1.xpose.msra.mxu0 0.0
      %3543 = vmatprep.subr.mxu0 0.0
      %3544 = vmatpush1.xpose.msra.mxu0 0.0
      %3545 = vmatprep.subr.mxu0 0.0
      %3546 = vmatpush1.xpose.msra.mxu0 0.0
      %3547 = vmatprep.subr.mxu0 0.0
      %3548 = vmatpush1.xpose.msra.mxu0 0.0
      %3549 = vmatprep.subr.mxu0 0.0
      %3550 = vmatpush1.xpose.msra.mxu0 0.0
      %3551 = vmatprep.subr.mxu0 0.0
      %3552 = vmatpush1.xpose.msra.mxu0 0.0
      %3553 = vmatprep.subr.mxu0 0.0
      %3554 = vmatpush1.xpose.msra.mxu0 0.0
      %3555 = vmatprep.subr.mxu0 0.0
      %3556 = vmatpush1.xpose.msra.mxu0 0.0
      %3557 = vmatprep.subr.mxu0 0.0
      %3558 = vmatpush1.xpose.msra.mxu0 0.0
      %3559 = vmatprep.mubr.f32.mxu0 %v1071
      %3560 = vmatmul.mubr.f32.gmra.mrb[0].mxu0 %v1070
      %v3561 = vpop.f32.mrb[0].mxu0
      %v3562 = vadd.f32 0.0, %v3561
      %v3563 = vpop.f32.mrb[0].mxu0
      %3564 = vmatprep.mubr.f32.mxu0 %v1075
      %3565 = vmatmul.mubr.f32.gmra.mrb[0].mxu0 %v1074
      %v3566 = vpop.f32.mrb[0].mxu0
      %v3567 = vadd.f32 0.0, %v3566
      %v3568 = vpop.f32.mrb[0].mxu0
      %3569 = vdwg.mxu0
      %3570 = vmatprep.subr.mxu0 %v3459
      %3571 = vmatpush1.xpose.msra.mxu0 %v3458
      %3572 = vmatprep.subr.mxu0 %v3464
      %3573 = vmatpush1.xpose.msra.mxu0 %v3463
      %3574 = vmatprep.subr.mxu0 %v3469
      %3575 = vmatpush1.xpose.msra.mxu0 %v3468
      %3576 = vmatprep.subr.mxu0 %v3474
      %3577 = vmatpush1.xpose.msra.mxu0 %v3473
      %3578 = vmatprep.subr.mxu0 %v3479
      %3579 = vmatpush1.xpose.msra.mxu0 %v3478
      %3580 = vmatprep.subr.mxu0 %v3484
      %3581 = vmatpush1.xpose.msra.mxu0 %v3483
      %3582 = vmatprep.subr.mxu0 %v3489
      %3583 = vmatpush1.xpose.msra.mxu0 %v3488
      %3584 = vmatprep.subr.mxu0 %v3494
      %3585 = vmatpush1.xpose.msra.mxu0 %v3493
      %3586 = vmatprep.subr.mxu0 0.0
      %3587 = vmatpush1.xpose.msra.mxu0 0.0
      %3588 = vmatprep.subr.mxu0 0.0
      %3589 = vmatpush1.xpose.msra.mxu0 0.0
      %3590 = vmatprep.subr.mxu0 0.0
      %3591 = vmatpush1.xpose.msra.mxu0 0.0
      %3592 = vmatprep.subr.mxu0 0.0
      %3593 = vmatpush1.xpose.msra.mxu0 0.0
      %3594 = vmatprep.subr.mxu0 0.0
      %3595 = vmatpush1.xpose.msra.mxu0 0.0
      %3596 = vmatprep.subr.mxu0 0.0
      %3597 = vmatpush1.xpose.msra.mxu0 0.0
      %3598 = vmatprep.subr.mxu0 0.0
      %3599 = vmatpush1.xpose.msra.mxu0 0.0
      %3600 = vmatprep.subr.mxu0 0.0
      %3601 = vmatpush1.xpose.msra.mxu0 0.0
      %3602 = vmatprep.subr.mxu0 0.0
      %3603 = vmatpush1.xpose.msra.mxu0 0.0
      %3604 = vmatprep.subr.mxu0 0.0
      %3605 = vmatpush1.xpose.msra.mxu0 0.0
      %3606 = vmatprep.subr.mxu0 0.0
      %3607 = vmatpush1.xpose.msra.mxu0 0.0
      %3608 = vmatprep.subr.mxu0 0.0
      %3609 = vmatpush1.xpose.msra.mxu0 0.0
      %3610 = vmatprep.subr.mxu0 0.0
      %3611 = vmatpush1.xpose.msra.mxu0 0.0
      %3612 = vmatprep.subr.mxu0 0.0
      %3613 = vmatpush1.xpose.msra.mxu0 0.0
      %3614 = vmatprep.subr.mxu0 0.0
      %3615 = vmatpush1.xpose.msra.mxu0 0.0
      %3616 = vmatprep.subr.mxu0 0.0
      %3617 = vmatpush1.xpose.msra.mxu0 0.0
      %3618 = vmatprep.subr.mxu0 0.0
      %3619 = vmatpush1.xpose.msra.mxu0 0.0
      %3620 = vmatprep.subr.mxu0 0.0
      %3621 = vmatpush1.xpose.msra.mxu0 0.0
      %3622 = vmatprep.subr.mxu0 0.0
      %3623 = vmatpush1.xpose.msra.mxu0 0.0
      %3624 = vmatprep.subr.mxu0 0.0
      %3625 = vmatpush1.xpose.msra.mxu0 0.0
      %3626 = vmatprep.subr.mxu0 0.0
      %3627 = vmatpush1.xpose.msra.mxu0 0.0
      %3628 = vmatprep.subr.mxu0 0.0
      %3629 = vmatpush1.xpose.msra.mxu0 0.0
      %3630 = vmatprep.subr.mxu0 0.0
      %3631 = vmatpush1.xpose.msra.mxu0 0.0
      %3632 = vmatprep.subr.mxu0 0.0
      %3633 = vmatpush1.xpose.msra.mxu0 0.0
      %3634 = vmatprep.mubr.f32.mxu0 %v1073
      %3635 = vmatmul.mubr.f32.gmra.mrb[0].mxu0 %v1072
      %v3636 = vpop.f32.mrb[0].mxu0
      %v3637 = vadd.f32 %v3562, %v3636
      %v3638 = vpop.f32.mrb[0].mxu0
      %3639 = vmatprep.mubr.f32.mxu0 %v1077
      %3640 = vmatmul.mubr.f32.gmra.mrb[0].mxu0 %v1076
      %v3641 = vpop.f32.mrb[0].mxu0
      %v3642 = vadd.f32 %v3567, %v3641
      %v3643 = vpop.f32.mrb[0].mxu0
      %3644 = vdwg.mxu0
      %3646 = vrot.lane.b32.xlu0 %v1264, 112
      %v3647 = vpop.permute.xlu0 %3646
      %v3648 = vsel %vm1297, %v3647, 0
      %3650 = vmatprep.subr.mxu0 0.0
      %3651 = vmatpush1.msra.mxu0 %v3637
      %3652 = vmatprep.subr.mxu0 0.0
      %3653 = vmatpush1.msra.mxu0 %v3642
      %3654 = vmatprep.subr.mxu0 0.0
      %3655 = vmatpush1.msra.mxu0 0.0
      %3656 = vmatprep.subr.mxu0 0.0
      %3657 = vmatpush1.msra.mxu0 0.0
      %3658 = vmatprep.subr.mxu0 0.0
      %3659 = vmatpush1.msra.mxu0 0.0
      %3660 = vmatprep.subr.mxu0 0.0
      %3661 = vmatpush1.msra.mxu0 0.0
      %3662 = vmatprep.subr.mxu0 0.0
      %3663 = vmatpush1.msra.mxu0 0.0
      %3664 = vmatprep.subr.mxu0 0.0
      %3665 = vmatpush1.msra.mxu0 0.0
      %3666 = vmatprep.subr.mxu0 0.0
      %3667 = vmatpush1.msra.mxu0 0.0
      %3668 = vmatprep.subr.mxu0 0.0
      %3669 = vmatpush1.msra.mxu0 0.0
      %3670 = vmatprep.subr.mxu0 0.0
      %3671 = vmatpush1.msra.mxu0 0.0
      %3672 = vmatprep.subr.mxu0 0.0
      %3673 = vmatpush1.msra.mxu0 0.0
      %3674 = vmatprep.subr.mxu0 0.0
      %3675 = vmatpush1.msra.mxu0 0.0
      %3676 = vmatprep.subr.mxu0 0.0
      %3677 = vmatpush1.msra.mxu0 0.0
      %3678 = vmatprep.subr.mxu0 0.0
      %3679 = vmatpush1.msra.mxu0 0.0
      %3680 = vmatprep.subr.mxu0 0.0
      %3681 = vmatpush1.msra.mxu0 0.0
      %3682 = vmatprep.subr.mxu0 0.0
      %3683 = vmatpush1.msra.mxu0 0.0
      %3684 = vmatprep.subr.mxu0 0.0
      %3685 = vmatpush1.msra.mxu0 0.0
      %3686 = vmatprep.subr.mxu0 0.0
      %3687 = vmatpush1.msra.mxu0 0.0
      %3688 = vmatprep.subr.mxu0 0.0
      %3689 = vmatpush1.msra.mxu0 0.0
      %3690 = vmatprep.subr.mxu0 0.0
      %3691 = vmatpush1.msra.mxu0 0.0
      %3692 = vmatprep.subr.mxu0 0.0
      %3693 = vmatpush1.msra.mxu0 0.0
      %3694 = vmatprep.subr.mxu0 0.0
      %3695 = vmatpush1.msra.mxu0 0.0
      %3696 = vmatprep.subr.mxu0 0.0
      %3697 = vmatpush1.msra.mxu0 0.0
      %3698 = vmatprep.subr.mxu0 0.0
      %3699 = vmatpush1.msra.mxu0 0.0
      %3700 = vmatprep.subr.mxu0 0.0
      %3701 = vmatpush1.msra.mxu0 0.0
      %3702 = vmatprep.subr.mxu0 0.0
      %3703 = vmatpush1.msra.mxu0 0.0
      %3704 = vmatprep.subr.mxu0 0.0
      %3705 = vmatpush1.msra.mxu0 0.0
      %3706 = vmatprep.subr.mxu0 0.0
      %3707 = vmatpush1.msra.mxu0 0.0
      %3708 = vmatprep.subr.mxu0 0.0
      %3709 = vmatpush1.msra.mxu0 0.0
      %3710 = vmatprep.subr.mxu0 0.0
      %3711 = vmatpush1.msra.mxu0 0.0
      %3712 = vmatprep.subr.mxu0 0.0
      %3713 = vmatpush1.msra.mxu0 0.0
      %3714 = vmatprep.mubr.f32.mxu0 0.0
      %3715 = vmatmul.mubr.f32.gmra.mrb[0].mxu0 %v3648
      %v3716 = vpop.f32.mrb[0].mxu0
      %v3717 = vadd.f32 0.0, %v3716
      %v3718 = vpop.f32.mrb[0].mxu0
      %3719 = vdwg.mxu0
      %v3720 = vsel %vm1297, %v1264, 0
      %3722 = vmatprep.subr.mxu0 0.0
      %3723 = vmatpush1.msra.mxu0 %v2302
      %3724 = vmatprep.subr.mxu0 0.0
      %3725 = vmatpush1.msra.mxu0 %v2307
      %3726 = vmatprep.subr.mxu0 0.0
      %3727 = vmatpush1.msra.mxu0 0.0
      %3728 = vmatprep.subr.mxu0 0.0
      %3729 = vmatpush1.msra.mxu0 0.0
      %3730 = vmatprep.subr.mxu0 0.0
      %3731 = vmatpush1.msra.mxu0 0.0
      %3732 = vmatprep.subr.mxu0 0.0
      %3733 = vmatpush1.msra.mxu0 0.0
      %3734 = vmatprep.subr.mxu0 0.0
      %3735 = vmatpush1.msra.mxu0 0.0
      %3736 = vmatprep.subr.mxu0 0.0
      %3737 = vmatpush1.msra.mxu0 0.0
      %3738 = vmatprep.subr.mxu0 0.0
      %3739 = vmatpush1.msra.mxu0 0.0
      %3740 = vmatprep.subr.mxu0 0.0
      %3741 = vmatpush1.msra.mxu0 0.0
      %3742 = vmatprep.subr.mxu0 0.0
      %3743 = vmatpush1.msra.mxu0 0.0
      %3744 = vmatprep.subr.mxu0 0.0
      %3745 = vmatpush1.msra.mxu0 0.0
      %3746 = vmatprep.subr.mxu0 0.0
      %3747 = vmatpush1.msra.mxu0 0.0
      %3748 = vmatprep.subr.mxu0 0.0
      %3749 = vmatpush1.msra.mxu0 0.0
      %3750 = vmatprep.subr.mxu0 0.0
      %3751 = vmatpush1.msra.mxu0 0.0
      %3752 = vmatprep.subr.mxu0 0.0
      %3753 = vmatpush1.msra.mxu0 0.0
      %3754 = vmatprep.subr.mxu0 0.0
      %3755 = vmatpush1.msra.mxu0 0.0
      %3756 = vmatprep.subr.mxu0 0.0
      %3757 = vmatpush1.msra.mxu0 0.0
      %3758 = vmatprep.subr.mxu0 0.0
      %3759 = vmatpush1.msra.mxu0 0.0
      %3760 = vmatprep.subr.mxu0 0.0
      %3761 = vmatpush1.msra.mxu0 0.0
      %3762 = vmatprep.subr.mxu0 0.0
      %3763 = vmatpush1.msra.mxu0 0.0
      %3764 = vmatprep.subr.mxu0 0.0
      %3765 = vmatpush1.msra.mxu0 0.0
      %3766 = vmatprep.subr.mxu0 0.0
      %3767 = vmatpush1.msra.mxu0 0.0
      %3768 = vmatprep.subr.mxu0 0.0
      %3769 = vmatpush1.msra.mxu0 0.0
      %3770 = vmatprep.subr.mxu0 0.0
      %3771 = vmatpush1.msra.mxu0 0.0
      %3772 = vmatprep.subr.mxu0 0.0
      %3773 = vmatpush1.msra.mxu0 0.0
      %3774 = vmatprep.subr.mxu0 0.0
      %3775 = vmatpush1.msra.mxu0 0.0
      %3776 = vmatprep.subr.mxu0 0.0
      %3777 = vmatpush1.msra.mxu0 0.0
      %3778 = vmatprep.subr.mxu0 0.0
      %3779 = vmatpush1.msra.mxu0 0.0
      %3780 = vmatprep.subr.mxu0 0.0
      %3781 = vmatpush1.msra.mxu0 0.0
      %3782 = vmatprep.subr.mxu0 0.0
      %3783 = vmatpush1.msra.mxu0 0.0
      %3784 = vmatprep.subr.mxu0 0.0
      %3785 = vmatpush1.msra.mxu0 0.0
      %3786 = vmatprep.mubr.f32.mxu0 0.0
      %3787 = vmatmul.mubr.f32.gmra.mrb[0].mxu0 %v3720
      %v3788 = vpop.f32.mrb[0].mxu0
      %v3789 = vadd.f32 %v3717, %v3788
      %v3790 = vpop.f32.mrb[0].mxu0
      %3791 = vdwg.mxu0
      %v3792 = vld [vmem:[%s4 + $0x130] sm:$0xff]
      %v3793 = vld [vmem:[%s4 + $0x138] sm:$0xff]
      %v3794 = vld [vmem:[%s4 + $0x140] sm:$0xff]
      %v3795 = vld [vmem:[%s4 + $0x148] sm:$0xff]
      %v3796 = vld [vmem:[%s4 + $0x110] sm:$0xff]
      %3798 = vset.pattern.permute.xlu0 0
      %3799 = vperm.xlu0 %3798, %v3792
      %v3800 = vpop.permute.xlu0 %3799
      %v3802 = vmul.f32 %v406, %v3800
      %v3803 = vmul.f32 %v408, %v3800
      %v3804 = vmul.f32 %v477, %v3800
      %v3805 = vmul.f32 %v479, %v3800
      %3807 = vset.pattern.permute.xlu0 0
      %3808 = vperm.xlu0 %3807, %v3794
      %v3809 = vpop.permute.xlu0 %3808
      %v3811 = vadd.f32 %v3802, %v3809
      %v3812 = vadd.f32 %v3803, %v3809
      %v3813 = vadd.f32 %v3804, %v3809
      %v3814 = vadd.f32 %v3805, %v3809
      %v3815 = vmul.f32 %v3811, 0.70710677
      %v3816 = vmul.f32 %v3812, 0.70710677
      %v3817 = vmul.f32 %v3813, 0.70710677
      %v3818 = vmul.f32 %v3814, 0.70710677
      %v3819 = vand.u32 2147483647, %v3815
      %v3820 = vand.u32 2147483647, %v3816
      %v3821 = vand.u32 2147483647, %v3817
      %v3822 = vand.u32 2147483647, %v3818
      %v3823 = vmul.f32 %v3819, 0.3275911
      %v3824 = vmul.f32 %v3820, 0.3275911
      %v3825 = vmul.f32 %v3821, 0.3275911
      %v3826 = vmul.f32 %v3822, 0.3275911
      %v3827 = vadd.f32 %v3823, 1.0
      %v3828 = vadd.f32 %v3824, 1.0
      %v3829 = vadd.f32 %v3825, 1.0
      %v3830 = vadd.f32 %v3826, 1.0
      %v3831 = vrcp.pop %v3827
      %v3832 = vmul.f32 1.0, %v3831
      %v3833 = vrcp.pop %v3828
      %v3834 = vmul.f32 1.0, %v3833
      %v3835 = vrcp.pop %v3829
      %v3836 = vmul.f32 1.0, %v3835
      %v3837 = vrcp.pop %v3830
      %v3838 = vmul.f32 1.0, %v3837
      %v3839 = vmul.f32 %v3832, 1.0614054
      %v3840 = vmul.f32 %v3834, 1.0614054
      %v3841 = vmul.f32 %v3836, 1.0614054
      %v3842 = vmul.f32 %v3838, 1.0614054
      %v3843 = vadd.f32 %v3839, -1.4531521
      %v3844 = vadd.f32 %v3840, -1.4531521
      %v3845 = vadd.f32 %v3841, -1.4531521
      %v3846 = vadd.f32 %v3842, -1.4531521
      %v3847 = vmul.f32 %v3832, %v3843
      %v3848 = vmul.f32 %v3834, %v3844
      %v3849 = vmul.f32 %v3836, %v3845
      %v3850 = vmul.f32 %v3838, %v3846
      %v3851 = vadd.f32 %v3847, 1.4214138
      %v3852 = vadd.f32 %v3848, 1.4214138
      %v3853 = vadd.f32 %v3849, 1.4214138
      %v3854 = vadd.f32 %v3850, 1.4214138
      %v3855 = vmul.f32 %v3832, %v3851
      %v3856 = vmul.f32 %v3834, %v3852
      %v3857 = vmul.f32 %v3836, %v3853
      %v3858 = vmul.f32 %v3838, %v3854
      %v3859 = vadd.f32 %v3855, -0.28449672
      %v3860 = vadd.f32 %v3856, -0.28449672
      %v3861 = vadd.f32 %v3857, -0.28449672
      %v3862 = vadd.f32 %v3858, -0.28449672
      %v3863 = vmul.f32 %v3832, %v3859
      %v3864 = vmul.f32 %v3834, %v3860
      %v3865 = vmul.f32 %v3836, %v3861
      %v3866 = vmul.f32 %v3838, %v3862
      %v3867 = vadd.f32 %v3863, 0.2548296
      %v3868 = vadd.f32 %v3864, 0.2548296
      %v3869 = vadd.f32 %v3865, 0.2548296
      %v3870 = vadd.f32 %v3866, 0.2548296
      %v3871 = vmul.f32 %v3832, %v3867
      %v3872 = vmul.f32 %v3834, %v3868
      %v3873 = vmul.f32 %v3836, %v3869
      %v3874 = vmul.f32 %v3838, %v3870
      %v3875 = vmul.f32 %v3819, %v3819
      %v3876 = vmul.f32 %v3820, %v3820
      %v3877 = vmul.f32 %v3821, %v3821
      %v3878 = vmul.f32 %v3822, %v3822
      %v3879 = vsub.f32 0.0, %v3875
      %v3880 = vsub.f32 0.0, %v3876
      %v3881 = vsub.f32 0.0, %v3877
      %v3882 = vsub.f32 0.0, %v3878
      %v3883 = vmul.f32 %v3879, 1.442695
      %v3884 = vpow.pop %v3883
      %v3885 = vmul.f32 %v3880, 1.442695
      %v3886 = vpow.pop %v3885
      %v3887 = vmul.f32 %v3881, 1.442695
      %v3888 = vpow.pop %v3887
      %v3889 = vmul.f32 %v3882, 1.442695
      %v3890 = vpow.pop %v3889
      %v3891 = vmul.f32 %v3871, %v3884
      %v3892 = vmul.f32 %v3872, %v3886
      %v3893 = vmul.f32 %v3873, %v3888
      %v3894 = vmul.f32 %v3874, %v3890
      %v3895 = vsub.f32 1.0, %v3891
      %v3896 = vsub.f32 1.0, %v3892
      %v3897 = vsub.f32 1.0, %v3893
      %v3898 = vsub.f32 1.0, %v3894
      %vm3899 = vcmp.ge.f32.partialorder %v3815, 0.0
      %vm3900 = vcmp.ge.f32.partialorder %v3816, 0.0
      %vm3901 = vcmp.ge.f32.partialorder %v3817, 0.0
      %vm3902 = vcmp.ge.f32.partialorder %v3818, 0.0
      %v3903 = vsub.f32 0.0, %v3895
      %v3904 = vsub.f32 0.0, %v3896
      %v3905 = vsub.f32 0.0, %v3897
      %v3906 = vsub.f32 0.0, %v3898
      %v3907 = vsel %vm3899, %v3895, %v3903
      %v3908 = vsel %vm3900, %v3896, %v3904
      %v3909 = vsel %vm3901, %v3897, %v3905
      %v3910 = vsel %vm3902, %v3898, %v3906
      %v3911 = vmul.f32 %v3811, 0.5
      %v3912 = vmul.f32 %v3812, 0.5
      %v3913 = vmul.f32 %v3813, 0.5
      %v3914 = vmul.f32 %v3814, 0.5
      %v3915 = vadd.f32 %v3907, 1.0
      %v3916 = vadd.f32 %v3908, 1.0
      %v3917 = vadd.f32 %v3909, 1.0
      %v3918 = vadd.f32 %v3910, 1.0
      %v3919 = vmul.f32 %v3911, %v3915
      %v3920 = vmul.f32 %v3912, %v3916
      %v3921 = vmul.f32 %v3913, %v3917
      %v3922 = vmul.f32 %v3914, %v3918
      %3924 = vset.pattern.permute.xlu0 0
      %3925 = vperm.xlu0 %3924, %v3793
      %v3926 = vpop.permute.xlu0 %3925
      %v3928 = vmul.f32 %v298, %v3926
      %v3929 = vmul.f32 %v299, %v3926
      %v3930 = vmul.f32 %v300, %v3926
      %v3931 = vmul.f32 %v301, %v3926
      %3933 = vset.pattern.permute.xlu0 0
      %3934 = vperm.xlu0 %3933, %v3795
      %v3935 = vpop.permute.xlu0 %3934
      %v3937 = vadd.f32 %v3928, %v3935
      %v3938 = vadd.f32 %v3929, %v3935
      %v3939 = vadd.f32 %v3930, %v3935
      %v3940 = vadd.f32 %v3931, %v3935
      %v3941 = vmul.f32 %v3937, 0.70710677
      %v3942 = vmul.f32 %v3938, 0.70710677
      %v3943 = vmul.f32 %v3939, 0.70710677
      %v3944 = vmul.f32 %v3940, 0.70710677
      %v3945 = vand.u32 2147483647, %v3941
      %v3946 = vand.u32 2147483647, %v3942
      %v3947 = vand.u32 2147483647, %v3943
      %v3948 = vand.u32 2147483647, %v3944
      %v3949 = vmul.f32 %v3945, 0.3275911
      %v3950 = vmul.f32 %v3946, 0.3275911
      %v3951 = vmul.f32 %v3947, 0.3275911
      %v3952 = vmul.f32 %v3948, 0.3275911
      %v3953 = vadd.f32 %v3949, 1.0
      %v3954 = vadd.f32 %v3950, 1.0
      %v3955 = vadd.f32 %v3951, 1.0
      %v3956 = vadd.f32 %v3952, 1.0
      %v3957 = vrcp.pop %v3953
      %v3958 = vmul.f32 1.0, %v3957
      %v3959 = vrcp.pop %v3954
      %v3960 = vmul.f32 1.0, %v3959
      %v3961 = vrcp.pop %v3955
      %v3962 = vmul.f32 1.0, %v3961
      %v3963 = vrcp.pop %v3956
      %v3964 = vmul.f32 1.0, %v3963
      %v3965 = vmul.f32 %v3958, 1.0614054
      %v3966 = vmul.f32 %v3960, 1.0614054
      %v3967 = vmul.f32 %v3962, 1.0614054
      %v3968 = vmul.f32 %v3964, 1.0614054
      %v3969 = vadd.f32 %v3965, -1.4531521
      %v3970 = vadd.f32 %v3966, -1.4531521
      %v3971 = vadd.f32 %v3967, -1.4531521
      %v3972 = vadd.f32 %v3968, -1.4531521
      %v3973 = vmul.f32 %v3958, %v3969
      %v3974 = vmul.f32 %v3960, %v3970
      %v3975 = vmul.f32 %v3962, %v3971
      %v3976 = vmul.f32 %v3964, %v3972
      %v3977 = vadd.f32 %v3973, 1.4214138
      %v3978 = vadd.f32 %v3974, 1.4214138
      %v3979 = vadd.f32 %v3975, 1.4214138
      %v3980 = vadd.f32 %v3976, 1.4214138
      %v3981 = vmul.f32 %v3958, %v3977
      %v3982 = vmul.f32 %v3960, %v3978
      %v3983 = vmul.f32 %v3962, %v3979
      %v3984 = vmul.f32 %v3964, %v3980
      %v3985 = vadd.f32 %v3981, -0.28449672
      %v3986 = vadd.f32 %v3982, -0.28449672
      %v3987 = vadd.f32 %v3983, -0.28449672
      %v3988 = vadd.f32 %v3984, -0.28449672
      %v3989 = vmul.f32 %v3958, %v3985
      %v3990 = vmul.f32 %v3960, %v3986
      %v3991 = vmul.f32 %v3962, %v3987
      %v3992 = vmul.f32 %v3964, %v3988
      %v3993 = vadd.f32 %v3989, 0.2548296
      %v3994 = vadd.f32 %v3990, 0.2548296
      %v3995 = vadd.f32 %v3991, 0.2548296
      %v3996 = vadd.f32 %v3992, 0.2548296
      %v3997 = vmul.f32 %v3958, %v3993
      %v3998 = vmul.f32 %v3960, %v3994
      %v3999 = vmul.f32 %v3962, %v3995
      %v4000 = vmul.f32 %v3964, %v3996
      %v4001 = vmul.f32 %v3945, %v3945
      %v4002 = vmul.f32 %v3946, %v3946
      %v4003 = vmul.f32 %v3947, %v3947
      %v4004 = vmul.f32 %v3948, %v3948
      %v4005 = vsub.f32 0.0, %v4001
      %v4006 = vsub.f32 0.0, %v4002
      %v4007 = vsub.f32 0.0, %v4003
      %v4008 = vsub.f32 0.0, %v4004
      %v4009 = vmul.f32 %v4005, 1.442695
      %v4010 = vpow.pop %v4009
      %v4011 = vmul.f32 %v4006, 1.442695
      %v4012 = vpow.pop %v4011
      %v4013 = vmul.f32 %v4007, 1.442695
      %v4014 = vpow.pop %v4013
      %v4015 = vmul.f32 %v4008, 1.442695
      %v4016 = vpow.pop %v4015
      %v4017 = vmul.f32 %v3997, %v4010
      %v4018 = vmul.f32 %v3998, %v4012
      %v4019 = vmul.f32 %v3999, %v4014
      %v4020 = vmul.f32 %v4000, %v4016
      %v4021 = vsub.f32 1.0, %v4017
      %v4022 = vsub.f32 1.0, %v4018
      %v4023 = vsub.f32 1.0, %v4019
      %v4024 = vsub.f32 1.0, %v4020
      %vm4025 = vcmp.ge.f32.partialorder %v3941, 0.0
      %vm4026 = vcmp.ge.f32.partialorder %v3942, 0.0
      %vm4027 = vcmp.ge.f32.partialorder %v3943, 0.0
      %vm4028 = vcmp.ge.f32.partialorder %v3944, 0.0
      %v4029 = vsub.f32 0.0, %v4021
      %v4030 = vsub.f32 0.0, %v4022
      %v4031 = vsub.f32 0.0, %v4023
      %v4032 = vsub.f32 0.0, %v4024
      %v4033 = vsel %vm4025, %v4021, %v4029
      %v4034 = vsel %vm4026, %v4022, %v4030
      %v4035 = vsel %vm4027, %v4023, %v4031
      %v4036 = vsel %vm4028, %v4024, %v4032
      %v4037 = vmul.f32 %v3937, 0.5
      %v4038 = vmul.f32 %v3938, 0.5
      %v4039 = vmul.f32 %v3939, 0.5
      %v4040 = vmul.f32 %v3940, 0.5
      %v4041 = vadd.f32 %v4033, 1.0
      %v4042 = vadd.f32 %v4034, 1.0
      %v4043 = vadd.f32 %v4035, 1.0
      %v4044 = vadd.f32 %v4036, 1.0
      %v4045 = vmul.f32 %v4037, %v4041
      %v4046 = vmul.f32 %v4038, %v4042
      %v4047 = vmul.f32 %v4039, %v4043
      %v4048 = vmul.f32 %v4040, %v4044
      %4050 = vrot.lane.b32.xlu0 %v3796, 120
      %v4051 = vpop.permute.xlu0 %4050
      %v4052 = vsel %vm521, %v4051, 0
      %4054 = vmatprep.subr.mxu0 %v4046
      %4055 = vmatpush1.msra.mxu0 %v4045
      %4056 = vmatprep.subr.mxu0 0.0
      %4057 = vmatpush1.msra.mxu0 0.0
      %4058 = vmatprep.subr.mxu0 0.0
      %4059 = vmatpush1.msra.mxu0 0.0
      %4060 = vmatprep.subr.mxu0 0.0
      %4061 = vmatpush1.msra.mxu0 0.0
      %4062 = vmatprep.subr.mxu0 0.0
      %4063 = vmatpush1.msra.mxu0 0.0
      %4064 = vmatprep.subr.mxu0 0.0
      %4065 = vmatpush1.msra.mxu0 0.0
      %4066 = vmatprep.subr.mxu0 0.0
      %4067 = vmatpush1.msra.mxu0 0.0
      %4068 = vmatprep.subr.mxu0 0.0
      %4069 = vmatpush1.msra.mxu0 0.0
      %4070 = vmatprep.subr.mxu0 0.0
      %4071 = vmatpush1.msra.mxu0 0.0
      %4072 = vmatprep.subr.mxu0 0.0
      %4073 = vmatpush1.msra.mxu0 0.0
      %4074 = vmatprep.subr.mxu0 0.0
      %4075 = vmatpush1.msra.mxu0 0.0
      %4076 = vmatprep.subr.mxu0 0.0
      %4077 = vmatpush1.msra.mxu0 0.0
      %4078 = vmatprep.subr.mxu0 0.0
      %4079 = vmatpush1.msra.mxu0 0.0
      %4080 = vmatprep.subr.mxu0 0.0
      %4081 = vmatpush1.msra.mxu0 0.0
      %4082 = vmatprep.subr.mxu0 0.0
      %4083 = vmatpush1.msra.mxu0 0.0
      %4084 = vmatprep.subr.mxu0 0.0
      %4085 = vmatpush1.msra.mxu0 0.0
      %4086 = vmatprep.subr.mxu0 0.0
      %4087 = vmatpush1.msra.mxu0 0.0
      %4088 = vmatprep.subr.mxu0 0.0
      %4089 = vmatpush1.msra.mxu0 0.0
      %4090 = vmatprep.subr.mxu0 0.0
      %4091 = vmatpush1.msra.mxu0 0.0
      %4092 = vmatprep.subr.mxu0 0.0
      %4093 = vmatpush1.msra.mxu0 0.0
      %4094 = vmatprep.subr.mxu0 0.0
      %4095 = vmatpush1.msra.mxu0 0.0
      %4096 = vmatprep.subr.mxu0 0.0
      %4097 = vmatpush1.msra.mxu0 0.0
      %4098 = vmatprep.subr.mxu0 0.0
      %4099 = vmatpush1.msra.mxu0 0.0
      %4100 = vmatprep.subr.mxu0 0.0
      %4101 = vmatpush1.msra.mxu0 0.0
      %4102 = vmatprep.subr.mxu0 0.0
      %4103 = vmatpush1.msra.mxu0 0.0
      %4104 = vmatprep.subr.mxu0 0.0
      %4105 = vmatpush1.msra.mxu0 0.0
      %4106 = vmatprep.subr.mxu0 0.0
      %4107 = vmatpush1.msra.mxu0 0.0
      %4108 = vmatprep.subr.mxu0 0.0
      %4109 = vmatpush1.msra.mxu0 0.0
      %4110 = vmatprep.subr.mxu0 0.0
      %4111 = vmatpush1.msra.mxu0 0.0
      %4112 = vmatprep.subr.mxu0 0.0
      %4113 = vmatpush1.msra.mxu0 0.0
      %4114 = vmatprep.subr.mxu0 0.0
      %4115 = vmatpush1.msra.mxu0 0.0
      %4116 = vmatprep.subr.mxu0 0.0
      %4117 = vmatpush1.msra.mxu0 0.0
      %4118 = vmatprep.mubr.f32.mxu0 0.0
      %4119 = vmatmul.mubr.f32.gmra.mrb[0].mxu0 %v4052
      %v4120 = vpop.f32.mrb[0].mxu0
      %v4121 = vadd.f32 0.0, %v4120
      %v4122 = vpop.f32.mrb[0].mxu0
      %v4123 = vadd.f32 0.0, %v4122
      %4124 = vdwg.mxu0
      %4125 = vmatprep.subr.mxu0 %v4048
      %4126 = vmatpush1.msra.mxu0 %v4047
      %4127 = vmatprep.subr.mxu0 0.0
      %4128 = vmatpush1.msra.mxu0 0.0
      %4129 = vmatprep.subr.mxu0 0.0
      %4130 = vmatpush1.msra.mxu0 0.0
      %4131 = vmatprep.subr.mxu0 0.0
      %4132 = vmatpush1.msra.mxu0 0.0
      %4133 = vmatprep.subr.mxu0 0.0
      %4134 = vmatpush1.msra.mxu0 0.0
      %4135 = vmatprep.subr.mxu0 0.0
      %4136 = vmatpush1.msra.mxu0 0.0
      %4137 = vmatprep.subr.mxu0 0.0
      %4138 = vmatpush1.msra.mxu0 0.0
      %4139 = vmatprep.subr.mxu0 0.0
      %4140 = vmatpush1.msra.mxu0 0.0
      %4141 = vmatprep.subr.mxu0 0.0
      %4142 = vmatpush1.msra.mxu0 0.0
      %4143 = vmatprep.subr.mxu0 0.0
      %4144 = vmatpush1.msra.mxu0 0.0
      %4145 = vmatprep.subr.mxu0 0.0
      %4146 = vmatpush1.msra.mxu0 0.0
      %4147 = vmatprep.subr.mxu0 0.0
      %4148 = vmatpush1.msra.mxu0 0.0
      %4149 = vmatprep.subr.mxu0 0.0
      %4150 = vmatpush1.msra.mxu0 0.0
      %4151 = vmatprep.subr.mxu0 0.0
      %4152 = vmatpush1.msra.mxu0 0.0
      %4153 = vmatprep.subr.mxu0 0.0
      %4154 = vmatpush1.msra.mxu0 0.0
      %4155 = vmatprep.subr.mxu0 0.0
      %4156 = vmatpush1.msra.mxu0 0.0
      %4157 = vmatprep.subr.mxu0 0.0
      %4158 = vmatpush1.msra.mxu0 0.0
      %4159 = vmatprep.subr.mxu0 0.0
      %4160 = vmatpush1.msra.mxu0 0.0
      %4161 = vmatprep.subr.mxu0 0.0
      %4162 = vmatpush1.msra.mxu0 0.0
      %4163 = vmatprep.subr.mxu0 0.0
      %4164 = vmatpush1.msra.mxu0 0.0
      %4165 = vmatprep.subr.mxu0 0.0
      %4166 = vmatpush1.msra.mxu0 0.0
      %4167 = vmatprep.subr.mxu0 0.0
      %4168 = vmatpush1.msra.mxu0 0.0
      %4169 = vmatprep.subr.mxu0 0.0
      %4170 = vmatpush1.msra.mxu0 0.0
      %4171 = vmatprep.subr.mxu0 0.0
      %4172 = vmatpush1.msra.mxu0 0.0
      %4173 = vmatprep.subr.mxu0 0.0
      %4174 = vmatpush1.msra.mxu0 0.0
      %4175 = vmatprep.subr.mxu0 0.0
      %4176 = vmatpush1.msra.mxu0 0.0
      %4177 = vmatprep.subr.mxu0 0.0
      %4178 = vmatpush1.msra.mxu0 0.0
      %4179 = vmatprep.subr.mxu0 0.0
      %4180 = vmatpush1.msra.mxu0 0.0
      %4181 = vmatprep.subr.mxu0 0.0
      %4182 = vmatpush1.msra.mxu0 0.0
      %4183 = vmatprep.subr.mxu0 0.0
      %4184 = vmatpush1.msra.mxu0 0.0
      %4185 = vmatprep.subr.mxu0 0.0
      %4186 = vmatpush1.msra.mxu0 0.0
      %4187 = vmatprep.subr.mxu0 0.0
      %4188 = vmatpush1.msra.mxu0 0.0
      %4189 = vmatprep.mubr.f32.mxu0 0.0
      %4190 = vmatmul.mubr.f32.gmra.mrb[0].mxu0 %v4052
      %v4191 = vpop.f32.mrb[0].mxu0
      %v4192 = vadd.f32 0.0, %v4191
      %v4193 = vpop.f32.mrb[0].mxu0
      %v4194 = vadd.f32 0.0, %v4193
      %4195 = vdwg.mxu0
      %v4196 = vsel %vm521, %v3796, 0
      %4198 = vmatprep.subr.mxu0 %v3920
      %4199 = vmatpush1.msra.mxu0 %v3919
      %4200 = vmatprep.subr.mxu0 0.0
      %4201 = vmatpush1.msra.mxu0 0.0
      %4202 = vmatprep.subr.mxu0 0.0
      %4203 = vmatpush1.msra.mxu0 0.0
      %4204 = vmatprep.subr.mxu0 0.0
      %4205 = vmatpush1.msra.mxu0 0.0
      %4206 = vmatprep.subr.mxu0 0.0
      %4207 = vmatpush1.msra.mxu0 0.0
      %4208 = vmatprep.subr.mxu0 0.0
      %4209 = vmatpush1.msra.mxu0 0.0
      %4210 = vmatprep.subr.mxu0 0.0
      %4211 = vmatpush1.msra.mxu0 0.0
      %4212 = vmatprep.subr.mxu0 0.0
      %4213 = vmatpush1.msra.mxu0 0.0
      %4214 = vmatprep.subr.mxu0 0.0
      %4215 = vmatpush1.msra.mxu0 0.0
      %4216 = vmatprep.subr.mxu0 0.0
      %4217 = vmatpush1.msra.mxu0 0.0
      %4218 = vmatprep.subr.mxu0 0.0
      %4219 = vmatpush1.msra.mxu0 0.0
      %4220 = vmatprep.subr.mxu0 0.0
      %4221 = vmatpush1.msra.mxu0 0.0
      %4222 = vmatprep.subr.mxu0 0.0
      %4223 = vmatpush1.msra.mxu0 0.0
      %4224 = vmatprep.subr.mxu0 0.0
      %4225 = vmatpush1.msra.mxu0 0.0
      %4226 = vmatprep.subr.mxu0 0.0
      %4227 = vmatpush1.msra.mxu0 0.0
      %4228 = vmatprep.subr.mxu0 0.0
      %4229 = vmatpush1.msra.mxu0 0.0
      %4230 = vmatprep.subr.mxu0 0.0
      %4231 = vmatpush1.msra.mxu0 0.0
      %4232 = vmatprep.subr.mxu0 0.0
      %4233 = vmatpush1.msra.mxu0 0.0
      %4234 = vmatprep.subr.mxu0 0.0
      %4235 = vmatpush1.msra.mxu0 0.0
      %4236 = vmatprep.subr.mxu0 0.0
      %4237 = vmatpush1.msra.mxu0 0.0
      %4238 = vmatprep.subr.mxu0 0.0
      %4239 = vmatpush1.msra.mxu0 0.0
      %4240 = vmatprep.subr.mxu0 0.0
      %4241 = vmatpush1.msra.mxu0 0.0
      %4242 = vmatprep.subr.mxu0 0.0
      %4243 = vmatpush1.msra.mxu0 0.0
      %4244 = vmatprep.subr.mxu0 0.0
      %4245 = vmatpush1.msra.mxu0 0.0
      %4246 = vmatprep.subr.mxu0 0.0
      %4247 = vmatpush1.msra.mxu0 0.0
      %4248 = vmatprep.subr.mxu0 0.0
      %4249 = vmatpush1.msra.mxu0 0.0
      %4250 = vmatprep.subr.mxu0 0.0
      %4251 = vmatpush1.msra.mxu0 0.0
      %4252 = vmatprep.subr.mxu0 0.0
      %4253 = vmatpush1.msra.mxu0 0.0
      %4254 = vmatprep.subr.mxu0 0.0
      %4255 = vmatpush1.msra.mxu0 0.0
      %4256 = vmatprep.subr.mxu0 0.0
      %4257 = vmatpush1.msra.mxu0 0.0
      %4258 = vmatprep.subr.mxu0 0.0
      %4259 = vmatpush1.msra.mxu0 0.0
      %4260 = vmatprep.subr.mxu0 0.0
      %4261 = vmatpush1.msra.mxu0 0.0
      %4262 = vmatprep.mubr.f32.mxu0 0.0
      %4263 = vmatmul.mubr.f32.gmra.mrb[0].mxu0 %v4196
      %v4264 = vpop.f32.mrb[0].mxu0
      %v4265 = vadd.f32 %v4121, %v4264
      %v4266 = vpop.f32.mrb[0].mxu0
      %v4267 = vadd.f32 %v4123, %v4266
      %4268 = vdwg.mxu0
      %4269 = vmatprep.subr.mxu0 %v3922
      %4270 = vmatpush1.msra.mxu0 %v3921
      %4271 = vmatprep.subr.mxu0 0.0
      %4272 = vmatpush1.msra.mxu0 0.0
      %4273 = vmatprep.subr.mxu0 0.0
      %4274 = vmatpush1.msra.mxu0 0.0
      %4275 = vmatprep.subr.mxu0 0.0
      %4276 = vmatpush1.msra.mxu0 0.0
      %4277 = vmatprep.subr.mxu0 0.0
      %4278 = vmatpush1.msra.mxu0 0.0
      %4279 = vmatprep.subr.mxu0 0.0
      %4280 = vmatpush1.msra.mxu0 0.0
      %4281 = vmatprep.subr.mxu0 0.0
      %4282 = vmatpush1.msra.mxu0 0.0
      %4283 = vmatprep.subr.mxu0 0.0
      %4284 = vmatpush1.msra.mxu0 0.0
      %4285 = vmatprep.subr.mxu0 0.0
      %4286 = vmatpush1.msra.mxu0 0.0
      %4287 = vmatprep.subr.mxu0 0.0
      %4288 = vmatpush1.msra.mxu0 0.0
      %4289 = vmatprep.subr.mxu0 0.0
      %4290 = vmatpush1.msra.mxu0 0.0
      %4291 = vmatprep.subr.mxu0 0.0
      %4292 = vmatpush1.msra.mxu0 0.0
      %4293 = vmatprep.subr.mxu0 0.0
      %4294 = vmatpush1.msra.mxu0 0.0
      %4295 = vmatprep.subr.mxu0 0.0
      %4296 = vmatpush1.msra.mxu0 0.0
      %4297 = vmatprep.subr.mxu0 0.0
      %4298 = vmatpush1.msra.mxu0 0.0
      %4299 = vmatprep.subr.mxu0 0.0
      %4300 = vmatpush1.msra.mxu0 0.0
      %4301 = vmatprep.subr.mxu0 0.0
      %4302 = vmatpush1.msra.mxu0 0.0
      %4303 = vmatprep.subr.mxu0 0.0
      %4304 = vmatpush1.msra.mxu0 0.0
      %4305 = vmatprep.subr.mxu0 0.0
      %4306 = vmatpush1.msra.mxu0 0.0
      %4307 = vmatprep.subr.mxu0 0.0
      %4308 = vmatpush1.msra.mxu0 0.0
      %4309 = vmatprep.subr.mxu0 0.0
      %4310 = vmatpush1.msra.mxu0 0.0
      %4311 = vmatprep.subr.mxu0 0.0
      %4312 = vmatpush1.msra.mxu0 0.0
      %4313 = vmatprep.subr.mxu0 0.0
      %4314 = vmatpush1.msra.mxu0 0.0
      %4315 = vmatprep.subr.mxu0 0.0
      %4316 = vmatpush1.msra.mxu0 0.0
      %4317 = vmatprep.subr.mxu0 0.0
      %4318 = vmatpush1.msra.mxu0 0.0
      %4319 = vmatprep.subr.mxu0 0.0
      %4320 = vmatpush1.msra.mxu0 0.0
      %4321 = vmatprep.subr.mxu0 0.0
      %4322 = vmatpush1.msra.mxu0 0.0
      %4323 = vmatprep.subr.mxu0 0.0
      %4324 = vmatpush1.msra.mxu0 0.0
      %4325 = vmatprep.subr.mxu0 0.0
      %4326 = vmatpush1.msra.mxu0 0.0
      %4327 = vmatprep.subr.mxu0 0.0
      %4328 = vmatpush1.msra.mxu0 0.0
      %4329 = vmatprep.subr.mxu0 0.0
      %4330 = vmatpush1.msra.mxu0 0.0
      %4331 = vmatprep.subr.mxu0 0.0
      %4332 = vmatpush1.msra.mxu0 0.0
      %4333 = vmatprep.mubr.f32.mxu0 0.0
      %4334 = vmatmul.mubr.f32.gmra.mrb[0].mxu0 %v4196
      %v4335 = vpop.f32.mrb[0].mxu0
      %v4336 = vadd.f32 %v4192, %v4335
      %v4337 = vpop.f32.mrb[0].mxu0
      %v4338 = vadd.f32 %v4194, %v4337
      %4339 = vdwg.mxu0
      %v4340 = vadd.f32 %v3204, %v4265
      %v4341 = vadd.f32 %v3206, %v4267
      %v4342 = vadd.f32 %v3275, %v4336
      %v4343 = vadd.f32 %v3277, %v4338
      %v4344 = vld [vmem:[%s4 + $0x150] sm:$0xff]
      %v4345 = vld [vmem:[%s4 + $0x158] sm:$0xff]
      %v4346 = vld [vmem:[%s4 + $0x118] sm:$0xff]
      %v4347 = vld [vmem:[%s4 + $0x120] sm:$0xff]
      %4349 = vset.pattern.permute.xlu0 0
      %4350 = vperm.xlu0 %4349, %v4344
      %v4351 = vpop.permute.xlu0 %4350
      %v4353 = vmul.f32 %v4340, %v4351
      %v4354 = vmul.f32 %v4341, %v4351
      %v4355 = vmul.f32 %v4342, %v4351
      %v4356 = vmul.f32 %v4343, %v4351
      %4358 = vset.pattern.permute.xlu0 0
      %4359 = vperm.xlu0 %4358, %v4345
      %v4360 = vpop.permute.xlu0 %4359
      %v4362 = vadd.f32 %v4353, %v4360
      %v4363 = vadd.f32 %v4354, %v4360
      %v4364 = vadd.f32 %v4355, %v4360
      %v4365 = vadd.f32 %v4356, %v4360
      %v4366 = vmul.f32 %v4362, 0.70710677
      %v4367 = vmul.f32 %v4363, 0.70710677
      %v4368 = vmul.f32 %v4364, 0.70710677
      %v4369 = vmul.f32 %v4365, 0.70710677
      %v4370 = vand.u32 2147483647, %v4366
      %v4371 = vand.u32 2147483647, %v4367
      %v4372 = vand.u32 2147483647, %v4368
      %v4373 = vand.u32 2147483647, %v4369
      %v4374 = vmul.f32 %v4370, 0.3275911
      %v4375 = vmul.f32 %v4371, 0.3275911
      %v4376 = vmul.f32 %v4372, 0.3275911
      %v4377 = vmul.f32 %v4373, 0.3275911
      %v4378 = vadd.f32 %v4374, 1.0
      %v4379 = vadd.f32 %v4375, 1.0
      %v4380 = vadd.f32 %v4376, 1.0
      %v4381 = vadd.f32 %v4377, 1.0
      %v4382 = vrcp.pop %v4378
      %v4383 = vmul.f32 1.0, %v4382
      %v4384 = vrcp.pop %v4379
      %v4385 = vmul.f32 1.0, %v4384
      %v4386 = vrcp.pop %v4380
      %v4387 = vmul.f32 1.0, %v4386
      %v4388 = vrcp.pop %v4381
      %v4389 = vmul.f32 1.0, %v4388
      %v4390 = vmul.f32 %v4383, 1.0614054
      %v4391 = vmul.f32 %v4385, 1.0614054
      %v4392 = vmul.f32 %v4387, 1.0614054
      %v4393 = vmul.f32 %v4389, 1.0614054
      %v4394 = vadd.f32 %v4390, -1.4531521
      %v4395 = vadd.f32 %v4391, -1.4531521
      %v4396 = vadd.f32 %v4392, -1.4531521
      %v4397 = vadd.f32 %v4393, -1.4531521
      %v4398 = vmul.f32 %v4383, %v4394
      %v4399 = vmul.f32 %v4385, %v4395
      %v4400 = vmul.f32 %v4387, %v4396
      %v4401 = vmul.f32 %v4389, %v4397
      %v4402 = vadd.f32 %v4398, 1.4214138
      %v4403 = vadd.f32 %v4399, 1.4214138
      %v4404 = vadd.f32 %v4400, 1.4214138
      %v4405 = vadd.f32 %v4401, 1.4214138
      %v4406 = vmul.f32 %v4383, %v4402
      %v4407 = vmul.f32 %v4385, %v4403
      %v4408 = vmul.f32 %v4387, %v4404
      %v4409 = vmul.f32 %v4389, %v4405
      %v4410 = vadd.f32 %v4406, -0.28449672
      %v4411 = vadd.f32 %v4407, -0.28449672
      %v4412 = vadd.f32 %v4408, -0.28449672
      %v4413 = vadd.f32 %v4409, -0.28449672
      %v4414 = vmul.f32 %v4383, %v4410
      %v4415 = vmul.f32 %v4385, %v4411
      %v4416 = vmul.f32 %v4387, %v4412
      %v4417 = vmul.f32 %v4389, %v4413
      %v4418 = vadd.f32 %v4414, 0.2548296
      %v4419 = vadd.f32 %v4415, 0.2548296
      %v4420 = vadd.f32 %v4416, 0.2548296
      %v4421 = vadd.f32 %v4417, 0.2548296
      %v4422 = vmul.f32 %v4383, %v4418
      %v4423 = vmul.f32 %v4385, %v4419
      %v4424 = vmul.f32 %v4387, %v4420
      %v4425 = vmul.f32 %v4389, %v4421
      %v4426 = vmul.f32 %v4370, %v4370
      %v4427 = vmul.f32 %v4371, %v4371
      %v4428 = vmul.f32 %v4372, %v4372
      %v4429 = vmul.f32 %v4373, %v4373
      %v4430 = vsub.f32 0.0, %v4426
      %v4431 = vsub.f32 0.0, %v4427
      %v4432 = vsub.f32 0.0, %v4428
      %v4433 = vsub.f32 0.0, %v4429
      %v4434 = vmul.f32 %v4430, 1.442695
      %v4435 = vpow.pop %v4434
      %v4436 = vmul.f32 %v4431, 1.442695
      %v4437 = vpow.pop %v4436
      %v4438 = vmul.f32 %v4432, 1.442695
      %v4439 = vpow.pop %v4438
      %v4440 = vmul.f32 %v4433, 1.442695
      %v4441 = vpow.pop %v4440
      %v4442 = vmul.f32 %v4422, %v4435
      %v4443 = vmul.f32 %v4423, %v4437
      %v4444 = vmul.f32 %v4424, %v4439
      %v4445 = vmul.f32 %v4425, %v4441
      %v4446 = vsub.f32 1.0, %v4442
      %v4447 = vsub.f32 1.0, %v4443
      %v4448 = vsub.f32 1.0, %v4444
      %v4449 = vsub.f32 1.0, %v4445
      %vm4450 = vcmp.ge.f32.partialorder %v4366, 0.0
      %vm4451 = vcmp.ge.f32.partialorder %v4367, 0.0
      %vm4452 = vcmp.ge.f32.partialorder %v4368, 0.0
      %vm4453 = vcmp.ge.f32.partialorder %v4369, 0.0
      %v4454 = vsub.f32 0.0, %v4446
      %v4455 = vsub.f32 0.0, %v4447
      %v4456 = vsub.f32 0.0, %v4448
      %v4457 = vsub.f32 0.0, %v4449
      %v4458 = vsel %vm4450, %v4446, %v4454
      %v4459 = vsel %vm4451, %v4447, %v4455
      %v4460 = vsel %vm4452, %v4448, %v4456
      %v4461 = vsel %vm4453, %v4449, %v4457
      %v4462 = vmul.f32 %v4362, 0.5
      %v4463 = vmul.f32 %v4363, 0.5
      %v4464 = vmul.f32 %v4364, 0.5
      %v4465 = vmul.f32 %v4365, 0.5
      %v4466 = vadd.f32 %v4458, 1.0
      %v4467 = vadd.f32 %v4459, 1.0
      %v4468 = vadd.f32 %v4460, 1.0
      %v4469 = vadd.f32 %v4461, 1.0
      %v4470 = vmul.f32 %v4462, %v4466
      %v4471 = vmul.f32 %v4463, %v4467
      %v4472 = vmul.f32 %v4464, %v4468
      %v4473 = vmul.f32 %v4465, %v4469
      %v4475 = vsel %vm521, %v4346, 0
      %v4478 = vsel %vm521, %v4347, 0
      %4480 = vmatprep.subr.mxu0 %v4471
      %4481 = vmatpush1.msra.mxu0 %v4470
      %4482 = vmatprep.subr.mxu0 0.0
      %4483 = vmatpush1.msra.mxu0 0.0
      %4484 = vmatprep.subr.mxu0 0.0
      %4485 = vmatpush1.msra.mxu0 0.0
      %4486 = vmatprep.subr.mxu0 0.0
      %4487 = vmatpush1.msra.mxu0 0.0
      %4488 = vmatprep.subr.mxu0 0.0
      %4489 = vmatpush1.msra.mxu0 0.0
      %4490 = vmatprep.subr.mxu0 0.0
      %4491 = vmatpush1.msra.mxu0 0.0
      %4492 = vmatprep.subr.mxu0 0.0
      %4493 = vmatpush1.msra.mxu0 0.0
      %4494 = vmatprep.subr.mxu0 0.0
      %4495 = vmatpush1.msra.mxu0 0.0
      %4496 = vmatprep.subr.mxu0 0.0
      %4497 = vmatpush1.msra.mxu0 0.0
      %4498 = vmatprep.subr.mxu0 0.0
      %4499 = vmatpush1.msra.mxu0 0.0
      %4500 = vmatprep.subr.mxu0 0.0
      %4501 = vmatpush1.msra.mxu0 0.0
      %4502 = vmatprep.subr.mxu0 0.0
      %4503 = vmatpush1.msra.mxu0 0.0
      %4504 = vmatprep.subr.mxu0 0.0
      %4505 = vmatpush1.msra.mxu0 0.0
      %4506 = vmatprep.subr.mxu0 0.0
      %4507 = vmatpush1.msra.mxu0 0.0
      %4508 = vmatprep.subr.mxu0 0.0
      %4509 = vmatpush1.msra.mxu0 0.0
      %4510 = vmatprep.subr.mxu0 0.0
      %4511 = vmatpush1.msra.mxu0 0.0
      %4512 = vmatprep.subr.mxu0 0.0
      %4513 = vmatpush1.msra.mxu0 0.0
      %4514 = vmatprep.subr.mxu0 0.0
      %4515 = vmatpush1.msra.mxu0 0.0
      %4516 = vmatprep.subr.mxu0 0.0
      %4517 = vmatpush1.msra.mxu0 0.0
      %4518 = vmatprep.subr.mxu0 0.0
      %4519 = vmatpush1.msra.mxu0 0.0
      %4520 = vmatprep.subr.mxu0 0.0
      %4521 = vmatpush1.msra.mxu0 0.0
      %4522 = vmatprep.subr.mxu0 0.0
      %4523 = vmatpush1.msra.mxu0 0.0
      %4524 = vmatprep.subr.mxu0 0.0
      %4525 = vmatpush1.msra.mxu0 0.0
      %4526 = vmatprep.subr.mxu0 0.0
      %4527 = vmatpush1.msra.mxu0 0.0
      %4528 = vmatprep.subr.mxu0 0.0
      %4529 = vmatpush1.msra.mxu0 0.0
      %4530 = vmatprep.subr.mxu0 0.0
      %4531 = vmatpush1.msra.mxu0 0.0
      %4532 = vmatprep.subr.mxu0 0.0
      %4533 = vmatpush1.msra.mxu0 0.0
      %4534 = vmatprep.subr.mxu0 0.0
      %4535 = vmatpush1.msra.mxu0 0.0
      %4536 = vmatprep.subr.mxu0 0.0
      %4537 = vmatpush1.msra.mxu0 0.0
      %4538 = vmatprep.subr.mxu0 0.0
      %4539 = vmatpush1.msra.mxu0 0.0
      %4540 = vmatprep.subr.mxu0 0.0
      %4541 = vmatpush1.msra.mxu0 0.0
      %4542 = vmatprep.subr.mxu0 0.0
      %4543 = vmatpush1.msra.mxu0 0.0
      %4544 = vmatprep.mubr.f32.mxu0 0.0
      %4545 = vmatmul.mubr.f32.gmra.mrb[0].mxu0 %v4475
      %v4546 = vpop.f32.mrb[0].mxu0
      %v4547 = vadd.f32 0.0, %v4546
      %v4548 = vpop.f32.mrb[0].mxu0
      %v4549 = vadd.f32 0.0, %v4548
      %4550 = vmatprep.mubr.f32.mxu0 0.0
      %4551 = vmatmul.mubr.f32.gmra.mrb[0].mxu0 %v4478
      %v4552 = vpop.f32.mrb[0].mxu0
      %v4553 = vadd.f32 0.0, %v4552
      %v4554 = vpop.f32.mrb[0].mxu0
      %v4555 = vadd.f32 0.0, %v4554
      %4556 = vdwg.mxu0
      %4557 = vmatprep.subr.mxu0 %v4473
      %4558 = vmatpush1.msra.mxu0 %v4472
      %4559 = vmatprep.subr.mxu0 0.0
      %4560 = vmatpush1.msra.mxu0 0.0
      %4561 = vmatprep.subr.mxu0 0.0
      %4562 = vmatpush1.msra.mxu0 0.0
      %4563 = vmatprep.subr.mxu0 0.0
      %4564 = vmatpush1.msra.mxu0 0.0
      %4565 = vmatprep.subr.mxu0 0.0
      %4566 = vmatpush1.msra.mxu0 0.0
      %4567 = vmatprep.subr.mxu0 0.0
      %4568 = vmatpush1.msra.mxu0 0.0
      %4569 = vmatprep.subr.mxu0 0.0
      %4570 = vmatpush1.msra.mxu0 0.0
      %4571 = vmatprep.subr.mxu0 0.0
      %4572 = vmatpush1.msra.mxu0 0.0
      %4573 = vmatprep.subr.mxu0 0.0
      %4574 = vmatpush1.msra.mxu0 0.0
      %4575 = vmatprep.subr.mxu0 0.0
      %4576 = vmatpush1.msra.mxu0 0.0
      %4577 = vmatprep.subr.mxu0 0.0
      %4578 = vmatpush1.msra.mxu0 0.0
      %4579 = vmatprep.subr.mxu0 0.0
      %4580 = vmatpush1.msra.mxu0 0.0
      %4581 = vmatprep.subr.mxu0 0.0
      %4582 = vmatpush1.msra.mxu0 0.0
      %4583 = vmatprep.subr.mxu0 0.0
      %4584 = vmatpush1.msra.mxu0 0.0
      %4585 = vmatprep.subr.mxu0 0.0
      %4586 = vmatpush1.msra.mxu0 0.0
      %4587 = vmatprep.subr.mxu0 0.0
      %4588 = vmatpush1.msra.mxu0 0.0
      %4589 = vmatprep.subr.mxu0 0.0
      %4590 = vmatpush1.msra.mxu0 0.0
      %4591 = vmatprep.subr.mxu0 0.0
      %4592 = vmatpush1.msra.mxu0 0.0
      %4593 = vmatprep.subr.mxu0 0.0
      %4594 = vmatpush1.msra.mxu0 0.0
      %4595 = vmatprep.subr.mxu0 0.0
      %4596 = vmatpush1.msra.mxu0 0.0
      %4597 = vmatprep.subr.mxu0 0.0
      %4598 = vmatpush1.msra.mxu0 0.0
      %4599 = vmatprep.subr.mxu0 0.0
      %4600 = vmatpush1.msra.mxu0 0.0
      %4601 = vmatprep.subr.mxu0 0.0
      %4602 = vmatpush1.msra.mxu0 0.0
      %4603 = vmatprep.subr.mxu0 0.0
      %4604 = vmatpush1.msra.mxu0 0.0
      %4605 = vmatprep.subr.mxu0 0.0
      %4606 = vmatpush1.msra.mxu0 0.0
      %4607 = vmatprep.subr.mxu0 0.0
      %4608 = vmatpush1.msra.mxu0 0.0
      %4609 = vmatprep.subr.mxu0 0.0
      %4610 = vmatpush1.msra.mxu0 0.0
      %4611 = vmatprep.subr.mxu0 0.0
      %4612 = vmatpush1.msra.mxu0 0.0
      %4613 = vmatprep.subr.mxu0 0.0
      %4614 = vmatpush1.msra.mxu0 0.0
      %4615 = vmatprep.subr.mxu0 0.0
      %4616 = vmatpush1.msra.mxu0 0.0
      %4617 = vmatprep.subr.mxu0 0.0
      %4618 = vmatpush1.msra.mxu0 0.0
      %4619 = vmatprep.subr.mxu0 0.0
      %4620 = vmatpush1.msra.mxu0 0.0
      %4621 = vmatprep.mubr.f32.mxu0 0.0
      %4622 = vmatmul.mubr.f32.gmra.mrb[0].mxu0 %v4475
      %v4623 = vpop.f32.mrb[0].mxu0
      %v4624 = vadd.f32 0.0, %v4623
      %v4625 = vpop.f32.mrb[0].mxu0
      %v4626 = vadd.f32 0.0, %v4625
      %4627 = vmatprep.mubr.f32.mxu0 0.0
      %4628 = vmatmul.mubr.f32.gmra.mrb[0].mxu0 %v4478
      %v4629 = vpop.f32.mrb[0].mxu0
      %v4630 = vadd.f32 0.0, %v4629
      %v4631 = vpop.f32.mrb[0].mxu0
      %v4632 = vadd.f32 0.0, %v4631
      %4633 = vdwg.mxu0
      %v4634 = vld [vmem:[%s4 + $0x160] sm:$0xff]
      %v4635 = vld [vmem:[%s4 + $0x168] sm:$0xff]
      %v4636 = vld [vmem:[%s4 + $0x170] sm:$0xff]
      %v4637 = vld [vmem:[%s4 + $0x178] sm:$0xff]
      %v4638 = vld [vmem:[%s4 + $0x128] sm:$0xff]
      %4640 = vset.pattern.permute.xlu0 0
      %4641 = vperm.xlu0 %4640, %v4634
      %v4642 = vpop.permute.xlu0 %4641
      %4645 = vset.pattern.permute.xlu0 0
      %4646 = vperm.xlu0 %4645, %v4635
      %v4647 = vpop.permute.xlu0 %4646
      %v4649 = vmul.f32 %v4547, %v4642
      %v4650 = vmul.f32 %v4549, %v4642
      %v4651 = vmul.f32 %v4624, %v4642
      %v4652 = vmul.f32 %v4626, %v4642
      %v4653 = vmul.f32 %v4553, %v4647
      %v4654 = vmul.f32 %v4555, %v4647
      %v4655 = vmul.f32 %v4630, %v4647
      %v4656 = vmul.f32 %v4632, %v4647
      %4658 = vset.pattern.permute.xlu0 0
      %4659 = vperm.xlu0 %4658, %v4636
      %v4660 = vpop.permute.xlu0 %4659
      %4663 = vset.pattern.permute.xlu0 0
      %4664 = vperm.xlu0 %4663, %v4637
      %v4665 = vpop.permute.xlu0 %4664
      %v4667 = vadd.f32 %v4649, %v4660
      %v4668 = vadd.f32 %v4650, %v4660
      %v4669 = vadd.f32 %v4651, %v4660
      %v4670 = vadd.f32 %v4652, %v4660
      %v4671 = vadd.f32 %v4653, %v4665
      %v4672 = vadd.f32 %v4654, %v4665
      %v4673 = vadd.f32 %v4655, %v4665
      %v4674 = vadd.f32 %v4656, %v4665
      %v4675 = vmul.f32 %v4667, 0.70710677
      %v4676 = vmul.f32 %v4668, 0.70710677
      %v4677 = vmul.f32 %v4669, 0.70710677
      %v4678 = vmul.f32 %v4670, 0.70710677
      %v4679 = vmul.f32 %v4671, 0.70710677
      %v4680 = vmul.f32 %v4672, 0.70710677
      %v4681 = vmul.f32 %v4673, 0.70710677
      %v4682 = vmul.f32 %v4674, 0.70710677
      %v4683 = vand.u32 2147483647, %v4675
      %v4684 = vand.u32 2147483647, %v4676
      %v4685 = vand.u32 2147483647, %v4677
      %v4686 = vand.u32 2147483647, %v4678
      %v4687 = vand.u32 2147483647, %v4679
      %v4688 = vand.u32 2147483647, %v4680
      %v4689 = vand.u32 2147483647, %v4681
      %v4690 = vand.u32 2147483647, %v4682
      %v4691 = vmul.f32 %v4683, 0.3275911
      %v4692 = vmul.f32 %v4684, 0.3275911
      %v4693 = vmul.f32 %v4685, 0.3275911
      %v4694 = vmul.f32 %v4686, 0.3275911
      %v4695 = vmul.f32 %v4687, 0.3275911
      %v4696 = vmul.f32 %v4688, 0.3275911
      %v4697 = vmul.f32 %v4689, 0.3275911
      %v4698 = vmul.f32 %v4690, 0.3275911
      %v4699 = vadd.f32 %v4691, 1.0
      %v4700 = vadd.f32 %v4692, 1.0
      %v4701 = vadd.f32 %v4693, 1.0
      %v4702 = vadd.f32 %v4694, 1.0
      %v4703 = vadd.f32 %v4695, 1.0
      %v4704 = vadd.f32 %v4696, 1.0
      %v4705 = vadd.f32 %v4697, 1.0
      %v4706 = vadd.f32 %v4698, 1.0
      %v4707 = vrcp.pop %v4699
      %v4708 = vmul.f32 1.0, %v4707
      %v4709 = vrcp.pop %v4700
      %v4710 = vmul.f32 1.0, %v4709
      %v4711 = vrcp.pop %v4701
      %v4712 = vmul.f32 1.0, %v4711
      %v4713 = vrcp.pop %v4702
      %v4714 = vmul.f32 1.0, %v4713
      %v4715 = vrcp.pop %v4703
      %v4716 = vmul.f32 1.0, %v4715
      %v4717 = vrcp.pop %v4704
      %v4718 = vmul.f32 1.0, %v4717
      %v4719 = vrcp.pop %v4705
      %v4720 = vmul.f32 1.0, %v4719
      %v4721 = vrcp.pop %v4706
      %v4722 = vmul.f32 1.0, %v4721
      %v4723 = vmul.f32 %v4708, 1.0614054
      %v4724 = vmul.f32 %v4710, 1.0614054
      %v4725 = vmul.f32 %v4712, 1.0614054
      %v4726 = vmul.f32 %v4714, 1.0614054
      %v4727 = vmul.f32 %v4716, 1.0614054
      %v4728 = vmul.f32 %v4718, 1.0614054
      %v4729 = vmul.f32 %v4720, 1.0614054
      %v4730 = vmul.f32 %v4722, 1.0614054
      %v4731 = vadd.f32 %v4723, -1.4531521
      %v4732 = vadd.f32 %v4724, -1.4531521
      %v4733 = vadd.f32 %v4725, -1.4531521
      %v4734 = vadd.f32 %v4726, -1.4531521
      %v4735 = vadd.f32 %v4727, -1.4531521
      %v4736 = vadd.f32 %v4728, -1.4531521
      %v4737 = vadd.f32 %v4729, -1.4531521
      %v4738 = vadd.f32 %v4730, -1.4531521
      %v4739 = vmul.f32 %v4708, %v4731
      %v4740 = vmul.f32 %v4710, %v4732
      %v4741 = vmul.f32 %v4712, %v4733
      %v4742 = vmul.f32 %v4714, %v4734
      %v4743 = vmul.f32 %v4716, %v4735
      %v4744 = vmul.f32 %v4718, %v4736
      %v4745 = vmul.f32 %v4720, %v4737
      %v4746 = vmul.f32 %v4722, %v4738
      %v4747 = vadd.f32 %v4739, 1.4214138
      %v4748 = vadd.f32 %v4740, 1.4214138
      %v4749 = vadd.f32 %v4741, 1.4214138
      %v4750 = vadd.f32 %v4742, 1.4214138
      %v4751 = vadd.f32 %v4743, 1.4214138
      %v4752 = vadd.f32 %v4744, 1.4214138
      %v4753 = vadd.f32 %v4745, 1.4214138
      %v4754 = vadd.f32 %v4746, 1.4214138
      %v4755 = vmul.f32 %v4708, %v4747
      %v4756 = vmul.f32 %v4710, %v4748
      %v4757 = vmul.f32 %v4712, %v4749
      %v4758 = vmul.f32 %v4714, %v4750
      %v4759 = vmul.f32 %v4716, %v4751
      %v4760 = vmul.f32 %v4718, %v4752
      %v4761 = vmul.f32 %v4720, %v4753
      %v4762 = vmul.f32 %v4722, %v4754
      %v4763 = vadd.f32 %v4755, -0.28449672
      %v4764 = vadd.f32 %v4756, -0.28449672
      %v4765 = vadd.f32 %v4757, -0.28449672
      %v4766 = vadd.f32 %v4758, -0.28449672
      %v4767 = vadd.f32 %v4759, -0.28449672
      %v4768 = vadd.f32 %v4760, -0.28449672
      %v4769 = vadd.f32 %v4761, -0.28449672
      %v4770 = vadd.f32 %v4762, -0.28449672
      %v4771 = vmul.f32 %v4708, %v4763
      %v4772 = vmul.f32 %v4710, %v4764
      %v4773 = vmul.f32 %v4712, %v4765
      %v4774 = vmul.f32 %v4714, %v4766
      %v4775 = vmul.f32 %v4716, %v4767
      %v4776 = vmul.f32 %v4718, %v4768
      %v4777 = vmul.f32 %v4720, %v4769
      %v4778 = vmul.f32 %v4722, %v4770
      %v4779 = vadd.f32 %v4771, 0.2548296
      %v4780 = vadd.f32 %v4772, 0.2548296
      %v4781 = vadd.f32 %v4773, 0.2548296
      %v4782 = vadd.f32 %v4774, 0.2548296
      %v4783 = vadd.f32 %v4775, 0.2548296
      %v4784 = vadd.f32 %v4776, 0.2548296
      %v4785 = vadd.f32 %v4777, 0.2548296
      %v4786 = vadd.f32 %v4778, 0.2548296
      %v4787 = vmul.f32 %v4708, %v4779
      %v4788 = vmul.f32 %v4710, %v4780
      %v4789 = vmul.f32 %v4712, %v4781
      %v4790 = vmul.f32 %v4714, %v4782
      %v4791 = vmul.f32 %v4716, %v4783
      %v4792 = vmul.f32 %v4718, %v4784
      %v4793 = vmul.f32 %v4720, %v4785
      %v4794 = vmul.f32 %v4722, %v4786
      %v4795 = vmul.f32 %v4683, %v4683
      %v4796 = vmul.f32 %v4684, %v4684
      %v4797 = vmul.f32 %v4685, %v4685
      %v4798 = vmul.f32 %v4686, %v4686
      %v4799 = vmul.f32 %v4687, %v4687
      %v4800 = vmul.f32 %v4688, %v4688
      %v4801 = vmul.f32 %v4689, %v4689
      %v4802 = vmul.f32 %v4690, %v4690
      %v4803 = vsub.f32 0.0, %v4795
      %v4804 = vsub.f32 0.0, %v4796
      %v4805 = vsub.f32 0.0, %v4797
      %v4806 = vsub.f32 0.0, %v4798
      %v4807 = vsub.f32 0.0, %v4799
      %v4808 = vsub.f32 0.0, %v4800
      %v4809 = vsub.f32 0.0, %v4801
      %v4810 = vsub.f32 0.0, %v4802
      %v4811 = vmul.f32 %v4803, 1.442695
      %v4812 = vpow.pop %v4811
      %v4813 = vmul.f32 %v4804, 1.442695
      %v4814 = vpow.pop %v4813
      %v4815 = vmul.f32 %v4805, 1.442695
      %v4816 = vpow.pop %v4815
      %v4817 = vmul.f32 %v4806, 1.442695
      %v4818 = vpow.pop %v4817
      %v4819 = vmul.f32 %v4807, 1.442695
      %v4820 = vpow.pop %v4819
      %v4821 = vmul.f32 %v4808, 1.442695
      %v4822 = vpow.pop %v4821
      %v4823 = vmul.f32 %v4809, 1.442695
      %v4824 = vpow.pop %v4823
      %v4825 = vmul.f32 %v4810, 1.442695
      %v4826 = vpow.pop %v4825
      %v4827 = vmul.f32 %v4787, %v4812
      %v4828 = vmul.f32 %v4788, %v4814
      %v4829 = vmul.f32 %v4789, %v4816
      %v4830 = vmul.f32 %v4790, %v4818
      %v4831 = vmul.f32 %v4791, %v4820
      %v4832 = vmul.f32 %v4792, %v4822
      %v4833 = vmul.f32 %v4793, %v4824
      %v4834 = vmul.f32 %v4794, %v4826
      %v4835 = vsub.f32 1.0, %v4827
      %v4836 = vsub.f32 1.0, %v4828
      %v4837 = vsub.f32 1.0, %v4829
      %v4838 = vsub.f32 1.0, %v4830
      %v4839 = vsub.f32 1.0, %v4831
      %v4840 = vsub.f32 1.0, %v4832
      %v4841 = vsub.f32 1.0, %v4833
      %v4842 = vsub.f32 1.0, %v4834
      %vm4843 = vcmp.ge.f32.partialorder %v4675, 0.0
      %vm4844 = vcmp.ge.f32.partialorder %v4676, 0.0
      %vm4845 = vcmp.ge.f32.partialorder %v4677, 0.0
      %vm4846 = vcmp.ge.f32.partialorder %v4678, 0.0
      %vm4847 = vcmp.ge.f32.partialorder %v4679, 0.0
      %vm4848 = vcmp.ge.f32.partialorder %v4680, 0.0
      %vm4849 = vcmp.ge.f32.partialorder %v4681, 0.0
      %vm4850 = vcmp.ge.f32.partialorder %v4682, 0.0
      %v4851 = vsub.f32 0.0, %v4835
      %v4852 = vsub.f32 0.0, %v4836
      %v4853 = vsub.f32 0.0, %v4837
      %v4854 = vsub.f32 0.0, %v4838
      %v4855 = vsub.f32 0.0, %v4839
      %v4856 = vsub.f32 0.0, %v4840
      %v4857 = vsub.f32 0.0, %v4841
      %v4858 = vsub.f32 0.0, %v4842
      %v4859 = vsel %vm4843, %v4835, %v4851
      %v4860 = vsel %vm4844, %v4836, %v4852
      %v4861 = vsel %vm4845, %v4837, %v4853
      %v4862 = vsel %vm4846, %v4838, %v4854
      %v4863 = vsel %vm4847, %v4839, %v4855
      %v4864 = vsel %vm4848, %v4840, %v4856
      %v4865 = vsel %vm4849, %v4841, %v4857
      %v4866 = vsel %vm4850, %v4842, %v4858
      %v4867 = vmul.f32 %v4667, 0.5
      %v4868 = vmul.f32 %v4668, 0.5
      %v4869 = vmul.f32 %v4669, 0.5
      %v4870 = vmul.f32 %v4670, 0.5
      %v4871 = vmul.f32 %v4671, 0.5
      %v4872 = vmul.f32 %v4672, 0.5
      %v4873 = vmul.f32 %v4673, 0.5
      %v4874 = vmul.f32 %v4674, 0.5
      %v4875 = vadd.f32 %v4859, 1.0
      %v4876 = vadd.f32 %v4860, 1.0
      %v4877 = vadd.f32 %v4861, 1.0
      %v4878 = vadd.f32 %v4862, 1.0
      %v4879 = vadd.f32 %v4863, 1.0
      %v4880 = vadd.f32 %v4864, 1.0
      %v4881 = vadd.f32 %v4865, 1.0
      %v4882 = vadd.f32 %v4866, 1.0
      %v4883 = vmul.f32 %v4867, %v4875
      %v4884 = vmul.f32 %v4868, %v4876
      %v4885 = vmul.f32 %v4869, %v4877
      %v4886 = vmul.f32 %v4870, %v4878
      %v4887 = vmul.f32 %v4871, %v4879
      %v4888 = vmul.f32 %v4872, %v4880
      %v4889 = vmul.f32 %v4873, %v4881
      %v4890 = vmul.f32 %v4874, %v4882
      %v4892 = vsel %vm1297, %v4638, 0
      %4894 = vmatprep.subr.mxu0 %v4884
      %4895 = vmatpush1.msra.mxu0 %v4883
      %4896 = vmatprep.subr.mxu0 %v4888
      %4897 = vmatpush1.msra.mxu0 %v4887
      %4898 = vmatprep.subr.mxu0 0.0
      %4899 = vmatpush1.msra.mxu0 0.0
      %4900 = vmatprep.subr.mxu0 0.0
      %4901 = vmatpush1.msra.mxu0 0.0
      %4902 = vmatprep.subr.mxu0 0.0
      %4903 = vmatpush1.msra.mxu0 0.0
      %4904 = vmatprep.subr.mxu0 0.0
      %4905 = vmatpush1.msra.mxu0 0.0
      %4906 = vmatprep.subr.mxu0 0.0
      %4907 = vmatpush1.msra.mxu0 0.0
      %4908 = vmatprep.subr.mxu0 0.0
      %4909 = vmatpush1.msra.mxu0 0.0
      %4910 = vmatprep.subr.mxu0 0.0
      %4911 = vmatpush1.msra.mxu0 0.0
      %4912 = vmatprep.subr.mxu0 0.0
      %4913 = vmatpush1.msra.mxu0 0.0
      %4914 = vmatprep.subr.mxu0 0.0
      %4915 = vmatpush1.msra.mxu0 0.0
      %4916 = vmatprep.subr.mxu0 0.0
      %4917 = vmatpush1.msra.mxu0 0.0
      %4918 = vmatprep.subr.mxu0 0.0
      %4919 = vmatpush1.msra.mxu0 0.0
      %4920 = vmatprep.subr.mxu0 0.0
      %4921 = vmatpush1.msra.mxu0 0.0
      %4922 = vmatprep.subr.mxu0 0.0
      %4923 = vmatpush1.msra.mxu0 0.0
      %4924 = vmatprep.subr.mxu0 0.0
      %4925 = vmatpush1.msra.mxu0 0.0
      %4926 = vmatprep.subr.mxu0 0.0
      %4927 = vmatpush1.msra.mxu0 0.0
      %4928 = vmatprep.subr.mxu0 0.0
      %4929 = vmatpush1.msra.mxu0 0.0
      %4930 = vmatprep.subr.mxu0 0.0
      %4931 = vmatpush1.msra.mxu0 0.0
      %4932 = vmatprep.subr.mxu0 0.0
      %4933 = vmatpush1.msra.mxu0 0.0
      %4934 = vmatprep.subr.mxu0 0.0
      %4935 = vmatpush1.msra.mxu0 0.0
      %4936 = vmatprep.subr.mxu0 0.0
      %4937 = vmatpush1.msra.mxu0 0.0
      %4938 = vmatprep.subr.mxu0 0.0
      %4939 = vmatpush1.msra.mxu0 0.0
      %4940 = vmatprep.subr.mxu0 0.0
      %4941 = vmatpush1.msra.mxu0 0.0
      %4942 = vmatprep.subr.mxu0 0.0
      %4943 = vmatpush1.msra.mxu0 0.0
      %4944 = vmatprep.subr.mxu0 0.0
      %4945 = vmatpush1.msra.mxu0 0.0
      %4946 = vmatprep.subr.mxu0 0.0
      %4947 = vmatpush1.msra.mxu0 0.0
      %4948 = vmatprep.subr.mxu0 0.0
      %4949 = vmatpush1.msra.mxu0 0.0
      %4950 = vmatprep.subr.mxu0 0.0
      %4951 = vmatpush1.msra.mxu0 0.0
      %4952 = vmatprep.subr.mxu0 0.0
      %4953 = vmatpush1.msra.mxu0 0.0
      %4954 = vmatprep.subr.mxu0 0.0
      %4955 = vmatpush1.msra.mxu0 0.0
      %4956 = vmatprep.subr.mxu0 0.0
      %4957 = vmatpush1.msra.mxu0 0.0
      %4958 = vmatprep.mubr.f32.mxu0 0.0
      %4959 = vmatmul.mubr.f32.gmra.mrb[0].mxu0 %v4892
      %v4960 = vpop.f32.mrb[0].mxu0
      %v4961 = vadd.f32 0.0, %v4960
      %v4962 = vpop.f32.mrb[0].mxu0
      %v4963 = vadd.f32 0.0, %v4962
      %4964 = vdwg.mxu0
      %4965 = vmatprep.subr.mxu0 %v4886
      %4966 = vmatpush1.msra.mxu0 %v4885
      %4967 = vmatprep.subr.mxu0 %v4890
      %4968 = vmatpush1.msra.mxu0 %v4889
      %4969 = vmatprep.subr.mxu0 0.0
      %4970 = vmatpush1.msra.mxu0 0.0
      %4971 = vmatprep.subr.mxu0 0.0
      %4972 = vmatpush1.msra.mxu0 0.0
      %4973 = vmatprep.subr.mxu0 0.0
      %4974 = vmatpush1.msra.mxu0 0.0
      %4975 = vmatprep.subr.mxu0 0.0
      %4976 = vmatpush1.msra.mxu0 0.0
      %4977 = vmatprep.subr.mxu0 0.0
      %4978 = vmatpush1.msra.mxu0 0.0
      %4979 = vmatprep.subr.mxu0 0.0
      %4980 = vmatpush1.msra.mxu0 0.0
      %4981 = vmatprep.subr.mxu0 0.0
      %4982 = vmatpush1.msra.mxu0 0.0
      %4983 = vmatprep.subr.mxu0 0.0
      %4984 = vmatpush1.msra.mxu0 0.0
      %4985 = vmatprep.subr.mxu0 0.0
      %4986 = vmatpush1.msra.mxu0 0.0
      %4987 = vmatprep.subr.mxu0 0.0
      %4988 = vmatpush1.msra.mxu0 0.0
      %4989 = vmatprep.subr.mxu0 0.0
      %4990 = vmatpush1.msra.mxu0 0.0
      %4991 = vmatprep.subr.mxu0 0.0
      %4992 = vmatpush1.msra.mxu0 0.0
      %4993 = vmatprep.subr.mxu0 0.0
      %4994 = vmatpush1.msra.mxu0 0.0
      %4995 = vmatprep.subr.mxu0 0.0
      %4996 = vmatpush1.msra.mxu0 0.0
      %4997 = vmatprep.subr.mxu0 0.0
      %4998 = vmatpush1.msra.mxu0 0.0
      %4999 = vmatprep.subr.mxu0 0.0
      %5000 = vmatpush1.msra.mxu0 0.0
      %5001 = vmatprep.subr.mxu0 0.0
      %5002 = vmatpush1.msra.mxu0 0.0
      %5003 = vmatprep.subr.mxu0 0.0
      %5004 = vmatpush1.msra.mxu0 0.0
      %5005 = vmatprep.subr.mxu0 0.0
      %5006 = vmatpush1.msra.mxu0 0.0
      %5007 = vmatprep.subr.mxu0 0.0
      %5008 = vmatpush1.msra.mxu0 0.0
      %5009 = vmatprep.subr.mxu0 0.0
      %5010 = vmatpush1.msra.mxu0 0.0
      %5011 = vmatprep.subr.mxu0 0.0
      %5012 = vmatpush1.msra.mxu0 0.0
      %5013 = vmatprep.subr.mxu0 0.0
      %5014 = vmatpush1.msra.mxu0 0.0
      %5015 = vmatprep.subr.mxu0 0.0
      %5016 = vmatpush1.msra.mxu0 0.0
      %5017 = vmatprep.subr.mxu0 0.0
      %5018 = vmatpush1.msra.mxu0 0.0
      %5019 = vmatprep.subr.mxu0 0.0
      %5020 = vmatpush1.msra.mxu0 0.0
      %5021 = vmatprep.subr.mxu0 0.0
      %5022 = vmatpush1.msra.mxu0 0.0
      %5023 = vmatprep.subr.mxu0 0.0
      %5024 = vmatpush1.msra.mxu0 0.0
      %5025 = vmatprep.subr.mxu0 0.0
      %5026 = vmatpush1.msra.mxu0 0.0
      %5027 = vmatprep.subr.mxu0 0.0
      %5028 = vmatpush1.msra.mxu0 0.0
      %5029 = vmatprep.mubr.f32.mxu0 0.0
      %5030 = vmatmul.mubr.f32.gmra.mrb[0].mxu0 %v4892
      %v5031 = vpop.f32.mrb[0].mxu0
      %v5032 = vadd.f32 0.0, %v5031
      %v5033 = vpop.f32.mrb[0].mxu0
      %v5034 = vadd.f32 0.0, %v5033
      %5035 = vdwg.mxu0
      %v5036 = vadd.f32 %v4340, %v4961
      %v5037 = vadd.f32 %v4341, %v4963
      %v5038 = vadd.f32 %v4342, %v5032
      %v5039 = vadd.f32 %v4343, %v5034
      %5040 = vst [vmem:[%s292] sm:$0xff] %v5036
      %5041 = vst [vmem:[%s292 + $0x8] sm:$0xff] %v5037
      %5042 = vst [vmem:[%s292 + $0x10] sm:$0xff] %v5038
      %5043 = vst [vmem:[%s292 + $0x18] sm:$0xff] %v5039
      %v5044 = vadd.f32 %v302, %v3789
      %5045 = vst.msk [vmem:[%s296] sm:$0xff] %vm335, %v5044
      %p5046 = scmp.lt.s32.totalorder %s18, 1
      %s5047 = scalar_select %p5046, %s18, 1
      %s5048 = smul.addr %s5047, 4
      %s5049 = smul.addr %s5048, 8
      %s5050 = scalar_lea.vmem %s5, %s5049
      %p5051 = scmp.lt.s32.totalorder %s18, 1
      %s5052 = scalar_select %p5051, %s18, 1
      %s5053 = smul.addr %s5052, 8
      %s5054 = scalar_lea.vmem %s6, %s5053
      // Predicated region
      $region41: #{up_block_forward.1} parent=39 // pred_check
        %p5055 = pneg %p156
      $region42: #{up_block_forward.1} parent=39 // pred_check_branch
        %5057 = sbr.rel (%p5055) target = $region44
      $region43: #{up_block_forward.1} parent=39 // pred_region
        _
      $region44: #{up_block_forward.1} parent=39 // pred_fallthru
        _
      // Predicated region
      $region45: #{up_block_forward.1} parent=39 // pred_check
        %p5058 = pneg %p182
      $region46: #{up_block_forward.1} parent=39 // pred_check_branch
        %5060 = sbr.rel (%p5058) target = $region48
      $region47: #{up_block_forward.1} parent=39 // pred_region
        _
      $region48: #{up_block_forward.1} parent=39 // pred_fallthru
        _
    $region40: #{up_block_forward.1} parent=5 // pred_fallthru
      _
    %p5061 = scmp.le.s32.totalorder 2, %s13
    // Predicated region
    $region49: #{up_block_forward.1} parent=5 // pred_check
      %p5062 = pneg %p5061
    $region50: #{up_block_forward.1} parent=5 // pred_check_branch
      %5064 = sbr.rel (%p5062) target = $region52
    $region51: #{up_block_forward.1} parent=5 // pred_region
      %s5065 = ssub.s32 %s13, 2
      // Predicated region
      $region53: #{up_block_forward.1} parent=51 // pred_check
        %p5066 = pneg %p162
      $region54: #{up_block_forward.1} parent=51 // pred_check_branch
        %5068 = sbr.rel (%p5066) target = $region56
      $region55: #{up_block_forward.1} parent=51 // pred_region
        %p5069 = scmp.lt.s32.totalorder %s19, 1
        %s5070 = scalar_select %p5069, %s19, 1
        %s5071 = smul.addr %s5070, 4
        %s5072 = smul.addr %s5071, 8
        %s5073 = scalar_lea.vmem %s5, %s5072
      $region56: #{up_block_forward.1} parent=51 // pred_fallthru
        _
      // Predicated region
      $region57: #{up_block_forward.1} parent=51 // pred_check
        %p5074 = pneg %p188
      $region58: #{up_block_forward.1} parent=51 // pred_check_branch
        %5076 = sbr.rel (%p5074) target = $region60
      $region59: #{up_block_forward.1} parent=51 // pred_region
        %p5077 = scmp.lt.s32.totalorder %s19, 1
        %s5078 = scalar_select %p5077, %s19, 1
        %s5079 = smul.addr %s5078, 8
        %s5080 = scalar_lea.vmem %s6, %s5079
      $region60: #{up_block_forward.1} parent=51 // pred_fallthru
        _
    $region52: #{up_block_forward.1} parent=5 // pred_fallthru
      _
  $region6: #{up_block_forward.1} parent=0 // loop_footer
    %s17 = sadd.s32 1, %s13
  $region7: #{up_block_forward.1} parent=0 // loop_footer_branch
    %12 = sbr.rel target = $region3
  $region8: #{up_block_forward.1} parent=0 // loop_exit
    _

</llo_original>
